<compile_context>
chip_gen: v7x
topology: tpu7x:2x2x1
jax: 0.10.0
libtpu: 0.0.40
codegen_flags: <defaults>
</compile_context>

<pallas_src>
import functools

import jax
import jax.numpy as jnp
from jax import lax
from jax.experimental import pallas as pl
from jax.experimental.pallas import tpu as pltpu

BN_EPS = 1e-5
# 3x3 tap offsets, kh-major (matches the flattened (O, 9*I) weight layout below).
OFFSETS = tuple((kh - 1, kw - 1) for kh in range(3) for kw in range(3))


def _se_res_block_kernel(x_ref, w1_ref, w2_ref, bias_ref, fc1_ref, fc2_ref,
                         mask_ref, o_ref, patch_ref, xstage_ref, y1stage_ref,
                         *, H, W, C, N, Bc, PAD):
    HW = H * W
    L = Bc * HW                                   # lanes processed per grid step

    # ---- stage the Bc batch items contiguously along the lane axis --------------
    # (PAD and HW are multiples of 128 -> every store below is tile-aligned)
    for b in range(Bc):
        xstage_ref[:, PAD + b * HW:PAD + (b + 1) * HW] = x_ref[b]

    def build_patches(src_ref, ch):
        # Assemble the (9*ch, L) im2col operand so each 3x3 conv is ONE MXU matmul
        # with K = 9*ch.  Out-of-row / cross-batch-item / pad-lane reads are killed
        # with a select, so uninitialized pad VMEM (even NaN) can never leak.
        for k, (dh, dw) in enumerate(OFFSETS):
            s = dh * W + dw                               # static flat-HW shift
            tap = src_ref[:, PAD + s:PAD + s + L]         # (ch, L) offset lane read
            if dh == 0 and dw == 0:                       # center tap: always valid
                patch_ref[k * ch:(k + 1) * ch, :] = tap.astype(patch_ref.dtype)
            else:
                mk = jnp.broadcast_to(mask_ref[k:k + 1, :], tap.shape)
                patch_ref[k * ch:(k + 1) * ch, :] = jnp.where(
                    mk > 0.5, tap, 0.0).astype(patch_ref.dtype)

    # ---- conv1 (3x3, pad=1) + BN1 + ReLU: one (N, 9C) x (9C, L) matmul -----------
    build_patches(xstage_ref, C)
    y1 = jnp.dot(w1_ref[...], patch_ref[...], preferred_element_type=jnp.float32)
    y1 = jnp.maximum(y1 + bias_ref[:, 0:1], 0.0)                      # (N, L)

    # ---- stage y1 so the conv2 taps are plain offset lane reads ------------------
    # (only the middle L lanes are written; pad lanes are handled by the select)
    y1stage_ref[:, PAD:PAD + L] = y1

    # ---- conv2 (3x3, pad=1) + BN2 (no ReLU before the SE branch) -----------------
    build_patches(y1stage_ref, N)
    y2 = jnp.dot(w2_ref[...], patch_ref[...], preferred_element_type=jnp.float32)
    y2 = y2 + bias_ref[:, 1:2]                                        # (N, L)

    # ---- per batch item: SE (GAP -> fc1 -> ReLU -> fc2 -> sigmoid), channel
    #      scaling, identity shortcut (downsample=None), final ReLU ----------------
    for b in range(Bc):
        y2b = y2[:, b * HW:(b + 1) * HW]                              # (N, HW)
        pool = jnp.mean(y2b, axis=1, keepdims=True)                   # (N, 1)
        a1 = jnp.sum(fc1_ref[...] * pool, axis=0, keepdims=True)      # (1, hidden)
        a1 = jnp.maximum(a1, 0.0)
        z = jnp.sum(fc2_ref[...] * a1, axis=1, keepdims=True)         # (N, 1)
        att = 1.0 / (1.0 + jnp.exp(-z))                               # sigmoid (EUP exp)
        identity = xstage_ref[:, PAD + b * HW:PAD + (b + 1) * HW]     # (C, HW)
        o_ref[b] = jnp.maximum(y2b * att + identity, 0.0).astype(o_ref.dtype)


def seres_block_pallas(x_nchw, params, *, batch_chunk=None, mxu_dtype=jnp.float32):
    """SEResBlock forward (eval mode). x: (B, C, H, W) f32 -> (B, N, H, W) f32."""
    w1f, w2f, bias, fc1t, fc2 = params
    B, C, H, W = x_nchw.shape
    N = w1f.shape[0]
    assert C == N, "downsample=None requires in_plane == num_plane"
    HW = H * W
    hidden = fc1t.shape[1]

    # Default: 2 grid steps so both v7x TensorCores get work; use batch_chunk=B on
    # single-TC chips (v5e/v6e) to minimize step count.
    if batch_chunk is None:
        batch_chunk = B // 2 if (B % 2 == 0 and B >= 2) else B
    Bc = batch_chunk
    assert B % Bc == 0, (B, Bc)
    L = Bc * HW                   # lane width per grid step (Bc items stacked)
    PAD = 128                     # lane-tile-aligned staging pad (covers |shift|<=W+1)

    # Flatten NCHW spatial dims (free reshape) -- NO HBM-side padding copy.
    xf = x_nchw.reshape(B, C, HW).astype(jnp.float32)

    # Row-wrap validity masks for the 9 taps, in flattened-HW destination coords,
    # tiled across the Bc lane-stacked batch items.
    pidx = jnp.arange(HW, dtype=jnp.int32)
    hh, ww = pidx // W, pidx % W
    masks = []
    for dh, dw in OFFSETS:
        valid = ((hh + dh >= 0) & (hh + dh < H) & (ww + dw >= 0) & (ww + dw < W))
        masks.append(valid.astype(jnp.float32))
    mask_arr = jnp.tile(jnp.stack(masks, axis=0), (1, Bc))            # (9, L)

    # Optional bf16 MXU operands (v6e/v7x); default f32 for exact reference parity.
    w1c = w1f.astype(mxu_dtype)
    w2c = w2f.astype(mxu_dtype)

    kernel = functools.partial(_se_res_block_kernel,
                               H=H, W=W, C=C, N=N, Bc=Bc, PAD=PAD)

    out = pl.pallas_call(
        kernel,
        out_shape=jax.ShapeDtypeStruct((B, N, HW), jnp.float32),
        grid_spec=pltpu.PrefetchScalarGridSpec(
            num_scalar_prefetch=0,
            grid=(B // Bc,),
            in_specs=[
                pl.BlockSpec((Bc, C, HW), lambda g: (g, 0, 0)),       # unpadded input
                pl.BlockSpec((N, 9 * C), lambda g: (0, 0)),           # conv1 (BN1 folded)
                pl.BlockSpec((N, 9 * N), lambda g: (0, 0)),           # conv2 (BN2 folded)
                pl.BlockSpec((N, 2), lambda g: (0, 0)),               # BN biases
                pl.BlockSpec((N, hidden), lambda g: (0, 0)),          # SE fc1 (transposed)
                pl.BlockSpec((N, hidden), lambda g: (0, 0)),          # SE fc2
                pl.BlockSpec((9, L), lambda g: (0, 0)),               # tap validity masks
            ],
            out_specs=pl.BlockSpec((Bc, N, HW), lambda g: (g, 0, 0)),
            scratch_shapes=[
                pltpu.VMEM((9 * C, L), mxu_dtype),                    # im2col patches
                pltpu.VMEM((C, L + 2 * PAD), jnp.float32),            # staged padded x
                pltpu.VMEM((N, L + 2 * PAD), jnp.float32),            # staged padded y1
            ],
        ),
        compiler_params=pltpu.CompilerParams(
            dimension_semantics=("parallel",)),
    )(xf, w1c, w2c, bias, fc1t, fc2, mask_arr)

    return out.reshape(B, N, H, W)


def init_params(key, in_plane, num_plane, reduction=16):
    """Deterministic init; returns kernel-ready params and raw weights for the reference."""
    hidden = num_plane // reduction
    k1, k2, k3, k4 = jax.random.split(key, 4)
    w1 = jax.random.normal(k1, (num_plane, in_plane, 3, 3), jnp.float32) \
        * (2.0 / (in_plane * 9)) ** 0.5
    w2 = jax.random.normal(k2, (num_plane, num_plane, 3, 3), jnp.float32) \
        * (2.0 / (num_plane * 9)) ** 0.5
    wfc1 = jax.random.normal(k3, (hidden, num_plane), jnp.float32) * (1.0 / num_plane) ** 0.5
    wfc2 = jax.random.normal(k4, (num_plane, hidden), jnp.float32) * (1.0 / hidden) ** 0.5
    raw = (w1, w2, wfc1, wfc2)

    # BatchNorm2d eval-mode fold: gamma=1, beta=0, running_mean=0, running_var=1.
    scale = 1.0 / jnp.sqrt(jnp.float32(1.0 + BN_EPS))
    bn1_scale = jnp.full((num_plane,), scale, jnp.float32)
    bn2_scale = jnp.full((num_plane,), scale, jnp.float32)
    bn1_bias = jnp.zeros((num_plane,), jnp.float32)
    bn2_bias = jnp.zeros((num_plane,), jnp.float32)

    def flatten_conv(w, s):
        # (O, I, 3, 3) -> (O, 9*I), tap-major rows matching OFFSETS, BN scale folded on O.
        o, i = w.shape[0], w.shape[1]
        return jnp.transpose(w, (0, 2, 3, 1)).reshape(o, 9 * i) * s[:, None]

    params = (flatten_conv(w1, bn1_scale),
              flatten_conv(w2, bn2_scale),
              jnp.stack([bn1_bias, bn2_bias], axis=1),   # (N, 2)
              jnp.transpose(wfc1),                       # (N, hidden)
              wfc2)                                      # (N, hidden)
    return params, raw


def seres_block_reference(x, raw):
    """Pure-JAX/XLA reference of the PyTorch forward (eval mode, downsample=None)."""
    w1, w2, wfc1, wfc2 = raw
    s = 1.0 / jnp.sqrt(1.0 + BN_EPS)
    hp = lax.Precision.HIGHEST

    def conv(inp, w):
        return lax.conv_general_dilated(
            inp, w, window_strides=(1, 1), padding=((1, 1), (1, 1)),
            dimension_numbers=('NCHW', 'OIHW', 'NCHW'), precision=hp)

    out = jax.nn.relu(conv(x, w1) * s)
    out = conv(out, w2) * s
    pool = jnp.mean(out, axis=(2, 3))                                  # (B, N)
    a1 = jax.nn.relu(jnp.dot(pool, wfc1.T, precision=hp))              # (B, hidden)
    att = jax.nn.sigmoid(jnp.dot(a1, wfc2.T, precision=hp))            # (B, N)
    out = out * att[:, :, None, None]
    return jax.nn.relu(out + x)


if __name__ == "__main__":
    # downsample=None => residual add requires in_plane == num_plane and stride=1.
    in_plane = num_plane = 32
    reduction = 16
    B, H, W = 4, 16, 16

    key = jax.random.PRNGKey(0)
    kx, kp = jax.random.split(key)
    x = jax.random.normal(kx, (B, in_plane, H, W), jnp.float32)
    params, raw = init_params(kp, in_plane, num_plane, reduction)

    out = seres_block_pallas(x, params)          # default Bc=B//2=2 -> grid=(2,)
    out = jax.block_until_ready(out)

    ref = seres_block_reference(x, raw)
    assert out.shape == (B, num_plane, H, W), out.shape
    max_err = float(jnp.max(jnp.abs(out - ref)))
    assert jnp.allclose(out, ref, atol=1e-3, rtol=1e-3), max_err

    print("KERNEL_OK")
</pallas_src>

<mosaic_0001>
module attributes {stable_mosaic.version = 11 : i64} {
  func.func @_se_res_block_kernel(%arg0: i32, %arg1: memref<2x32x256xf32, #tpu.memory_space<vmem>>, %arg2: memref<32x288xf32, #tpu.memory_space<vmem>>, %arg3: memref<32x288xf32, #tpu.memory_space<vmem>>, %arg4: memref<32x2xf32, #tpu.memory_space<vmem>>, %arg5: memref<32x2xf32, #tpu.memory_space<vmem>>, %arg6: memref<32x2xf32, #tpu.memory_space<vmem>>, %arg7: memref<9x512xf32, #tpu.memory_space<vmem>>, %arg8: memref<2x32x256xf32, #tpu.memory_space<vmem>>, %arg9: memref<288x512xf32, #tpu.memory_space<vmem>>, %arg10: memref<32x768xf32, #tpu.memory_space<vmem>>, %arg11: memref<32x768xf32, #tpu.memory_space<vmem>>) attributes {dimension_semantics = [#tpu.dimension_semantics<parallel>], iteration_bounds = array<i64: 2>, scalar_prefetch = 0 : i64, scratch_operands = 3 : i64, tpu.core_type = #tpu.core_type<tc>, window_params = [{transform_indices = @transform_0, window_bounds = array<i64: 2, 32, 256>}, {pipeline_mode = #tpu.pipeline_mode<synchronous>, transform_indices = @transform_1, window_bounds = array<i64: 32, 288>}, {pipeline_mode = #tpu.pipeline_mode<synchronous>, transform_indices = @transform_2, window_bounds = array<i64: 32, 288>}, {pipeline_mode = #tpu.pipeline_mode<synchronous>, transform_indices = @transform_3, window_bounds = array<i64: 32, 2>}, {pipeline_mode = #tpu.pipeline_mode<synchronous>, transform_indices = @transform_4, window_bounds = array<i64: 32, 2>}, {pipeline_mode = #tpu.pipeline_mode<synchronous>, transform_indices = @transform_5, window_bounds = array<i64: 32, 2>}, {pipeline_mode = #tpu.pipeline_mode<synchronous>, transform_indices = @transform_6, window_bounds = array<i64: 9, 512>}, {transform_indices = @transform_7, window_bounds = array<i64: 2, 32, 256>}]} {
    %c0 = arith.constant 0 : index
    %c0_0 = arith.constant 0 : index
    %c0_1 = arith.constant 0 : index
    %0 = vector.load %arg1[%c0, %c0_0, %c0_1] : memref<2x32x256xf32, #tpu.memory_space<vmem>>, vector<1x32x256xf32>
    %1 = vector.shape_cast %0 : vector<1x32x256xf32> to vector<32x256xf32>
    %c0_2 = arith.constant 0 : index
    %c128 = arith.constant 128 : index
    %2 = vector.load %arg10[%c0_2, %c128] : memref<32x768xf32, #tpu.memory_space<vmem>>, vector<32x256xf32>
    tpu.vector_store %arg10[%c0_2, %c128], %1 {strides = array<i32>} : memref<32x768xf32, #tpu.memory_space<vmem>>, vector<32x256xf32>,
    %c1 = arith.constant 1 : index
    %c0_3 = arith.constant 0 : index
    %c0_4 = arith.constant 0 : index
    %3 = vector.load %arg1[%c1, %c0_3, %c0_4] : memref<2x32x256xf32, #tpu.memory_space<vmem>>, vector<1x32x256xf32>
    %4 = vector.shape_cast %3 : vector<1x32x256xf32> to vector<32x256xf32>
    %c0_5 = arith.constant 0 : index
    %c384 = arith.constant 384 : index
    %5 = vector.load %arg10[%c0_5, %c384] : memref<32x768xf32, #tpu.memory_space<vmem>>, vector<32x256xf32>
    tpu.vector_store %arg10[%c0_5, %c384], %4 {strides = array<i32>} : memref<32x768xf32, #tpu.memory_space<vmem>>, vector<32x256xf32>,
    %c0_6 = arith.constant 0 : index
    %c111 = arith.constant 111 : index
    %6 = vector.load %arg10[%c0_6, %c111] : memref<32x768xf32, #tpu.memory_space<vmem>>, vector<32x512xf32>
    %c0_7 = arith.constant 0 : index
    %c0_8 = arith.constant 0 : index
    %7 = vector.load %arg7[%c0_7, %c0_8] : memref<9x512xf32, #tpu.memory_space<vmem>>, vector<1x512xf32>
    %8 = vector.shape_cast %7 : vector<1x512xf32> to vector<1x512xf32>
    %9 = vector.broadcast %8 : vector<1x512xf32> to vector<32x512xf32>
    %cst = arith.constant 5.000000e-01 : f32
    %10 = vector.broadcast %cst : f32 to vector<32x512xf32>
    %11 = arith.cmpf ogt, %9, %10 : vector<32x512xf32>
    %cst_9 = arith.constant 0.000000e+00 : f32
    %12 = vector.broadcast %cst_9 : f32 to vector<32x512xf32>
    %13 = arith.select %11, %6, %12 : vector<32x512xi1>, vector<32x512xf32>
    %c0_10 = arith.constant 0 : index
    %c0_11 = arith.constant 0 : index
    %14 = vector.load %arg9[%c0_10, %c0_11] : memref<288x512xf32, #tpu.memory_space<vmem>>, vector<32x512xf32>
    tpu.vector_store %arg9[%c0_10, %c0_11], %13 {strides = array<i32>} : memref<288x512xf32, #tpu.memory_space<vmem>>, vector<32x512xf32>,
    %c0_12 = arith.constant 0 : index
    %c112 = arith.constant 112 : index
    %15 = vector.load %arg10[%c0_12, %c112] : memref<32x768xf32, #tpu.memory_space<vmem>>, vector<32x512xf32>
    %c1_13 = arith.constant 1 : index
    %c0_14 = arith.constant 0 : index
    %16 = vector.load %arg7[%c1_13, %c0_14] : memref<9x512xf32, #tpu.memory_space<vmem>>, vector<1x512xf32>
    %17 = vector.shape_cast %16 : vector<1x512xf32> to vector<1x512xf32>
    %18 = vector.broadcast %17 : vector<1x512xf32> to vector<32x512xf32>
    %cst_15 = arith.constant 5.000000e-01 : f32
    %19 = vector.broadcast %cst_15 : f32 to vector<32x512xf32>
    %20 = arith.cmpf ogt, %18, %19 : vector<32x512xf32>
    %cst_16 = arith.constant 0.000000e+00 : f32
    %21 = vector.broadcast %cst_16 : f32 to vector<32x512xf32>
    %22 = arith.select %20, %15, %21 : vector<32x512xi1>, vector<32x512xf32>
    %c32 = arith.constant 32 : index
    %c0_17 = arith.constant 0 : index
    %23 = vector.load %arg9[%c32, %c0_17] : memref<288x512xf32, #tpu.memory_space<vmem>>, vector<32x512xf32>
    tpu.vector_store %arg9[%c32, %c0_17], %22 {strides = array<i32>} : memref<288x512xf32, #tpu.memory_space<vmem>>, vector<32x512xf32>,
    %c0_18 = arith.constant 0 : index
    %c113 = arith.constant 113 : index
    %24 = vector.load %arg10[%c0_18, %c113] : memref<32x768xf32, #tpu.memory_space<vmem>>, vector<32x512xf32>
    %c2 = arith.constant 2 : index
    %c0_19 = arith.constant 0 : index
    %25 = vector.load %arg7[%c2, %c0_19] : memref<9x512xf32, #tpu.memory_space<vmem>>, vector<1x512xf32>
    %26 = vector.shape_cast %25 : vector<1x512xf32> to vector<1x512xf32>
    %27 = vector.broadcast %26 : vector<1x512xf32> to vector<32x512xf32>
    %cst_20 = arith.constant 5.000000e-01 : f32
    %28 = vector.broadcast %cst_20 : f32 to vector<32x512xf32>
    %29 = arith.cmpf ogt, %27, %28 : vector<32x512xf32>
    %cst_21 = arith.constant 0.000000e+00 : f32
    %30 = vector.broadcast %cst_21 : f32 to vector<32x512xf32>
    %31 = arith.select %29, %24, %30 : vector<32x512xi1>, vector<32x512xf32>
    %c64 = arith.constant 64 : index
    %c0_22 = arith.constant 0 : index
    %32 = vector.load %arg9[%c64, %c0_22] : memref<288x512xf32, #tpu.memory_space<vmem>>, vector<32x512xf32>
    tpu.vector_store %arg9[%c64, %c0_22], %31 {strides = array<i32>} : memref<288x512xf32, #tpu.memory_space<vmem>>, vector<32x512xf32>,
    %c0_23 = arith.constant 0 : index
    %c127 = arith.constant 127 : index
    %33 = vector.load %arg10[%c0_23, %c127] : memref<32x768xf32, #tpu.memory_space<vmem>>, vector<32x512xf32>
    %c3 = arith.constant 3 : index
    %c0_24 = arith.constant 0 : index
    %34 = vector.load %arg7[%c3, %c0_24] : memref<9x512xf32, #tpu.memory_space<vmem>>, vector<1x512xf32>
    %35 = vector.shape_cast %34 : vector<1x512xf32> to vector<1x512xf32>
    %36 = vector.broadcast %35 : vector<1x512xf32> to vector<32x512xf32>
    %cst_25 = arith.constant 5.000000e-01 : f32
    %37 = vector.broadcast %cst_25 : f32 to vector<32x512xf32>
    %38 = arith.cmpf ogt, %36, %37 : vector<32x512xf32>
    %cst_26 = arith.constant 0.000000e+00 : f32
    %39 = vector.broadcast %cst_26 : f32 to vector<32x512xf32>
    %40 = arith.select %38, %33, %39 : vector<32x512xi1>, vector<32x512xf32>
    %c96 = arith.constant 96 : index
    %c0_27 = arith.constant 0 : index
    %41 = vector.load %arg9[%c96, %c0_27] : memref<288x512xf32, #tpu.memory_space<vmem>>, vector<32x512xf32>
    tpu.vector_store %arg9[%c96, %c0_27], %40 {strides = array<i32>} : memref<288x512xf32, #tpu.memory_space<vmem>>, vector<32x512xf32>,
    %c0_28 = arith.constant 0 : index
    %c128_29 = arith.constant 128 : index
    %42 = vector.load %arg10[%c0_28, %c128_29] : memref<32x768xf32, #tpu.memory_space<vmem>>, vector<32x512xf32>
    %c128_30 = arith.constant 128 : index
    %c0_31 = arith.constant 0 : index
    %43 = vector.load %arg9[%c128_30, %c0_31] : memref<288x512xf32, #tpu.memory_space<vmem>>, vector<32x512xf32>
    tpu.vector_store %arg9[%c128_30, %c0_31], %42 {strides = array<i32>} : memref<288x512xf32, #tpu.memory_space<vmem>>, vector<32x512xf32>,
    %c0_32 = arith.constant 0 : index
    %c129 = arith.constant 129 : index
    %44 = vector.load %arg10[%c0_32, %c129] : memref<32x768xf32, #tpu.memory_space<vmem>>, vector<32x512xf32>
    %c5 = arith.constant 5 : index
    %c0_33 = arith.constant 0 : index
    %45 = vector.load %arg7[%c5, %c0_33] : memref<9x512xf32, #tpu.memory_space<vmem>>, vector<1x512xf32>
    %46 = vector.shape_cast %45 : vector<1x512xf32> to vector<1x512xf32>
    %47 = vector.broadcast %46 : vector<1x512xf32> to vector<32x512xf32>
    %cst_34 = arith.constant 5.000000e-01 : f32
    %48 = vector.broadcast %cst_34 : f32 to vector<32x512xf32>
    %49 = arith.cmpf ogt, %47, %48 : vector<32x512xf32>
    %cst_35 = arith.constant 0.000000e+00 : f32
    %50 = vector.broadcast %cst_35 : f32 to vector<32x512xf32>
    %51 = arith.select %49, %44, %50 : vector<32x512xi1>, vector<32x512xf32>
    %c160 = arith.constant 160 : index
    %c0_36 = arith.constant 0 : index
    %52 = vector.load %arg9[%c160, %c0_36] : memref<288x512xf32, #tpu.memory_space<vmem>>, vector<32x512xf32>
    tpu.vector_store %arg9[%c160, %c0_36], %51 {strides = array<i32>} : memref<288x512xf32, #tpu.memory_space<vmem>>, vector<32x512xf32>,
    %c0_37 = arith.constant 0 : index
    %c143 = arith.constant 143 : index
    %53 = vector.load %arg10[%c0_37, %c143] : memref<32x768xf32, #tpu.memory_space<vmem>>, vector<32x512xf32>
    %c6 = arith.constant 6 : index
    %c0_38 = arith.constant 0 : index
    %54 = vector.load %arg7[%c6, %c0_38] : memref<9x512xf32, #tpu.memory_space<vmem>>, vector<1x512xf32>
    %55 = vector.shape_cast %54 : vector<1x512xf32> to vector<1x512xf32>
    %56 = vector.broadcast %55 : vector<1x512xf32> to vector<32x512xf32>
    %cst_39 = arith.constant 5.000000e-01 : f32
    %57 = vector.broadcast %cst_39 : f32 to vector<32x512xf32>
    %58 = arith.cmpf ogt, %56, %57 : vector<32x512xf32>
    %cst_40 = arith.constant 0.000000e+00 : f32
    %59 = vector.broadcast %cst_40 : f32 to vector<32x512xf32>
    %60 = arith.select %58, %53, %59 : vector<32x512xi1>, vector<32x512xf32>
    %c192 = arith.constant 192 : index
    %c0_41 = arith.constant 0 : index
    %61 = vector.load %arg9[%c192, %c0_41] : memref<288x512xf32, #tpu.memory_space<vmem>>, vector<32x512xf32>
    tpu.vector_store %arg9[%c192, %c0_41], %60 {strides = array<i32>} : memref<288x512xf32, #tpu.memory_space<vmem>>, vector<32x512xf32>,
    %c0_42 = arith.constant 0 : index
    %c144 = arith.constant 144 : index
    %62 = vector.load %arg10[%c0_42, %c144] : memref<32x768xf32, #tpu.memory_space<vmem>>, vector<32x512xf32>
    %c7 = arith.constant 7 : index
    %c0_43 = arith.constant 0 : index
    %63 = vector.load %arg7[%c7, %c0_43] : memref<9x512xf32, #tpu.memory_space<vmem>>, vector<1x512xf32>
    %64 = vector.shape_cast %63 : vector<1x512xf32> to vector<1x512xf32>
    %65 = vector.broadcast %64 : vector<1x512xf32> to vector<32x512xf32>
    %cst_44 = arith.constant 5.000000e-01 : f32
    %66 = vector.broadcast %cst_44 : f32 to vector<32x512xf32>
    %67 = arith.cmpf ogt, %65, %66 : vector<32x512xf32>
    %cst_45 = arith.constant 0.000000e+00 : f32
    %68 = vector.broadcast %cst_45 : f32 to vector<32x512xf32>
    %69 = arith.select %67, %62, %68 : vector<32x512xi1>, vector<32x512xf32>
    %c224 = arith.constant 224 : index
    %c0_46 = arith.constant 0 : index
    %70 = vector.load %arg9[%c224, %c0_46] : memref<288x512xf32, #tpu.memory_space<vmem>>, vector<32x512xf32>
    tpu.vector_store %arg9[%c224, %c0_46], %69 {strides = array<i32>} : memref<288x512xf32, #tpu.memory_space<vmem>>, vector<32x512xf32>,
    %c0_47 = arith.constant 0 : index
    %c145 = arith.constant 145 : index
    %71 = vector.load %arg10[%c0_47, %c145] : memref<32x768xf32, #tpu.memory_space<vmem>>, vector<32x512xf32>
    %c8 = arith.constant 8 : index
    %c0_48 = arith.constant 0 : index
    %72 = vector.load %arg7[%c8, %c0_48] : memref<9x512xf32, #tpu.memory_space<vmem>>, vector<1x512xf32>
    %73 = vector.shape_cast %72 : vector<1x512xf32> to vector<1x512xf32>
    %74 = vector.broadcast %73 : vector<1x512xf32> to vector<32x512xf32>
    %cst_49 = arith.constant 5.000000e-01 : f32
    %75 = vector.broadcast %cst_49 : f32 to vector<32x512xf32>
    %76 = arith.cmpf ogt, %74, %75 : vector<32x512xf32>
    %cst_50 = arith.constant 0.000000e+00 : f32
    %77 = vector.broadcast %cst_50 : f32 to vector<32x512xf32>
    %78 = arith.select %76, %71, %77 : vector<32x512xi1>, vector<32x512xf32>
    %c256 = arith.constant 256 : index
    %c0_51 = arith.constant 0 : index
    %79 = vector.load %arg9[%c256, %c0_51] : memref<288x512xf32, #tpu.memory_space<vmem>>, vector<32x512xf32>
    tpu.vector_store %arg9[%c256, %c0_51], %78 {strides = array<i32>} : memref<288x512xf32, #tpu.memory_space<vmem>>, vector<32x512xf32>,
    %c0_52 = arith.constant 0 : index
    %c0_53 = arith.constant 0 : index
    %80 = vector.load %arg2[%c0_52, %c0_53] : memref<32x288xf32, #tpu.memory_space<vmem>>, vector<32x288xf32>
    %c0_54 = arith.constant 0 : index
    %c0_55 = arith.constant 0 : index
    %81 = vector.load %arg9[%c0_54, %c0_55] : memref<288x512xf32, #tpu.memory_space<vmem>>, vector<288x512xf32>
    %cst_56 = arith.constant dense<0.000000e+00> : vector<32x512xf32>
    %82 = tpu.matmul %80, %81, %cst_56 {dimension_numbers = #tpu.dot_dimension_numbers<[1], [0], [0], [1], [0, 0, 1, 1], [], []>} : vector<32x288xf32>, vector<288x512xf32>, vector<32x512xf32> -> vector<32x512xf32>
    %c0_57 = arith.constant 0 : index
    %c0_58 = arith.constant 0 : index
    %83 = vector.load %arg4[%c0_57, %c0_58] : memref<32x2xf32, #tpu.memory_space<vmem>>, vector<32x1xf32>
    %84 = vector.broadcast %83 : vector<32x1xf32> to vector<32x512xf32>
    %85 = arith.addf %82, %84 : vector<32x512xf32>
    %cst_59 = arith.constant 0.000000e+00 : f32
    %86 = vector.broadcast %cst_59 : f32 to vector<32x512xf32>
    %87 = arith.maximumf %85, %86 : vector<32x512xf32>
    %c0_60 = arith.constant 0 : index
    %c128_61 = arith.constant 128 : index
    %88 = vector.load %arg11[%c0_60, %c128_61] : memref<32x768xf32, #tpu.memory_space<vmem>>, vector<32x512xf32>
    tpu.vector_store %arg11[%c0_60, %c128_61], %87 {strides = array<i32>} : memref<32x768xf32, #tpu.memory_space<vmem>>, vector<32x512xf32>,
    %c0_62 = arith.constant 0 : index
    %c111_63 = arith.constant 111 : index
    %89 = vector.load %arg11[%c0_62, %c111_63] : memref<32x768xf32, #tpu.memory_space<vmem>>, vector<32x512xf32>
    %c0_64 = arith.constant 0 : index
    %c0_65 = arith.constant 0 : index
    %90 = vector.load %arg7[%c0_64, %c0_65] : memref<9x512xf32, #tpu.memory_space<vmem>>, vector<1x512xf32>
    %91 = vector.shape_cast %90 : vector<1x512xf32> to vector<1x512xf32>
    %92 = vector.broadcast %91 : vector<1x512xf32> to vector<32x512xf32>
    %cst_66 = arith.constant 5.000000e-01 : f32
    %93 = vector.broadcast %cst_66 : f32 to vector<32x512xf32>
    %94 = arith.cmpf ogt, %92, %93 : vector<32x512xf32>
    %cst_67 = arith.constant 0.000000e+00 : f32
    %95 = vector.broadcast %cst_67 : f32 to vector<32x512xf32>
    %96 = arith.select %94, %89, %95 : vector<32x512xi1>, vector<32x512xf32>
    %c0_68 = arith.constant 0 : index
    %c0_69 = arith.constant 0 : index
    %97 = vector.load %arg9[%c0_68, %c0_69] : memref<288x512xf32, #tpu.memory_space<vmem>>, vector<32x512xf32>
    tpu.vector_store %arg9[%c0_68, %c0_69], %96 {strides = array<i32>} : memref<288x512xf32, #tpu.memory_space<vmem>>, vector<32x512xf32>,
    %c0_70 = arith.constant 0 : index
    %c112_71 = arith.constant 112 : index
    %98 = vector.load %arg11[%c0_70, %c112_71] : memref<32x768xf32, #tpu.memory_space<vmem>>, vector<32x512xf32>
    %c1_72 = arith.constant 1 : index
    %c0_73 = arith.constant 0 : index
    %99 = vector.load %arg7[%c1_72, %c0_73] : memref<9x512xf32, #tpu.memory_space<vmem>>, vector<1x512xf32>
    %100 = vector.shape_cast %99 : vector<1x512xf32> to vector<1x512xf32>
    %101 = vector.broadcast %100 : vector<1x512xf32> to vector<32x512xf32>
    %cst_74 = arith.constant 5.000000e-01 : f32
    %102 = vector.broadcast %cst_74 : f32 to vector<32x512xf32>
    %103 = arith.cmpf ogt, %101, %102 : vector<32x512xf32>
    %cst_75 = arith.constant 0.000000e+00 : f32
    %104 = vector.broadcast %cst_75 : f32 to vector<32x512xf32>
    %105 = arith.select %103, %98, %104 : vector<32x512xi1>, vector<32x512xf32>
    %c32_76 = arith.constant 32 : index
    %c0_77 = arith.constant 0 : index
    %106 = vector.load %arg9[%c32_76, %c0_77] : memref<288x512xf32, #tpu.memory_space<vmem>>, vector<32x512xf32>
    tpu.vector_store %arg9[%c32_76, %c0_77], %105 {strides = array<i32>} : memref<288x512xf32, #tpu.memory_space<vmem>>, vector<32x512xf32>,
    %c0_78 = arith.constant 0 : index
    %c113_79 = arith.constant 113 : index
    %107 = vector.load %arg11[%c0_78, %c113_79] : memref<32x768xf32, #tpu.memory_space<vmem>>, vector<32x512xf32>
    %c2_80 = arith.constant 2 : index
    %c0_81 = arith.constant 0 : index
    %108 = vector.load %arg7[%c2_80, %c0_81] : memref<9x512xf32, #tpu.memory_space<vmem>>, vector<1x512xf32>
    %109 = vector.shape_cast %108 : vector<1x512xf32> to vector<1x512xf32>
    %110 = vector.broadcast %109 : vector<1x512xf32> to vector<32x512xf32>
    %cst_82 = arith.constant 5.000000e-01 : f32
    %111 = vector.broadcast %cst_82 : f32 to vector<32x512xf32>
    %112 = arith.cmpf ogt, %110, %111 : vector<32x512xf32>
    %cst_83 = arith.constant 0.000000e+00 : f32
    %113 = vector.broadcast %cst_83 : f32 to vector<32x512xf32>
    %114 = arith.select %112, %107, %113 : vector<32x512xi1>, vector<32x512xf32>
    %c64_84 = arith.constant 64 : index
    %c0_85 = arith.constant 0 : index
    %115 = vector.load %arg9[%c64_84, %c0_85] : memref<288x512xf32, #tpu.memory_space<vmem>>, vector<32x512xf32>
    tpu.vector_store %arg9[%c64_84, %c0_85], %114 {strides = array<i32>} : memref<288x512xf32, #tpu.memory_space<vmem>>, vector<32x512xf32>,
    %c0_86 = arith.constant 0 : index
    %c127_87 = arith.constant 127 : index
    %116 = vector.load %arg11[%c0_86, %c127_87] : memref<32x768xf32, #tpu.memory_space<vmem>>, vector<32x512xf32>
    %c3_88 = arith.constant 3 : index
    %c0_89 = arith.constant 0 : index
    %117 = vector.load %arg7[%c3_88, %c0_89] : memref<9x512xf32, #tpu.memory_space<vmem>>, vector<1x512xf32>
    %118 = vector.shape_cast %117 : vector<1x512xf32> to vector<1x512xf32>
    %119 = vector.broadcast %118 : vector<1x512xf32> to vector<32x512xf32>
    %cst_90 = arith.constant 5.000000e-01 : f32
    %120 = vector.broadcast %cst_90 : f32 to vector<32x512xf32>
    %121 = arith.cmpf ogt, %119, %120 : vector<32x512xf32>
    %cst_91 = arith.constant 0.000000e+00 : f32
    %122 = vector.broadcast %cst_91 : f32 to vector<32x512xf32>
    %123 = arith.select %121, %116, %122 : vector<32x512xi1>, vector<32x512xf32>
    %c96_92 = arith.constant 96 : index
    %c0_93 = arith.constant 0 : index
    %124 = vector.load %arg9[%c96_92, %c0_93] : memref<288x512xf32, #tpu.memory_space<vmem>>, vector<32x512xf32>
    tpu.vector_store %arg9[%c96_92, %c0_93], %123 {strides = array<i32>} : memref<288x512xf32, #tpu.memory_space<vmem>>, vector<32x512xf32>,
    %c0_94 = arith.constant 0 : index
    %c128_95 = arith.constant 128 : index
    %125 = vector.load %arg11[%c0_94, %c128_95] : memref<32x768xf32, #tpu.memory_space<vmem>>, vector<32x512xf32>
    %c128_96 = arith.constant 128 : index
    %c0_97 = arith.constant 0 : index
    %126 = vector.load %arg9[%c128_96, %c0_97] : memref<288x512xf32, #tpu.memory_space<vmem>>, vector<32x512xf32>
    tpu.vector_store %arg9[%c128_96, %c0_97], %125 {strides = array<i32>} : memref<288x512xf32, #tpu.memory_space<vmem>>, vector<32x512xf32>,
    %c0_98 = arith.constant 0 : index
    %c129_99 = arith.constant 129 : index
    %127 = vector.load %arg11[%c0_98, %c129_99] : memref<32x768xf32, #tpu.memory_space<vmem>>, vector<32x512xf32>
    %c5_100 = arith.constant 5 : index
    %c0_101 = arith.constant 0 : index
    %128 = vector.load %arg7[%c5_100, %c0_101] : memref<9x512xf32, #tpu.memory_space<vmem>>, vector<1x512xf32>
    %129 = vector.shape_cast %128 : vector<1x512xf32> to vector<1x512xf32>
    %130 = vector.broadcast %129 : vector<1x512xf32> to vector<32x512xf32>
    %cst_102 = arith.constant 5.000000e-01 : f32
    %131 = vector.broadcast %cst_102 : f32 to vector<32x512xf32>
    %132 = arith.cmpf ogt, %130, %131 : vector<32x512xf32>
    %cst_103 = arith.constant 0.000000e+00 : f32
    %133 = vector.broadcast %cst_103 : f32 to vector<32x512xf32>
    %134 = arith.select %132, %127, %133 : vector<32x512xi1>, vector<32x512xf32>
    %c160_104 = arith.constant 160 : index
    %c0_105 = arith.constant 0 : index
    %135 = vector.load %arg9[%c160_104, %c0_105] : memref<288x512xf32, #tpu.memory_space<vmem>>, vector<32x512xf32>
    tpu.vector_store %arg9[%c160_104, %c0_105], %134 {strides = array<i32>} : memref<288x512xf32, #tpu.memory_space<vmem>>, vector<32x512xf32>,
    %c0_106 = arith.constant 0 : index
    %c143_107 = arith.constant 143 : index
    %136 = vector.load %arg11[%c0_106, %c143_107] : memref<32x768xf32, #tpu.memory_space<vmem>>, vector<32x512xf32>
    %c6_108 = arith.constant 6 : index
    %c0_109 = arith.constant 0 : index
    %137 = vector.load %arg7[%c6_108, %c0_109] : memref<9x512xf32, #tpu.memory_space<vmem>>, vector<1x512xf32>
    %138 = vector.shape_cast %137 : vector<1x512xf32> to vector<1x512xf32>
    %139 = vector.broadcast %138 : vector<1x512xf32> to vector<32x512xf32>
    %cst_110 = arith.constant 5.000000e-01 : f32
    %140 = vector.broadcast %cst_110 : f32 to vector<32x512xf32>
    %141 = arith.cmpf ogt, %139, %140 : vector<32x512xf32>
    %cst_111 = arith.constant 0.000000e+00 : f32
    %142 = vector.broadcast %cst_111 : f32 to vector<32x512xf32>
    %143 = arith.select %141, %136, %142 : vector<32x512xi1>, vector<32x512xf32>
    %c192_112 = arith.constant 192 : index
    %c0_113 = arith.constant 0 : index
    %144 = vector.load %arg9[%c192_112, %c0_113] : memref<288x512xf32, #tpu.memory_space<vmem>>, vector<32x512xf32>
    tpu.vector_store %arg9[%c192_112, %c0_113], %143 {strides = array<i32>} : memref<288x512xf32, #tpu.memory_space<vmem>>, vector<32x512xf32>,
    %c0_114 = arith.constant 0 : index
    %c144_115 = arith.constant 144 : index
    %145 = vector.load %arg11[%c0_114, %c144_115] : memref<32x768xf32, #tpu.memory_space<vmem>>, vector<32x512xf32>
    %c7_116 = arith.constant 7 : index
    %c0_117 = arith.constant 0 : index
    %146 = vector.load %arg7[%c7_116, %c0_117] : memref<9x512xf32, #tpu.memory_space<vmem>>, vector<1x512xf32>
    %147 = vector.shape_cast %146 : vector<1x512xf32> to vector<1x512xf32>
    %148 = vector.broadcast %147 : vector<1x512xf32> to vector<32x512xf32>
    %cst_118 = arith.constant 5.000000e-01 : f32
    %149 = vector.broadcast %cst_118 : f32 to vector<32x512xf32>
    %150 = arith.cmpf ogt, %148, %149 : vector<32x512xf32>
    %cst_119 = arith.constant 0.000000e+00 : f32
    %151 = vector.broadcast %cst_119 : f32 to vector<32x512xf32>
    %152 = arith.select %150, %145, %151 : vector<32x512xi1>, vector<32x512xf32>
    %c224_120 = arith.constant 224 : index
    %c0_121 = arith.constant 0 : index
    %153 = vector.load %arg9[%c224_120, %c0_121] : memref<288x512xf32, #tpu.memory_space<vmem>>, vector<32x512xf32>
    tpu.vector_store %arg9[%c224_120, %c0_121], %152 {strides = array<i32>} : memref<288x512xf32, #tpu.memory_space<vmem>>, vector<32x512xf32>,
    %c0_122 = arith.constant 0 : index
    %c145_123 = arith.constant 145 : index
    %154 = vector.load %arg11[%c0_122, %c145_123] : memref<32x768xf32, #tpu.memory_space<vmem>>, vector<32x512xf32>
    %c8_124 = arith.constant 8 : index
    %c0_125 = arith.constant 0 : index
    %155 = vector.load %arg7[%c8_124, %c0_125] : memref<9x512xf32, #tpu.memory_space<vmem>>, vector<1x512xf32>
    %156 = vector.shape_cast %155 : vector<1x512xf32> to vector<1x512xf32>
    %157 = vector.broadcast %156 : vector<1x512xf32> to vector<32x512xf32>
    %cst_126 = arith.constant 5.000000e-01 : f32
    %158 = vector.broadcast %cst_126 : f32 to vector<32x512xf32>
    %159 = arith.cmpf ogt, %157, %158 : vector<32x512xf32>
    %cst_127 = arith.constant 0.000000e+00 : f32
    %160 = vector.broadcast %cst_127 : f32 to vector<32x512xf32>
    %161 = arith.select %159, %154, %160 : vector<32x512xi1>, vector<32x512xf32>
    %c256_128 = arith.constant 256 : index
    %c0_129 = arith.constant 0 : index
    %162 = vector.load %arg9[%c256_128, %c0_129] : memref<288x512xf32, #tpu.memory_space<vmem>>, vector<32x512xf32>
    tpu.vector_store %arg9[%c256_128, %c0_129], %161 {strides = array<i32>} : memref<288x512xf32, #tpu.memory_space<vmem>>, vector<32x512xf32>,
    %c0_130 = arith.constant 0 : index
    %c0_131 = arith.constant 0 : index
    %163 = vector.load %arg3[%c0_130, %c0_131] : memref<32x288xf32, #tpu.memory_space<vmem>>, vector<32x288xf32>
    %c0_132 = arith.constant 0 : index
    %c0_133 = arith.constant 0 : index
    %164 = vector.load %arg9[%c0_132, %c0_133] : memref<288x512xf32, #tpu.memory_space<vmem>>, vector<288x512xf32>
    %cst_134 = arith.constant dense<0.000000e+00> : vector<32x512xf32>
    %165 = tpu.matmul %163, %164, %cst_134 {dimension_numbers = #tpu.dot_dimension_numbers<[1], [0], [0], [1], [0, 0, 1, 1], [], []>} : vector<32x288xf32>, vector<288x512xf32>, vector<32x512xf32> -> vector<32x512xf32>
    %c0_135 = arith.constant 0 : index
    %c1_136 = arith.constant 1 : index
    %166 = vector.load %arg4[%c0_135, %c1_136] : memref<32x2xf32, #tpu.memory_space<vmem>>, vector<32x1xf32>
    %167 = vector.broadcast %166 : vector<32x1xf32> to vector<32x512xf32>
    %168 = arith.addf %165, %167 : vector<32x512xf32>
    %169 = vector.extract_strided_slice %168 {offsets = [0, 0], sizes = [32, 256], strides = [1, 1]} : vector<32x512xf32> to vector<32x256xf32>
    %cst_137 = arith.constant dense<0.000000e+00> : vector<32xf32>
    %170 = vector.multi_reduction <add>, %169, %cst_137 [1] : vector<32x256xf32> to vector<32xf32>
    %171 = vector.shape_cast %170 : vector<32xf32> to vector<32x1xf32>
    %cst_138 = arith.constant 2.560000e+02 : f32
    %172 = vector.broadcast %cst_138 : f32 to vector<32x1xf32>
    %173 = arith.divf %171, %172 : vector<32x1xf32>
    %c0_139 = arith.constant 0 : index
    %c0_140 = arith.constant 0 : index
    %174 = vector.load %arg5[%c0_139, %c0_140] : memref<32x2xf32, #tpu.memory_space<vmem>>, vector<32x2xf32>
    %175 = vector.broadcast %173 : vector<32x1xf32> to vector<32x2xf32>
    %176 = arith.mulf %174, %175 : vector<32x2xf32>
    %cst_141 = arith.constant dense<0.000000e+00> : vector<2xf32>
    %177 = vector.multi_reduction <add>, %176, %cst_141 [0] : vector<32x2xf32> to vector<2xf32>
    %178 = vector.shape_cast %177 : vector<2xf32> to vector<1x2xf32>
    %cst_142 = arith.constant 0.000000e+00 : f32
    %179 = vector.broadcast %cst_142 : f32 to vector<1x2xf32>
    %180 = arith.maximumf %178, %179 : vector<1x2xf32>
    %c0_143 = arith.constant 0 : index
    %c0_144 = arith.constant 0 : index
    %181 = vector.load %arg6[%c0_143, %c0_144] : memref<32x2xf32, #tpu.memory_space<vmem>>, vector<32x2xf32>
    %182 = vector.broadcast %180 : vector<1x2xf32> to vector<32x2xf32>
    %183 = arith.mulf %181, %182 : vector<32x2xf32>
    %cst_145 = arith.constant dense<0.000000e+00> : vector<32xf32>
    %184 = vector.multi_reduction <add>, %183, %cst_145 [1] : vector<32x2xf32> to vector<32xf32>
    %185 = vector.shape_cast %184 : vector<32xf32> to vector<32x1xf32>
    %cst_146 = arith.constant 0.000000e+00 : f32
    %186 = vector.broadcast %cst_146 : f32 to vector<32x1xf32>
    %187 = arith.subf %186, %185 : vector<32x1xf32>
    %188 = math.exp %187 : vector<32x1xf32>
    %cst_147 = arith.constant 1.000000e+00 : f32
    %189 = vector.broadcast %cst_147 : f32 to vector<32x1xf32>
    %190 = arith.addf %189, %188 : vector<32x1xf32>
    %cst_148 = arith.constant 1.000000e+00 : f32
    %191 = vector.broadcast %cst_148 : f32 to vector<32x1xf32>
    %192 = arith.divf %191, %190 : vector<32x1xf32>
    %c0_149 = arith.constant 0 : index
    %c128_150 = arith.constant 128 : index
    %193 = vector.load %arg10[%c0_149, %c128_150] : memref<32x768xf32, #tpu.memory_space<vmem>>, vector<32x256xf32>
    %194 = vector.broadcast %192 : vector<32x1xf32> to vector<32x256xf32>
    %195 = arith.mulf %169, %194 : vector<32x256xf32>
    %196 = arith.addf %195, %193 : vector<32x256xf32>
    %cst_151 = arith.constant 0.000000e+00 : f32
    %197 = vector.broadcast %cst_151 : f32 to vector<32x256xf32>
    %198 = arith.maximumf %196, %197 : vector<32x256xf32>
    %c0_152 = arith.constant 0 : index
    %c0_153 = arith.constant 0 : index
    %c0_154 = arith.constant 0 : index
    %199 = vector.load %arg8[%c0_152, %c0_153, %c0_154] : memref<2x32x256xf32, #tpu.memory_space<vmem>>, vector<1x32x256xf32>
    %200 = vector.shape_cast %199 : vector<1x32x256xf32> to vector<32x256xf32>
    %201 = vector.shape_cast %198 : vector<32x256xf32> to vector<1x32x256xf32>
    tpu.vector_store %arg8[%c0_152, %c0_153, %c0_154], %201 {strides = array<i32>} : memref<2x32x256xf32, #tpu.memory_space<vmem>>, vector<1x32x256xf32>,
    %202 = vector.extract_strided_slice %168 {offsets = [0, 256], sizes = [32, 256], strides = [1, 1]} : vector<32x512xf32> to vector<32x256xf32>
    %cst_155 = arith.constant dense<0.000000e+00> : vector<32xf32>
    %203 = vector.multi_reduction <add>, %202, %cst_155 [1] : vector<32x256xf32> to vector<32xf32>
    %204 = vector.shape_cast %203 : vector<32xf32> to vector<32x1xf32>
    %cst_156 = arith.constant 2.560000e+02 : f32
    %205 = vector.broadcast %cst_156 : f32 to vector<32x1xf32>
    %206 = arith.divf %204, %205 : vector<32x1xf32>
    %c0_157 = arith.constant 0 : index
    %c0_158 = arith.constant 0 : index
    %207 = vector.load %arg5[%c0_157, %c0_158] : memref<32x2xf32, #tpu.memory_space<vmem>>, vector<32x2xf32>
    %208 = vector.broadcast %206 : vector<32x1xf32> to vector<32x2xf32>
    %209 = arith.mulf %207, %208 : vector<32x2xf32>
    %cst_159 = arith.constant dense<0.000000e+00> : vector<2xf32>
    %210 = vector.multi_reduction <add>, %209, %cst_159 [0] : vector<32x2xf32> to vector<2xf32>
    %211 = vector.shape_cast %210 : vector<2xf32> to vector<1x2xf32>
    %cst_160 = arith.constant 0.000000e+00 : f32
    %212 = vector.broadcast %cst_160 : f32 to vector<1x2xf32>
    %213 = arith.maximumf %211, %212 : vector<1x2xf32>
    %c0_161 = arith.constant 0 : index
    %c0_162 = arith.constant 0 : index
    %214 = vector.load %arg6[%c0_161, %c0_162] : memref<32x2xf32, #tpu.memory_space<vmem>>, vector<32x2xf32>
    %215 = vector.broadcast %213 : vector<1x2xf32> to vector<32x2xf32>
    %216 = arith.mulf %214, %215 : vector<32x2xf32>
    %cst_163 = arith.constant dense<0.000000e+00> : vector<32xf32>
    %217 = vector.multi_reduction <add>, %216, %cst_163 [1] : vector<32x2xf32> to vector<32xf32>
    %218 = vector.shape_cast %217 : vector<32xf32> to vector<32x1xf32>
    %cst_164 = arith.constant 0.000000e+00 : f32
    %219 = vector.broadcast %cst_164 : f32 to vector<32x1xf32>
    %220 = arith.subf %219, %218 : vector<32x1xf32>
    %221 = math.exp %220 : vector<32x1xf32>
    %cst_165 = arith.constant 1.000000e+00 : f32
    %222 = vector.broadcast %cst_165 : f32 to vector<32x1xf32>
    %223 = arith.addf %222, %221 : vector<32x1xf32>
    %cst_166 = arith.constant 1.000000e+00 : f32
    %224 = vector.broadcast %cst_166 : f32 to vector<32x1xf32>
    %225 = arith.divf %224, %223 : vector<32x1xf32>
    %c0_167 = arith.constant 0 : index
    %c384_168 = arith.constant 384 : index
    %226 = vector.load %arg10[%c0_167, %c384_168] : memref<32x768xf32, #tpu.memory_space<vmem>>, vector<32x256xf32>
    %227 = vector.broadcast %225 : vector<32x1xf32> to vector<32x256xf32>
    %228 = arith.mulf %202, %227 : vector<32x256xf32>
    %229 = arith.addf %228, %226 : vector<32x256xf32>
    %cst_169 = arith.constant 0.000000e+00 : f32
    %230 = vector.broadcast %cst_169 : f32 to vector<32x256xf32>
    %231 = arith.maximumf %229, %230 : vector<32x256xf32>
    %c1_170 = arith.constant 1 : index
    %c0_171 = arith.constant 0 : index
    %c0_172 = arith.constant 0 : index
    %232 = vector.load %arg8[%c1_170, %c0_171, %c0_172] : memref<2x32x256xf32, #tpu.memory_space<vmem>>, vector<1x32x256xf32>
    %233 = vector.shape_cast %232 : vector<1x32x256xf32> to vector<32x256xf32>
    %234 = vector.shape_cast %231 : vector<32x256xf32> to vector<1x32x256xf32>
    tpu.vector_store %arg8[%c1_170, %c0_171, %c0_172], %234 {strides = array<i32>} : memref<2x32x256xf32, #tpu.memory_space<vmem>>, vector<1x32x256xf32>,
    return
  }
  func.func @transform_0(%arg0: i32) -> (i32, i32, i32) {
    %c0_i32 = arith.constant 0 : i32
    %c0_i32_0 = arith.constant 0 : i32
    %c0_i32_1 = arith.constant 0 : i32
    return %arg0, %c0_i32, %c0_i32_0 : i32, i32, i32
  }
  func.func @transform_1(%arg0: i32) -> (i32, i32) {
    %c0_i32 = arith.constant 0 : i32
    %c0_i32_0 = arith.constant 0 : i32
    %c0_i32_1 = arith.constant 0 : i32
    return %c0_i32, %c0_i32_0 : i32, i32
  }
  func.func @transform_2(%arg0: i32) -> (i32, i32) {
    %c0_i32 = arith.constant 0 : i32
    %c0_i32_0 = arith.constant 0 : i32
    %c0_i32_1 = arith.constant 0 : i32
    return %c0_i32, %c0_i32_0 : i32, i32
  }
  func.func @transform_3(%arg0: i32) -> (i32, i32) {
    %c0_i32 = arith.constant 0 : i32
    %c0_i32_0 = arith.constant 0 : i32
    %c0_i32_1 = arith.constant 0 : i32
    return %c0_i32, %c0_i32_0 : i32, i32
  }
  func.func @transform_4(%arg0: i32) -> (i32, i32) {
    %c0_i32 = arith.constant 0 : i32
    %c0_i32_0 = arith.constant 0 : i32
    %c0_i32_1 = arith.constant 0 : i32
    return %c0_i32, %c0_i32_0 : i32, i32
  }
  func.func @transform_5(%arg0: i32) -> (i32, i32) {
    %c0_i32 = arith.constant 0 : i32
    %c0_i32_0 = arith.constant 0 : i32
    %c0_i32_1 = arith.constant 0 : i32
    return %c0_i32, %c0_i32_0 : i32, i32
  }
  func.func @transform_6(%arg0: i32) -> (i32, i32) {
    %c0_i32 = arith.constant 0 : i32
    %c0_i32_0 = arith.constant 0 : i32
    %c0_i32_1 = arith.constant 0 : i32
    return %c0_i32, %c0_i32_0 : i32, i32
  }
  func.func @transform_7(%arg0: i32) -> (i32, i32, i32) {
    %c0_i32 = arith.constant 0 : i32
    %c0_i32_0 = arith.constant 0 : i32
    %c0_i32_1 = arith.constant 0 : i32
    return %arg0, %c0_i32, %c0_i32_0 : i32, i32, i32
  }
}

</mosaic_0001>

<llo_original>
// kernel: tpu_custom_call.1
$region0: #{tpu_custom_call.1}
  #allocation0 [shape = 'u32[]', space=smem, size = 0x4, offset = 0x4, fixed_abs, tag = 'smem constant byte address 0x4 - core index']
  #allocation1 [shape = 'u32[144,128]{1,0:T(1,128)}', space=vmem, size = 0x12000, scoped, tag = 'internal scratch']
  #allocation2 [shape = 'f32[288,512]{1,0:T(8,128)}', space=vmem, size = 0x90000, scoped, tag = 'scratch operand']
  #allocation3 [shape = 'f32[32,768]{1,0:T(8,128)}', space=vmem, size = 0x18000, scoped, tag = 'scratch operand']
  #allocation4 [shape = 'f32[32,768]{1,0:T(8,128)}', space=vmem, size = 0x18000, scoped, tag = 'scratch operand']
  %s0 = inlined_call_operand.hbm [shape: f32[4,32,256], index: 0, kind: input, shape index: {}]
  %s1 = inlined_call_operand.vmem [shape: f32[32,288], index: 1, kind: input, shape index: {}]
  %s2 = inlined_call_operand.hbm [shape: f32[32,288], index: 2, kind: input, shape index: {}]
  %s3 = inlined_call_operand.vmem [shape: f32[32,2], index: 3, kind: input, shape index: {}]
  %s4 = inlined_call_operand.vmem [shape: f32[32,2], index: 4, kind: input, shape index: {}]
  %s5 = inlined_call_operand.vmem [shape: f32[32,2], index: 5, kind: input, shape index: {}]
  %s6 = inlined_call_operand.hbm [shape: f32[9,512], index: 6, kind: input, shape index: {}]
  %s7 = inlined_call_operand.hbm [shape: f32[4,32,256], index: 7, kind: output, shape index: {}]
  %s8 = sld [smem:[#allocation0]]
  $region73: #{tpu_custom_call.1} parent=0
    _
  %s10 = ssub.s32 1, %s8
  %s11 = scalar_select 0, %s10, %s8
  $region1: #{tpu_custom_call.1} parent=0
    #allocation5 [shape = 'u8[131072]{0}', space=vmem, size = 0x20000, scoped, tag = 'input window, operand 0']
    #allocation6 [shape = 's32[2]{0}', space=sflag, size = 0x8, scoped, tag = 'scoped memory for tpu_custom_call.1']
    #allocation7 [shape = 's32[2]{0}', space=sflag, size = 0x8, scoped, tag = 'scoped memory for tpu_custom_call.1']
    #allocation8 [shape = 'u8[49152]{0}', space=vmem, size = 0xc000, scoped, tag = 'input window, operand 2, single buffered']
    #allocation9 [shape = 's32[1]{0}', space=sflag, size = 0x4, scoped, tag = 'scoped memory for tpu_custom_call.1']
    #allocation10 [shape = 'u8[32768]{0}', space=vmem, size = 0x8000, scoped, tag = 'input window, operand 6, single buffered']
    #allocation11 [shape = 'u8[131072]{0}', space=vmem, size = 0x20000, scoped, tag = 'output window, operand 0']
    %12 = vsyncpa [#allocation6], 0
    %s13 = scalar_lea.sflag [#allocation6], 1
    %14 = vsyncpa %s13, 0
    %15 = vsyncpa [#allocation9], 0
    %16 = vsyncpa [#allocation7], 0
    %s17 = scalar_lea.sflag [#allocation7], 1
    %18 = vsyncpa %s17, 0
    loop: start=0, step=1, limit=4
    $region2: #{tpu_custom_call.1} parent=1 // loop_pre_header
      _
    $region3: #{tpu_custom_call.1} parent=1 // loop_header
      %s20 = sphi 0, %s24
      %p21 = scmp.ge.s32.totalorder %s20, 4
      %s30 = sphi 0, %s32
      %s33 = sphi 0, %s30
      %s34 = sphi 0, %s33
      %s50 = sphi 0, %s34
      %s54 = sphi 0, %s54
      %s56 = sphi 0, %s54
      %s57 = sphi 0, %s56
      %s71 = sphi 0, %s57
      %s75 = sphi 0, %s75
      %s77 = sphi 0, %s75
      %s78 = sphi 0, %s77
      %s92 = sphi 0, %s78
      %s96 = sphi 0, %s96
      %s98 = sphi 0, %s96
      %s99 = sphi 0, %s98
      %s113 = sphi 0, %s99
      %s117 = sphi 0, %s117
      %s119 = sphi 0, %s117
      %s120 = sphi 0, %s119
      %s134 = sphi 0, %s120
      %s138 = sphi 0, %s138
      %s140 = sphi 0, %s138
      %s141 = sphi 0, %s140
      %s155 = sphi 0, %s141
      %s159 = sphi 0, %s159
      %s161 = sphi 0, %s159
      %s162 = sphi 0, %s161
      %s176 = sphi 0, %s162
      %s182 = sphi 0, %s184
      %s185 = sphi 0, %s182
      %s186 = sphi 0, %s185
      %s202 = sphi 0, %s186
    $region4: #{tpu_custom_call.1} parent=1 // loop_header_branch
      %23 = sbr.rel (%p21) target = $region8
    $region5: #{tpu_custom_call.1} parent=1 // loop_body
      %s25 = ssub.s32 %s20, 1
      %s26 = ssub.s32 %s20, 2
      %s27 = sadd.s32 %s20, 1
      %s28 = ssub.s32 %s20, %s27
      %p29 = scmp.eq.s32.totalorder %s28, 0
      %s31 = sadd.s32 %s30, 1
      %s32 = scalar_select %p29, %s30, %s31
      %p35 = pneg %p29
      %p36 = scmp.eq.s32.totalorder %s20, 1
      %p37 = por %p35, %p36
      %p38 = scmp.ne.s32.totalorder %s30, %s33
      %p39 = scmp.eq.s32.totalorder %s20, 0
      %p40 = por %p38, %p39
      %p41 = scmp.ne.s32.totalorder %s30, %s33
      %p42 = scmp.eq.s32.totalorder %s25, 1
      %p43 = por %p41, %p42
      %p44 = scmp.ne.s32.totalorder %s33, %s34
      %p45 = scmp.eq.s32.totalorder %s25, 0
      %p46 = por %p44, %p45
      %p47 = scmp.ne.s32.totalorder %s33, %s34
      %p48 = scmp.eq.s32.totalorder %s26, 1
      %p49 = por %p47, %p48
      %p51 = scmp.ne.s32.totalorder %s34, %s50
      %p52 = scmp.eq.s32.totalorder %s26, 0
      %p53 = por %p51, %p52
      %s55 = sadd.s32 %s54, 1
      %p58 = scmp.eq.s32.totalorder %s20, 1
      %p59 = scmp.ne.s32.totalorder %s54, %s56
      %p60 = scmp.eq.s32.totalorder %s20, 0
      %p61 = por %p59, %p60
      %p62 = scmp.ne.s32.totalorder %s54, %s56
      %p63 = scmp.eq.s32.totalorder %s25, 1
      %p64 = por %p62, %p63
      %p65 = scmp.ne.s32.totalorder %s56, %s57
      %p66 = scmp.eq.s32.totalorder %s25, 0
      %p67 = por %p65, %p66
      %p68 = scmp.ne.s32.totalorder %s56, %s57
      %p69 = scmp.eq.s32.totalorder %s26, 1
      %p70 = por %p68, %p69
      %p72 = scmp.ne.s32.totalorder %s57, %s71
      %p73 = scmp.eq.s32.totalorder %s26, 0
      %p74 = por %p72, %p73
      %s76 = sadd.s32 %s75, 1
      %p79 = scmp.eq.s32.totalorder %s20, 1
      %p80 = scmp.ne.s32.totalorder %s75, %s77
      %p81 = scmp.eq.s32.totalorder %s20, 0
      %p82 = por %p80, %p81
      %p83 = scmp.ne.s32.totalorder %s75, %s77
      %p84 = scmp.eq.s32.totalorder %s25, 1
      %p85 = por %p83, %p84
      %p86 = scmp.ne.s32.totalorder %s77, %s78
      %p87 = scmp.eq.s32.totalorder %s25, 0
      %p88 = por %p86, %p87
      %p89 = scmp.ne.s32.totalorder %s77, %s78
      %p90 = scmp.eq.s32.totalorder %s26, 1
      %p91 = por %p89, %p90
      %p93 = scmp.ne.s32.totalorder %s78, %s92
      %p94 = scmp.eq.s32.totalorder %s26, 0
      %p95 = por %p93, %p94
      %s97 = sadd.s32 %s96, 1
      %p100 = scmp.eq.s32.totalorder %s20, 1
      %p101 = scmp.ne.s32.totalorder %s96, %s98
      %p102 = scmp.eq.s32.totalorder %s20, 0
      %p103 = por %p101, %p102
      %p104 = scmp.ne.s32.totalorder %s96, %s98
      %p105 = scmp.eq.s32.totalorder %s25, 1
      %p106 = por %p104, %p105
      %p107 = scmp.ne.s32.totalorder %s98, %s99
      %p108 = scmp.eq.s32.totalorder %s25, 0
      %p109 = por %p107, %p108
      %p110 = scmp.ne.s32.totalorder %s98, %s99
      %p111 = scmp.eq.s32.totalorder %s26, 1
      %p112 = por %p110, %p111
      %p114 = scmp.ne.s32.totalorder %s99, %s113
      %p115 = scmp.eq.s32.totalorder %s26, 0
      %p116 = por %p114, %p115
      %s118 = sadd.s32 %s117, 1
      %p121 = scmp.eq.s32.totalorder %s20, 1
      %p122 = scmp.ne.s32.totalorder %s117, %s119
      %p123 = scmp.eq.s32.totalorder %s20, 0
      %p124 = por %p122, %p123
      %p125 = scmp.ne.s32.totalorder %s117, %s119
      %p126 = scmp.eq.s32.totalorder %s25, 1
      %p127 = por %p125, %p126
      %p128 = scmp.ne.s32.totalorder %s119, %s120
      %p129 = scmp.eq.s32.totalorder %s25, 0
      %p130 = por %p128, %p129
      %p131 = scmp.ne.s32.totalorder %s119, %s120
      %p132 = scmp.eq.s32.totalorder %s26, 1
      %p133 = por %p131, %p132
      %p135 = scmp.ne.s32.totalorder %s120, %s134
      %p136 = scmp.eq.s32.totalorder %s26, 0
      %p137 = por %p135, %p136
      %s139 = sadd.s32 %s138, 1
      %p142 = scmp.eq.s32.totalorder %s20, 1
      %p143 = scmp.ne.s32.totalorder %s138, %s140
      %p144 = scmp.eq.s32.totalorder %s20, 0
      %p145 = por %p143, %p144
      %p146 = scmp.ne.s32.totalorder %s138, %s140
      %p147 = scmp.eq.s32.totalorder %s25, 1
      %p148 = por %p146, %p147
      %p149 = scmp.ne.s32.totalorder %s140, %s141
      %p150 = scmp.eq.s32.totalorder %s25, 0
      %p151 = por %p149, %p150
      %p152 = scmp.ne.s32.totalorder %s140, %s141
      %p153 = scmp.eq.s32.totalorder %s26, 1
      %p154 = por %p152, %p153
      %p156 = scmp.ne.s32.totalorder %s141, %s155
      %p157 = scmp.eq.s32.totalorder %s26, 0
      %p158 = por %p156, %p157
      %s160 = sadd.s32 %s159, 1
      %p163 = scmp.eq.s32.totalorder %s20, 1
      %p164 = scmp.ne.s32.totalorder %s159, %s161
      %p165 = scmp.eq.s32.totalorder %s20, 0
      %p166 = por %p164, %p165
      %p167 = scmp.ne.s32.totalorder %s159, %s161
      %p168 = scmp.eq.s32.totalorder %s25, 1
      %p169 = por %p167, %p168
      %p170 = scmp.ne.s32.totalorder %s161, %s162
      %p171 = scmp.eq.s32.totalorder %s25, 0
      %p172 = por %p170, %p171
      %p173 = scmp.ne.s32.totalorder %s161, %s162
      %p174 = scmp.eq.s32.totalorder %s26, 1
      %p175 = por %p173, %p174
      %p177 = scmp.ne.s32.totalorder %s162, %s176
      %p178 = scmp.eq.s32.totalorder %s26, 0
      %p179 = por %p177, %p178
      %s180 = ssub.s32 %s20, %s27
      %p181 = scmp.eq.s32.totalorder %s180, 0
      %s183 = sadd.s32 %s182, 1
      %s184 = scalar_select %p181, %s182, %s183
      %p187 = pneg %p181
      %p188 = scmp.eq.s32.totalorder %s20, 1
      %p189 = por %p187, %p188
      %p190 = scmp.ne.s32.totalorder %s182, %s185
      %p191 = scmp.eq.s32.totalorder %s20, 0
      %p192 = por %p190, %p191
      %p193 = scmp.ne.s32.totalorder %s182, %s185
      %p194 = scmp.eq.s32.totalorder %s25, 1
      %p195 = por %p193, %p194
      %p196 = scmp.ne.s32.totalorder %s185, %s186
      %p197 = scmp.eq.s32.totalorder %s25, 0
      %p198 = por %p196, %p197
      %p199 = scmp.ne.s32.totalorder %s185, %s186
      %p200 = scmp.eq.s32.totalorder %s26, 1
      %p201 = por %p199, %p200
      %p203 = scmp.ne.s32.totalorder %s186, %s202
      %p204 = scmp.eq.s32.totalorder %s26, 0
      %p205 = por %p203, %p204
      %p206 = scmp.le.s32.totalorder 1, %s20
      %p207 = scmp.lt.s32.totalorder %s20, 3
      %p208 = pnand %p206, %p207
      %p209 = pneg %p208
      // Predicated region
      $region9: #{tpu_custom_call.1} parent=5 // pred_check
        _
      $region10: #{tpu_custom_call.1} parent=5 // pred_check_branch
        %211 = sbr.rel (%p208) target = $region12
      $region11: #{tpu_custom_call.1} parent=5 // pred_region
        %s212 = ssub.s32 %s20, 1
        // Predicated region
        $region13: #{tpu_custom_call.1} parent=11 // pred_check
          %p213 = pneg %p67
        $region14: #{tpu_custom_call.1} parent=11 // pred_check_branch
          %215 = sbr.rel (%p213) target = $region16
        $region15: #{tpu_custom_call.1} parent=11 // pred_region
          _
        $region16: #{tpu_custom_call.1} parent=11 // pred_fallthru
          _
        // Predicated region
        $region17: #{tpu_custom_call.1} parent=11 // pred_check
          %p216 = pneg %p88
        $region18: #{tpu_custom_call.1} parent=11 // pred_check_branch
          %218 = sbr.rel (%p216) target = $region20
        $region19: #{tpu_custom_call.1} parent=11 // pred_region
          %s220 = ssub.s32 1536, 1536
          %221 = vsyncadd [#allocation9], %s220
          %s222 = sshll.u32 [#allocation8], 4
          %s223 = int_to_ptr.vmem [resolvable:$true] %s222
          %228 = dma.hbm_to_vmem [thread:$0]  %s2, 1536, %s223, [#allocation9], 384, 384, 24
        $region20: #{tpu_custom_call.1} parent=11 // pred_fallthru
          _
        // Predicated region
        $region21: #{tpu_custom_call.1} parent=11 // pred_check
          %p229 = pneg %p109
        $region22: #{tpu_custom_call.1} parent=11 // pred_check_branch
          %231 = sbr.rel (%p229) target = $region24
        $region23: #{tpu_custom_call.1} parent=11 // pred_region
          _
        $region24: #{tpu_custom_call.1} parent=11 // pred_fallthru
          _
        // Predicated region
        $region25: #{tpu_custom_call.1} parent=11 // pred_check
          %p232 = pneg %p130
        $region26: #{tpu_custom_call.1} parent=11 // pred_check_branch
          %234 = sbr.rel (%p232) target = $region28
        $region27: #{tpu_custom_call.1} parent=11 // pred_region
          _
        $region28: #{tpu_custom_call.1} parent=11 // pred_fallthru
          _
        // Predicated region
        $region29: #{tpu_custom_call.1} parent=11 // pred_check
          %p235 = pneg %p151
        $region30: #{tpu_custom_call.1} parent=11 // pred_check_branch
          %237 = sbr.rel (%p235) target = $region32
        $region31: #{tpu_custom_call.1} parent=11 // pred_region
          _
        $region32: #{tpu_custom_call.1} parent=11 // pred_fallthru
          _
        // Predicated region
        $region33: #{tpu_custom_call.1} parent=11 // pred_check
          %p238 = pneg %p172
        $region34: #{tpu_custom_call.1} parent=11 // pred_check_branch
          %240 = sbr.rel (%p238) target = $region36
        $region35: #{tpu_custom_call.1} parent=11 // pred_region
          %s242 = ssub.s32 1024, 1024
          %243 = vsyncadd [#allocation9], %s242
          %s244 = sshll.u32 [#allocation10], 4
          %s245 = int_to_ptr.vmem [resolvable:$true] %s244
          %250 = dma.hbm_to_vmem [thread:$0]  %s6, 1024, %s245, [#allocation9], 512, 512, 32
        $region36: #{tpu_custom_call.1} parent=11 // pred_fallthru
          _
      $region12: #{tpu_custom_call.1} parent=5 // pred_fallthru
        _
      %p251 = scmp.lt.s32.totalorder %s20, 2
      // Predicated region
      $region37: #{tpu_custom_call.1} parent=5 // pred_check
        %p252 = pneg %p251
      $region38: #{tpu_custom_call.1} parent=5 // pred_check_branch
        %254 = sbr.rel (%p252) target = $region40
      $region39: #{tpu_custom_call.1} parent=5 // pred_region
        // Predicated region
        $region41: #{tpu_custom_call.1} parent=39 // pred_check
          %p255 = pneg %p40
        $region42: #{tpu_custom_call.1} parent=39 // pred_check_branch
          %257 = sbr.rel (%p255) target = $region44
        $region43: #{tpu_custom_call.1} parent=39 // pred_region
          %s258 = sand.u32 %s30, 1
          %s259 = scalar_lea.sflag [#allocation6], %s258
          %s260 = sand.u32 %s30, 1
          %s261 = smul.addr %s260, 128
          %s262 = scalar_lea.vmem [#allocation5], %s261
          %s263 = smul.u32 2, %s20
          %s265 = ssub.s32 2048, 2048
          %266 = vsyncadd %s259, %s265
          %s267 = smul.addr %s263, 8
          %s268 = smul.addr %s267, 128
          %s269 = scalar_lea.hbm %s0, %s268
          %s270 = sshll.u32 %s262, 4
          %s271 = int_to_ptr.vmem [resolvable:$true] %s270
          %276 = dma.hbm_to_vmem [thread:$0]  %s269, 2048, %s271, %s259, 256, 256, 16
        $region44: #{tpu_custom_call.1} parent=39 // pred_fallthru
          _
      $region40: #{tpu_custom_call.1} parent=5 // pred_fallthru
        _
      %p277 = scmp.le.s32.totalorder 1, %s20
      %p278 = scmp.lt.s32.totalorder %s20, 3
      %p279 = pnand %p277, %p278
      %p280 = pneg %p279
      // Predicated region
      $region45: #{tpu_custom_call.1} parent=5 // pred_check
        _
      $region46: #{tpu_custom_call.1} parent=5 // pred_check_branch
        %282 = sbr.rel (%p279) target = $region48
      $region47: #{tpu_custom_call.1} parent=5 // pred_region
        %s283 = ssub.s32 %s20, 1
        %s284 = sand.u32 %s33, 1
        %s285 = scalar_lea.sflag [#allocation6], %s284
        %s286 = sand.u32 %s33, 1
        %s287 = smul.addr %s286, 128
        %s288 = scalar_lea.vmem [#allocation5], %s287
        // Predicated region
        $region49: #{tpu_custom_call.1} parent=47 // pred_check
          %p289 = pneg %p46
        $region50: #{tpu_custom_call.1} parent=47 // pred_check_branch
          %291 = sbr.rel (%p289) target = $region52
        $region51: #{tpu_custom_call.1} parent=47 // pred_region
          %292 = dma.done %s285, 2048
        $region52: #{tpu_custom_call.1} parent=47 // pred_fallthru
          _
        // Predicated region
        $region53: #{tpu_custom_call.1} parent=47 // pred_check
          %p293 = pneg %p88
        $region54: #{tpu_custom_call.1} parent=47 // pred_check_branch
          %295 = sbr.rel (%p293) target = $region56
        $region55: #{tpu_custom_call.1} parent=47 // pred_region
          %296 = dma.done [#allocation9], 1536
        $region56: #{tpu_custom_call.1} parent=47 // pred_fallthru
          _
        // Predicated region
        $region57: #{tpu_custom_call.1} parent=47 // pred_check
          %p297 = pneg %p172
        $region58: #{tpu_custom_call.1} parent=47 // pred_check_branch
          %299 = sbr.rel (%p297) target = $region60
        $region59: #{tpu_custom_call.1} parent=47 // pred_region
          %300 = dma.done [#allocation9], 1024
        $region60: #{tpu_custom_call.1} parent=47 // pred_fallthru
          _
        %s301 = sand.u32 %s33, 1
        %s302 = scalar_lea.sflag [#allocation6], %s301
        %s303 = sand.u32 %s33, 1
        %s304 = smul.addr %s303, 128
        %s305 = scalar_lea.vmem [#allocation5], %s304
        %p306 = pneg %p46
        %p307 = pneg %p43
        %p308 = pneg %p67
        %p309 = pneg %p64
        %p310 = pneg %p88
        %p311 = pneg %p85
        %p312 = pneg %p109
        %p313 = pneg %p106
        %p314 = pneg %p130
        %p315 = pneg %p127
        %p316 = pneg %p151
        %p317 = pneg %p148
        %p318 = pneg %p172
        %p319 = pneg %p169
        %p320 = pneg %p198
        %p321 = pneg %p195
        %s322 = sand.u32 %s185, 1
        %s323 = scalar_lea.sflag [#allocation7], %s322
        %s324 = sand.u32 %s185, 1
        %s325 = smul.addr %s324, 128
        %s326 = scalar_lea.vmem [#allocation11], %s325
        %s327 = smul.u32 2, %s25
        %s328 = smul.u32 2, %s25
        %v329 = vld [vmem:[%s288] sm:$0xff]
        %v330 = vld [vmem:[%s288 + $0x8] sm:$0xff]
        %v331 = vld [vmem:[%s288 + $0x10] sm:$0xff]
        %v332 = vld [vmem:[%s288 + $0x18] sm:$0xff]
        %v333 = vld [vmem:[%s288 + $0x20] sm:$0xff]
        %v334 = vld [vmem:[%s288 + $0x28] sm:$0xff]
        %v335 = vld [vmem:[%s288 + $0x30] sm:$0xff]
        %v336 = vld [vmem:[%s288 + $0x38] sm:$0xff]
        %337 = vst [vmem:[#allocation3 + $0x8] sm:$0xff] %v329
        %338 = vst [vmem:[#allocation3 + $0x10] sm:$0xff] %v330
        %339 = vst [vmem:[#allocation3 + $0x38] sm:$0xff] %v331
        %340 = vst [vmem:[#allocation3 + $0x40] sm:$0xff] %v332
        %341 = vst [vmem:[#allocation3 + $0x68] sm:$0xff] %v333
        %342 = vst [vmem:[#allocation3 + $0x70] sm:$0xff] %v334
        %343 = vst [vmem:[#allocation3 + $0x98] sm:$0xff] %v335
        %344 = vst [vmem:[#allocation3 + $0xa0] sm:$0xff] %v336
        %s345 = scalar_lea.vmem %s288, 64 [#allocation5]
        %v346 = vld [vmem:[%s345] sm:$0xff]
        %v347 = vld [vmem:[%s345 + $0x8] sm:$0xff]
        %v348 = vld [vmem:[%s345 + $0x10] sm:$0xff]
        %v349 = vld [vmem:[%s345 + $0x18] sm:$0xff]
        %v350 = vld [vmem:[%s345 + $0x20] sm:$0xff]
        %v351 = vld [vmem:[%s345 + $0x28] sm:$0xff]
        %v352 = vld [vmem:[%s345 + $0x30] sm:$0xff]
        %v353 = vld [vmem:[%s345 + $0x38] sm:$0xff]
        %354 = vst [vmem:[#allocation3 + $0x18] sm:$0xff] %v346
        %355 = vst [vmem:[#allocation3 + $0x20] sm:$0xff] %v347
        %356 = vst [vmem:[#allocation3 + $0x48] sm:$0xff] %v348
        %357 = vst [vmem:[#allocation3 + $0x50] sm:$0xff] %v349
        %358 = vst [vmem:[#allocation3 + $0x78] sm:$0xff] %v350
        %359 = vst [vmem:[#allocation3 + $0x80] sm:$0xff] %v351
        %360 = vst [vmem:[#allocation3 + $0xa8] sm:$0xff] %v352
        %361 = vst [vmem:[#allocation3 + $0xb0] sm:$0xff] %v353
        %v362 = vld [vmem:[#allocation3] sm:$0xff]
        %v363 = vld [vmem:[#allocation3 + $0x8] sm:$0xff]
        %v364 = vld [vmem:[#allocation3 + $0x10] sm:$0xff]
        %v365 = vld [vmem:[#allocation3 + $0x18] sm:$0xff]
        %v366 = vld [vmem:[#allocation3 + $0x20] sm:$0xff]
        %v367 = vld [vmem:[#allocation3 + $0x30] sm:$0xff]
        %v368 = vld [vmem:[#allocation3 + $0x38] sm:$0xff]
        %v369 = vld [vmem:[#allocation3 + $0x40] sm:$0xff]
        %v370 = vld [vmem:[#allocation3 + $0x48] sm:$0xff]
        %v371 = vld [vmem:[#allocation3 + $0x50] sm:$0xff]
        %v372 = vld [vmem:[#allocation3 + $0x60] sm:$0xff]
        %v373 = vld [vmem:[#allocation3 + $0x68] sm:$0xff]
        %v374 = vld [vmem:[#allocation3 + $0x70] sm:$0xff]
        %v375 = vld [vmem:[#allocation3 + $0x78] sm:$0xff]
        %v376 = vld [vmem:[#allocation3 + $0x80] sm:$0xff]
        %v377 = vld [vmem:[#allocation3 + $0x90] sm:$0xff]
        %v378 = vld [vmem:[#allocation3 + $0x98] sm:$0xff]
        %v379 = vld [vmem:[#allocation3 + $0xa0] sm:$0xff]
        %v380 = vld [vmem:[#allocation3 + $0xa8] sm:$0xff]
        %v381 = vld [vmem:[#allocation3 + $0xb0] sm:$0xff]
        %v382 = vld [vmem:[#allocation10] ss:$8 sm:$0xf]
        %v384 = vlaneseq
        %v385 = vshrl.u32 %v384, 7
        %v386 = vsub.s32 0, %v385
        %v387 = vrot.slane %v382, %v386
        %v388 = vlaneseq
        %v389 = vshrl.u32 %v388, 7
        %v390 = vsub.s32 1, %v389
        %v391 = vrot.slane %v382, %v390
        %v392 = vlaneseq
        %v393 = vshrl.u32 %v392, 7
        %v394 = vsub.s32 2, %v393
        %v395 = vrot.slane %v382, %v394
        %v396 = vlaneseq
        %v397 = vshrl.u32 %v396, 7
        %v398 = vsub.s32 3, %v397
        %v399 = vrot.slane %v382, %v398
        %vm404 = vcmp.gt.f32.partialorder %v387, 0.5
        %vm405 = vcmp.gt.f32.partialorder %v391, 0.5
        %vm406 = vcmp.gt.f32.partialorder %v395, 0.5
        %vm407 = vcmp.gt.f32.partialorder %v399, 0.5
        %428 = vrot.lane.b32.xlu0 %v362, 17
        %v429 = vpop.permute.xlu0 %428
        %430 = vrot.lane.b32.xlu0 %v363, 17
        %v431 = vpop.permute.xlu0 %430
        %432 = vrot.lane.b32.xlu0 %v364, 17
        %v433 = vpop.permute.xlu0 %432
        %434 = vrot.lane.b32.xlu0 %v365, 17
        %v435 = vpop.permute.xlu0 %434
        %436 = vrot.lane.b32.xlu0 %v366, 17
        %v437 = vpop.permute.xlu0 %436
        %438 = vrot.lane.b32.xlu0 %v367, 17
        %v439 = vpop.permute.xlu0 %438
        %440 = vrot.lane.b32.xlu0 %v368, 17
        %v441 = vpop.permute.xlu0 %440
        %442 = vrot.lane.b32.xlu0 %v369, 17
        %v443 = vpop.permute.xlu0 %442
        %444 = vrot.lane.b32.xlu0 %v370, 17
        %v445 = vpop.permute.xlu0 %444
        %446 = vrot.lane.b32.xlu0 %v371, 17
        %v447 = vpop.permute.xlu0 %446
        %448 = vrot.lane.b32.xlu0 %v372, 17
        %v449 = vpop.permute.xlu0 %448
        %450 = vrot.lane.b32.xlu0 %v373, 17
        %v451 = vpop.permute.xlu0 %450
        %452 = vrot.lane.b32.xlu0 %v374, 17
        %v453 = vpop.permute.xlu0 %452
        %454 = vrot.lane.b32.xlu0 %v375, 17
        %v455 = vpop.permute.xlu0 %454
        %456 = vrot.lane.b32.xlu0 %v376, 17
        %v457 = vpop.permute.xlu0 %456
        %458 = vrot.lane.b32.xlu0 %v377, 17
        %v459 = vpop.permute.xlu0 %458
        %460 = vrot.lane.b32.xlu0 %v378, 17
        %v461 = vpop.permute.xlu0 %460
        %462 = vrot.lane.b32.xlu0 %v379, 17
        %v463 = vpop.permute.xlu0 %462
        %464 = vrot.lane.b32.xlu0 %v380, 17
        %v465 = vpop.permute.xlu0 %464
        %466 = vrot.lane.b32.xlu0 %v381, 17
        %v467 = vpop.permute.xlu0 %466
        %vm468 = vcmask 138240
        %v469 = vsel %vm468, %v429, %v431
        %v470 = vsel %vm468, %v431, %v433
        %v471 = vsel %vm468, %v433, %v435
        %v472 = vsel %vm468, %v435, %v437
        %v473 = vsel %vm468, %v439, %v441
        %v474 = vsel %vm468, %v441, %v443
        %v475 = vsel %vm468, %v443, %v445
        %v476 = vsel %vm468, %v445, %v447
        %v477 = vsel %vm468, %v449, %v451
        %v478 = vsel %vm468, %v451, %v453
        %v479 = vsel %vm468, %v453, %v455
        %v480 = vsel %vm468, %v455, %v457
        %v481 = vsel %vm468, %v459, %v461
        %v482 = vsel %vm468, %v461, %v463
        %v483 = vsel %vm468, %v463, %v465
        %v484 = vsel %vm468, %v465, %v467
        %v501 = vsel %vm404, %v469, 0.0
        %v502 = vsel %vm405, %v470, 0.0
        %v503 = vsel %vm406, %v471, 0.0
        %v504 = vsel %vm407, %v472, 0.0
        %v505 = vsel %vm404, %v473, 0.0
        %v506 = vsel %vm405, %v474, 0.0
        %v507 = vsel %vm406, %v475, 0.0
        %v508 = vsel %vm407, %v476, 0.0
        %v509 = vsel %vm404, %v477, 0.0
        %v510 = vsel %vm405, %v478, 0.0
        %v511 = vsel %vm406, %v479, 0.0
        %v512 = vsel %vm407, %v480, 0.0
        %v513 = vsel %vm404, %v481, 0.0
        %v514 = vsel %vm405, %v482, 0.0
        %v515 = vsel %vm406, %v483, 0.0
        %v516 = vsel %vm407, %v484, 0.0
        %517 = vst [vmem:[#allocation2] sm:$0xff] %v501
        %518 = vst [vmem:[#allocation2 + $0x8] sm:$0xff] %v502
        %519 = vst [vmem:[#allocation2 + $0x10] sm:$0xff] %v503
        %520 = vst [vmem:[#allocation2 + $0x18] sm:$0xff] %v504
        %521 = vst [vmem:[#allocation2 + $0x20] sm:$0xff] %v505
        %522 = vst [vmem:[#allocation2 + $0x28] sm:$0xff] %v506
        %523 = vst [vmem:[#allocation2 + $0x30] sm:$0xff] %v507
        %524 = vst [vmem:[#allocation2 + $0x38] sm:$0xff] %v508
        %525 = vst [vmem:[#allocation2 + $0x40] sm:$0xff] %v509
        %526 = vst [vmem:[#allocation2 + $0x48] sm:$0xff] %v510
        %527 = vst [vmem:[#allocation2 + $0x50] sm:$0xff] %v511
        %528 = vst [vmem:[#allocation2 + $0x58] sm:$0xff] %v512
        %529 = vst [vmem:[#allocation2 + $0x60] sm:$0xff] %v513
        %530 = vst [vmem:[#allocation2 + $0x68] sm:$0xff] %v514
        %531 = vst [vmem:[#allocation2 + $0x70] sm:$0xff] %v515
        %532 = vst [vmem:[#allocation2 + $0x78] sm:$0xff] %v516
        %v533 = vld [vmem:[#allocation3] sm:$0xff]
        %v534 = vld [vmem:[#allocation3 + $0x8] sm:$0xff]
        %v535 = vld [vmem:[#allocation3 + $0x10] sm:$0xff]
        %v536 = vld [vmem:[#allocation3 + $0x18] sm:$0xff]
        %v537 = vld [vmem:[#allocation3 + $0x20] sm:$0xff]
        %v538 = vld [vmem:[#allocation3 + $0x30] sm:$0xff]
        %v539 = vld [vmem:[#allocation3 + $0x38] sm:$0xff]
        %v540 = vld [vmem:[#allocation3 + $0x40] sm:$0xff]
        %v541 = vld [vmem:[#allocation3 + $0x48] sm:$0xff]
        %v542 = vld [vmem:[#allocation3 + $0x50] sm:$0xff]
        %v543 = vld [vmem:[#allocation3 + $0x60] sm:$0xff]
        %v544 = vld [vmem:[#allocation3 + $0x68] sm:$0xff]
        %v545 = vld [vmem:[#allocation3 + $0x70] sm:$0xff]
        %v546 = vld [vmem:[#allocation3 + $0x78] sm:$0xff]
        %v547 = vld [vmem:[#allocation3 + $0x80] sm:$0xff]
        %v548 = vld [vmem:[#allocation3 + $0x90] sm:$0xff]
        %v549 = vld [vmem:[#allocation3 + $0x98] sm:$0xff]
        %v550 = vld [vmem:[#allocation3 + $0xa0] sm:$0xff]
        %v551 = vld [vmem:[#allocation3 + $0xa8] sm:$0xff]
        %v552 = vld [vmem:[#allocation3 + $0xb0] sm:$0xff]
        %s553 = scalar_lea.vmem [#allocation10], 1
        %v554 = vld [vmem:[%s553] ss:$8 sm:$0xf]
        %v556 = vlaneseq
        %v557 = vshrl.u32 %v556, 7
        %v558 = vsub.s32 0, %v557
        %v559 = vrot.slane %v554, %v558
        %v560 = vlaneseq
        %v561 = vshrl.u32 %v560, 7
        %v562 = vsub.s32 1, %v561
        %v563 = vrot.slane %v554, %v562
        %v564 = vlaneseq
        %v565 = vshrl.u32 %v564, 7
        %v566 = vsub.s32 2, %v565
        %v567 = vrot.slane %v554, %v566
        %v568 = vlaneseq
        %v569 = vshrl.u32 %v568, 7
        %v570 = vsub.s32 3, %v569
        %v571 = vrot.slane %v554, %v570
        %vm576 = vcmp.gt.f32.partialorder %v559, 0.5
        %vm577 = vcmp.gt.f32.partialorder %v563, 0.5
        %vm578 = vcmp.gt.f32.partialorder %v567, 0.5
        %vm579 = vcmp.gt.f32.partialorder %v571, 0.5
        %600 = vrot.lane.b32.xlu0 %v533, 16
        %v601 = vpop.permute.xlu0 %600
        %602 = vrot.lane.b32.xlu0 %v534, 16
        %v603 = vpop.permute.xlu0 %602
        %604 = vrot.lane.b32.xlu0 %v535, 16
        %v605 = vpop.permute.xlu0 %604
        %606 = vrot.lane.b32.xlu0 %v536, 16
        %v607 = vpop.permute.xlu0 %606
        %608 = vrot.lane.b32.xlu0 %v537, 16
        %v609 = vpop.permute.xlu0 %608
        %610 = vrot.lane.b32.xlu0 %v538, 16
        %v611 = vpop.permute.xlu0 %610
        %612 = vrot.lane.b32.xlu0 %v539, 16
        %v613 = vpop.permute.xlu0 %612
        %614 = vrot.lane.b32.xlu0 %v540, 16
        %v615 = vpop.permute.xlu0 %614
        %616 = vrot.lane.b32.xlu0 %v541, 16
        %v617 = vpop.permute.xlu0 %616
        %618 = vrot.lane.b32.xlu0 %v542, 16
        %v619 = vpop.permute.xlu0 %618
        %620 = vrot.lane.b32.xlu0 %v543, 16
        %v621 = vpop.permute.xlu0 %620
        %622 = vrot.lane.b32.xlu0 %v544, 16
        %v623 = vpop.permute.xlu0 %622
        %624 = vrot.lane.b32.xlu0 %v545, 16
        %v625 = vpop.permute.xlu0 %624
        %626 = vrot.lane.b32.xlu0 %v546, 16
        %v627 = vpop.permute.xlu0 %626
        %628 = vrot.lane.b32.xlu0 %v547, 16
        %v629 = vpop.permute.xlu0 %628
        %630 = vrot.lane.b32.xlu0 %v548, 16
        %v631 = vpop.permute.xlu0 %630
        %632 = vrot.lane.b32.xlu0 %v549, 16
        %v633 = vpop.permute.xlu0 %632
        %634 = vrot.lane.b32.xlu0 %v550, 16
        %v635 = vpop.permute.xlu0 %634
        %636 = vrot.lane.b32.xlu0 %v551, 16
        %v637 = vpop.permute.xlu0 %636
        %638 = vrot.lane.b32.xlu0 %v552, 16
        %v639 = vpop.permute.xlu0 %638
        %vm640 = vcmask 130048
        %v641 = vsel %vm640, %v601, %v603
        %v642 = vsel %vm640, %v603, %v605
        %v643 = vsel %vm640, %v605, %v607
        %v644 = vsel %vm640, %v607, %v609
        %v645 = vsel %vm640, %v611, %v613
        %v646 = vsel %vm640, %v613, %v615
        %v647 = vsel %vm640, %v615, %v617
        %v648 = vsel %vm640, %v617, %v619
        %v649 = vsel %vm640, %v621, %v623
        %v650 = vsel %vm640, %v623, %v625
        %v651 = vsel %vm640, %v625, %v627
        %v652 = vsel %vm640, %v627, %v629
        %v653 = vsel %vm640, %v631, %v633
        %v654 = vsel %vm640, %v633, %v635
        %v655 = vsel %vm640, %v635, %v637
        %v656 = vsel %vm640, %v637, %v639
        %v673 = vsel %vm576, %v641, 0.0
        %v674 = vsel %vm577, %v642, 0.0
        %v675 = vsel %vm578, %v643, 0.0
        %v676 = vsel %vm579, %v644, 0.0
        %v677 = vsel %vm576, %v645, 0.0
        %v678 = vsel %vm577, %v646, 0.0
        %v679 = vsel %vm578, %v647, 0.0
        %v680 = vsel %vm579, %v648, 0.0
        %v681 = vsel %vm576, %v649, 0.0
        %v682 = vsel %vm577, %v650, 0.0
        %v683 = vsel %vm578, %v651, 0.0
        %v684 = vsel %vm579, %v652, 0.0
        %v685 = vsel %vm576, %v653, 0.0
        %v686 = vsel %vm577, %v654, 0.0
        %v687 = vsel %vm578, %v655, 0.0
        %v688 = vsel %vm579, %v656, 0.0
        %689 = vst [vmem:[#allocation2 + $0x80] sm:$0xff] %v673
        %690 = vst [vmem:[#allocation2 + $0x88] sm:$0xff] %v674
        %691 = vst [vmem:[#allocation2 + $0x90] sm:$0xff] %v675
        %692 = vst [vmem:[#allocation2 + $0x98] sm:$0xff] %v676
        %693 = vst [vmem:[#allocation2 + $0xa0] sm:$0xff] %v677
        %694 = vst [vmem:[#allocation2 + $0xa8] sm:$0xff] %v678
        %695 = vst [vmem:[#allocation2 + $0xb0] sm:$0xff] %v679
        %696 = vst [vmem:[#allocation2 + $0xb8] sm:$0xff] %v680
        %697 = vst [vmem:[#allocation2 + $0xc0] sm:$0xff] %v681
        %698 = vst [vmem:[#allocation2 + $0xc8] sm:$0xff] %v682
        %699 = vst [vmem:[#allocation2 + $0xd0] sm:$0xff] %v683
        %700 = vst [vmem:[#allocation2 + $0xd8] sm:$0xff] %v684
        %701 = vst [vmem:[#allocation2 + $0xe0] sm:$0xff] %v685
        %702 = vst [vmem:[#allocation2 + $0xe8] sm:$0xff] %v686
        %703 = vst [vmem:[#allocation2 + $0xf0] sm:$0xff] %v687
        %704 = vst [vmem:[#allocation2 + $0xf8] sm:$0xff] %v688
        %v705 = vld [vmem:[#allocation3] sm:$0xff]
        %v706 = vld [vmem:[#allocation3 + $0x8] sm:$0xff]
        %v707 = vld [vmem:[#allocation3 + $0x10] sm:$0xff]
        %v708 = vld [vmem:[#allocation3 + $0x18] sm:$0xff]
        %v709 = vld [vmem:[#allocation3 + $0x20] sm:$0xff]
        %v710 = vld [vmem:[#allocation3 + $0x30] sm:$0xff]
        %v711 = vld [vmem:[#allocation3 + $0x38] sm:$0xff]
        %v712 = vld [vmem:[#allocation3 + $0x40] sm:$0xff]
        %v713 = vld [vmem:[#allocation3 + $0x48] sm:$0xff]
        %v714 = vld [vmem:[#allocation3 + $0x50] sm:$0xff]
        %v715 = vld [vmem:[#allocation3 + $0x60] sm:$0xff]
        %v716 = vld [vmem:[#allocation3 + $0x68] sm:$0xff]
        %v717 = vld [vmem:[#allocation3 + $0x70] sm:$0xff]
        %v718 = vld [vmem:[#allocation3 + $0x78] sm:$0xff]
        %v719 = vld [vmem:[#allocation3 + $0x80] sm:$0xff]
        %v720 = vld [vmem:[#allocation3 + $0x90] sm:$0xff]
        %v721 = vld [vmem:[#allocation3 + $0x98] sm:$0xff]
        %v722 = vld [vmem:[#allocation3 + $0xa0] sm:$0xff]
        %v723 = vld [vmem:[#allocation3 + $0xa8] sm:$0xff]
        %v724 = vld [vmem:[#allocation3 + $0xb0] sm:$0xff]
        %s725 = scalar_lea.vmem [#allocation10], 2
        %v726 = vld [vmem:[%s725] ss:$8 sm:$0xf]
        %v728 = vlaneseq
        %v729 = vshrl.u32 %v728, 7
        %v730 = vsub.s32 0, %v729
        %v731 = vrot.slane %v726, %v730
        %v732 = vlaneseq
        %v733 = vshrl.u32 %v732, 7
        %v734 = vsub.s32 1, %v733
        %v735 = vrot.slane %v726, %v734
        %v736 = vlaneseq
        %v737 = vshrl.u32 %v736, 7
        %v738 = vsub.s32 2, %v737
        %v739 = vrot.slane %v726, %v738
        %v740 = vlaneseq
        %v741 = vshrl.u32 %v740, 7
        %v742 = vsub.s32 3, %v741
        %v743 = vrot.slane %v726, %v742
        %vm748 = vcmp.gt.f32.partialorder %v731, 0.5
        %vm749 = vcmp.gt.f32.partialorder %v735, 0.5
        %vm750 = vcmp.gt.f32.partialorder %v739, 0.5
        %vm751 = vcmp.gt.f32.partialorder %v743, 0.5
        %772 = vrot.lane.b32.xlu0 %v705, 15
        %v773 = vpop.permute.xlu0 %772
        %774 = vrot.lane.b32.xlu0 %v706, 15
        %v775 = vpop.permute.xlu0 %774
        %776 = vrot.lane.b32.xlu0 %v707, 15
        %v777 = vpop.permute.xlu0 %776
        %778 = vrot.lane.b32.xlu0 %v708, 15
        %v779 = vpop.permute.xlu0 %778
        %780 = vrot.lane.b32.xlu0 %v709, 15
        %v781 = vpop.permute.xlu0 %780
        %782 = vrot.lane.b32.xlu0 %v710, 15
        %v783 = vpop.permute.xlu0 %782
        %784 = vrot.lane.b32.xlu0 %v711, 15
        %v785 = vpop.permute.xlu0 %784
        %786 = vrot.lane.b32.xlu0 %v712, 15
        %v787 = vpop.permute.xlu0 %786
        %788 = vrot.lane.b32.xlu0 %v713, 15
        %v789 = vpop.permute.xlu0 %788
        %790 = vrot.lane.b32.xlu0 %v714, 15
        %v791 = vpop.permute.xlu0 %790
        %792 = vrot.lane.b32.xlu0 %v715, 15
        %v793 = vpop.permute.xlu0 %792
        %794 = vrot.lane.b32.xlu0 %v716, 15
        %v795 = vpop.permute.xlu0 %794
        %796 = vrot.lane.b32.xlu0 %v717, 15
        %v797 = vpop.permute.xlu0 %796
        %798 = vrot.lane.b32.xlu0 %v718, 15
        %v799 = vpop.permute.xlu0 %798
        %800 = vrot.lane.b32.xlu0 %v719, 15
        %v801 = vpop.permute.xlu0 %800
        %802 = vrot.lane.b32.xlu0 %v720, 15
        %v803 = vpop.permute.xlu0 %802
        %804 = vrot.lane.b32.xlu0 %v721, 15
        %v805 = vpop.permute.xlu0 %804
        %806 = vrot.lane.b32.xlu0 %v722, 15
        %v807 = vpop.permute.xlu0 %806
        %808 = vrot.lane.b32.xlu0 %v723, 15
        %v809 = vpop.permute.xlu0 %808
        %810 = vrot.lane.b32.xlu0 %v724, 15
        %v811 = vpop.permute.xlu0 %810
        %vm812 = vcmask 121856
        %v813 = vsel %vm812, %v773, %v775
        %v814 = vsel %vm812, %v775, %v777
        %v815 = vsel %vm812, %v777, %v779
        %v816 = vsel %vm812, %v779, %v781
        %v817 = vsel %vm812, %v783, %v785
        %v818 = vsel %vm812, %v785, %v787
        %v819 = vsel %vm812, %v787, %v789
        %v820 = vsel %vm812, %v789, %v791
        %v821 = vsel %vm812, %v793, %v795
        %v822 = vsel %vm812, %v795, %v797
        %v823 = vsel %vm812, %v797, %v799
        %v824 = vsel %vm812, %v799, %v801
        %v825 = vsel %vm812, %v803, %v805
        %v826 = vsel %vm812, %v805, %v807
        %v827 = vsel %vm812, %v807, %v809
        %v828 = vsel %vm812, %v809, %v811
        %v845 = vsel %vm748, %v813, 0.0
        %v846 = vsel %vm749, %v814, 0.0
        %v847 = vsel %vm750, %v815, 0.0
        %v848 = vsel %vm751, %v816, 0.0
        %v849 = vsel %vm748, %v817, 0.0
        %v850 = vsel %vm749, %v818, 0.0
        %v851 = vsel %vm750, %v819, 0.0
        %v852 = vsel %vm751, %v820, 0.0
        %v853 = vsel %vm748, %v821, 0.0
        %v854 = vsel %vm749, %v822, 0.0
        %v855 = vsel %vm750, %v823, 0.0
        %v856 = vsel %vm751, %v824, 0.0
        %v857 = vsel %vm748, %v825, 0.0
        %v858 = vsel %vm749, %v826, 0.0
        %v859 = vsel %vm750, %v827, 0.0
        %v860 = vsel %vm751, %v828, 0.0
        %861 = vst [vmem:[#allocation2 + $0x100] sm:$0xff] %v845
        %862 = vst [vmem:[#allocation2 + $0x108] sm:$0xff] %v846
        %863 = vst [vmem:[#allocation2 + $0x110] sm:$0xff] %v847
        %864 = vst [vmem:[#allocation2 + $0x118] sm:$0xff] %v848
        %865 = vst [vmem:[#allocation2 + $0x120] sm:$0xff] %v849
        %866 = vst [vmem:[#allocation2 + $0x128] sm:$0xff] %v850
        %867 = vst [vmem:[#allocation2 + $0x130] sm:$0xff] %v851
        %868 = vst [vmem:[#allocation2 + $0x138] sm:$0xff] %v852
        %869 = vst [vmem:[#allocation2 + $0x140] sm:$0xff] %v853
        %870 = vst [vmem:[#allocation2 + $0x148] sm:$0xff] %v854
        %871 = vst [vmem:[#allocation2 + $0x150] sm:$0xff] %v855
        %872 = vst [vmem:[#allocation2 + $0x158] sm:$0xff] %v856
        %873 = vst [vmem:[#allocation2 + $0x160] sm:$0xff] %v857
        %874 = vst [vmem:[#allocation2 + $0x168] sm:$0xff] %v858
        %875 = vst [vmem:[#allocation2 + $0x170] sm:$0xff] %v859
        %876 = vst [vmem:[#allocation2 + $0x178] sm:$0xff] %v860
        %v877 = vld [vmem:[#allocation3] sm:$0xff]
        %v878 = vld [vmem:[#allocation3 + $0x8] sm:$0xff]
        %v879 = vld [vmem:[#allocation3 + $0x10] sm:$0xff]
        %v880 = vld [vmem:[#allocation3 + $0x18] sm:$0xff]
        %v881 = vld [vmem:[#allocation3 + $0x20] sm:$0xff]
        %v882 = vld [vmem:[#allocation3 + $0x30] sm:$0xff]
        %v883 = vld [vmem:[#allocation3 + $0x38] sm:$0xff]
        %v884 = vld [vmem:[#allocation3 + $0x40] sm:$0xff]
        %v885 = vld [vmem:[#allocation3 + $0x48] sm:$0xff]
        %v886 = vld [vmem:[#allocation3 + $0x50] sm:$0xff]
        %v887 = vld [vmem:[#allocation3 + $0x60] sm:$0xff]
        %v888 = vld [vmem:[#allocation3 + $0x68] sm:$0xff]
        %v889 = vld [vmem:[#allocation3 + $0x70] sm:$0xff]
        %v890 = vld [vmem:[#allocation3 + $0x78] sm:$0xff]
        %v891 = vld [vmem:[#allocation3 + $0x80] sm:$0xff]
        %v892 = vld [vmem:[#allocation3 + $0x90] sm:$0xff]
        %v893 = vld [vmem:[#allocation3 + $0x98] sm:$0xff]
        %v894 = vld [vmem:[#allocation3 + $0xa0] sm:$0xff]
        %v895 = vld [vmem:[#allocation3 + $0xa8] sm:$0xff]
        %v896 = vld [vmem:[#allocation3 + $0xb0] sm:$0xff]
        %s897 = scalar_lea.vmem [#allocation10], 3
        %v898 = vld [vmem:[%s897] ss:$8 sm:$0xf]
        %v900 = vlaneseq
        %v901 = vshrl.u32 %v900, 7
        %v902 = vsub.s32 0, %v901
        %v903 = vrot.slane %v898, %v902
        %v904 = vlaneseq
        %v905 = vshrl.u32 %v904, 7
        %v906 = vsub.s32 1, %v905
        %v907 = vrot.slane %v898, %v906
        %v908 = vlaneseq
        %v909 = vshrl.u32 %v908, 7
        %v910 = vsub.s32 2, %v909
        %v911 = vrot.slane %v898, %v910
        %v912 = vlaneseq
        %v913 = vshrl.u32 %v912, 7
        %v914 = vsub.s32 3, %v913
        %v915 = vrot.slane %v898, %v914
        %vm920 = vcmp.gt.f32.partialorder %v903, 0.5
        %vm921 = vcmp.gt.f32.partialorder %v907, 0.5
        %vm922 = vcmp.gt.f32.partialorder %v911, 0.5
        %vm923 = vcmp.gt.f32.partialorder %v915, 0.5
        %944 = vrot.lane.b32.xlu0 %v877, 1
        %v945 = vpop.permute.xlu0 %944
        %946 = vrot.lane.b32.xlu0 %v878, 1
        %v947 = vpop.permute.xlu0 %946
        %948 = vrot.lane.b32.xlu0 %v879, 1
        %v949 = vpop.permute.xlu0 %948
        %950 = vrot.lane.b32.xlu0 %v880, 1
        %v951 = vpop.permute.xlu0 %950
        %952 = vrot.lane.b32.xlu0 %v881, 1
        %v953 = vpop.permute.xlu0 %952
        %954 = vrot.lane.b32.xlu0 %v882, 1
        %v955 = vpop.permute.xlu0 %954
        %956 = vrot.lane.b32.xlu0 %v883, 1
        %v957 = vpop.permute.xlu0 %956
        %958 = vrot.lane.b32.xlu0 %v884, 1
        %v959 = vpop.permute.xlu0 %958
        %960 = vrot.lane.b32.xlu0 %v885, 1
        %v961 = vpop.permute.xlu0 %960
        %962 = vrot.lane.b32.xlu0 %v886, 1
        %v963 = vpop.permute.xlu0 %962
        %964 = vrot.lane.b32.xlu0 %v887, 1
        %v965 = vpop.permute.xlu0 %964
        %966 = vrot.lane.b32.xlu0 %v888, 1
        %v967 = vpop.permute.xlu0 %966
        %968 = vrot.lane.b32.xlu0 %v889, 1
        %v969 = vpop.permute.xlu0 %968
        %970 = vrot.lane.b32.xlu0 %v890, 1
        %v971 = vpop.permute.xlu0 %970
        %972 = vrot.lane.b32.xlu0 %v891, 1
        %v973 = vpop.permute.xlu0 %972
        %974 = vrot.lane.b32.xlu0 %v892, 1
        %v975 = vpop.permute.xlu0 %974
        %976 = vrot.lane.b32.xlu0 %v893, 1
        %v977 = vpop.permute.xlu0 %976
        %978 = vrot.lane.b32.xlu0 %v894, 1
        %v979 = vpop.permute.xlu0 %978
        %980 = vrot.lane.b32.xlu0 %v895, 1
        %v981 = vpop.permute.xlu0 %980
        %982 = vrot.lane.b32.xlu0 %v896, 1
        %v983 = vpop.permute.xlu0 %982
        %vm984 = vcmask 7168
        %v985 = vsel %vm984, %v945, %v947
        %v986 = vsel %vm984, %v947, %v949
        %v987 = vsel %vm984, %v949, %v951
        %v988 = vsel %vm984, %v951, %v953
        %v989 = vsel %vm984, %v955, %v957
        %v990 = vsel %vm984, %v957, %v959
        %v991 = vsel %vm984, %v959, %v961
        %v992 = vsel %vm984, %v961, %v963
        %v993 = vsel %vm984, %v965, %v967
        %v994 = vsel %vm984, %v967, %v969
        %v995 = vsel %vm984, %v969, %v971
        %v996 = vsel %vm984, %v971, %v973
        %v997 = vsel %vm984, %v975, %v977
        %v998 = vsel %vm984, %v977, %v979
        %v999 = vsel %vm984, %v979, %v981
        %v1000 = vsel %vm984, %v981, %v983
        %v1017 = vsel %vm920, %v985, 0.0
        %v1018 = vsel %vm921, %v986, 0.0
        %v1019 = vsel %vm922, %v987, 0.0
        %v1020 = vsel %vm923, %v988, 0.0
        %v1021 = vsel %vm920, %v989, 0.0
        %v1022 = vsel %vm921, %v990, 0.0
        %v1023 = vsel %vm922, %v991, 0.0
        %v1024 = vsel %vm923, %v992, 0.0
        %v1025 = vsel %vm920, %v993, 0.0
        %v1026 = vsel %vm921, %v994, 0.0
        %v1027 = vsel %vm922, %v995, 0.0
        %v1028 = vsel %vm923, %v996, 0.0
        %v1029 = vsel %vm920, %v997, 0.0
        %v1030 = vsel %vm921, %v998, 0.0
        %v1031 = vsel %vm922, %v999, 0.0
        %v1032 = vsel %vm923, %v1000, 0.0
        %1033 = vst [vmem:[#allocation2 + $0x180] sm:$0xff] %v1017
        %1034 = vst [vmem:[#allocation2 + $0x188] sm:$0xff] %v1018
        %1035 = vst [vmem:[#allocation2 + $0x190] sm:$0xff] %v1019
        %1036 = vst [vmem:[#allocation2 + $0x198] sm:$0xff] %v1020
        %1037 = vst [vmem:[#allocation2 + $0x1a0] sm:$0xff] %v1021
        %1038 = vst [vmem:[#allocation2 + $0x1a8] sm:$0xff] %v1022
        %1039 = vst [vmem:[#allocation2 + $0x1b0] sm:$0xff] %v1023
        %1040 = vst [vmem:[#allocation2 + $0x1b8] sm:$0xff] %v1024
        %1041 = vst [vmem:[#allocation2 + $0x1c0] sm:$0xff] %v1025
        %1042 = vst [vmem:[#allocation2 + $0x1c8] sm:$0xff] %v1026
        %1043 = vst [vmem:[#allocation2 + $0x1d0] sm:$0xff] %v1027
        %1044 = vst [vmem:[#allocation2 + $0x1d8] sm:$0xff] %v1028
        %1045 = vst [vmem:[#allocation2 + $0x1e0] sm:$0xff] %v1029
        %1046 = vst [vmem:[#allocation2 + $0x1e8] sm:$0xff] %v1030
        %1047 = vst [vmem:[#allocation2 + $0x1f0] sm:$0xff] %v1031
        %1048 = vst [vmem:[#allocation2 + $0x1f8] sm:$0xff] %v1032
        %v1049 = vld [vmem:[#allocation3 + $0x8] sm:$0xff]
        %v1050 = vld [vmem:[#allocation3 + $0x10] sm:$0xff]
        %v1051 = vld [vmem:[#allocation3 + $0x18] sm:$0xff]
        %v1052 = vld [vmem:[#allocation3 + $0x20] sm:$0xff]
        %v1053 = vld [vmem:[#allocation3 + $0x38] sm:$0xff]
        %v1054 = vld [vmem:[#allocation3 + $0x40] sm:$0xff]
        %v1055 = vld [vmem:[#allocation3 + $0x48] sm:$0xff]
        %v1056 = vld [vmem:[#allocation3 + $0x50] sm:$0xff]
        %v1057 = vld [vmem:[#allocation3 + $0x68] sm:$0xff]
        %v1058 = vld [vmem:[#allocation3 + $0x70] sm:$0xff]
        %v1059 = vld [vmem:[#allocation3 + $0x78] sm:$0xff]
        %v1060 = vld [vmem:[#allocation3 + $0x80] sm:$0xff]
        %v1061 = vld [vmem:[#allocation3 + $0x98] sm:$0xff]
        %v1062 = vld [vmem:[#allocation3 + $0xa0] sm:$0xff]
        %v1063 = vld [vmem:[#allocation3 + $0xa8] sm:$0xff]
        %v1064 = vld [vmem:[#allocation3 + $0xb0] sm:$0xff]
        %1065 = vst [vmem:[#allocation2 + $0x200] sm:$0xff] %v1049
        %1066 = vst [vmem:[#allocation2 + $0x208] sm:$0xff] %v1050
        %1067 = vst [vmem:[#allocation2 + $0x210] sm:$0xff] %v1051
        %1068 = vst [vmem:[#allocation2 + $0x218] sm:$0xff] %v1052
        %1069 = vst [vmem:[#allocation2 + $0x220] sm:$0xff] %v1053
        %1070 = vst [vmem:[#allocation2 + $0x228] sm:$0xff] %v1054
        %1071 = vst [vmem:[#allocation2 + $0x230] sm:$0xff] %v1055
        %1072 = vst [vmem:[#allocation2 + $0x238] sm:$0xff] %v1056
        %1073 = vst [vmem:[#allocation2 + $0x240] sm:$0xff] %v1057
        %1074 = vst [vmem:[#allocation2 + $0x248] sm:$0xff] %v1058
        %1075 = vst [vmem:[#allocation2 + $0x250] sm:$0xff] %v1059
        %1076 = vst [vmem:[#allocation2 + $0x258] sm:$0xff] %v1060
        %1077 = vst [vmem:[#allocation2 + $0x260] sm:$0xff] %v1061
        %1078 = vst [vmem:[#allocation2 + $0x268] sm:$0xff] %v1062
        %1079 = vst [vmem:[#allocation2 + $0x270] sm:$0xff] %v1063
        %1080 = vst [vmem:[#allocation2 + $0x278] sm:$0xff] %v1064
        %v1081 = vld [vmem:[#allocation3 + $0x8] sm:$0xff]
        %v1082 = vld [vmem:[#allocation3 + $0x10] sm:$0xff]
        %v1083 = vld [vmem:[#allocation3 + $0x18] sm:$0xff]
        %v1084 = vld [vmem:[#allocation3 + $0x20] sm:$0xff]
        %v1085 = vld [vmem:[#allocation3 + $0x28] sm:$0xff]
        %v1086 = vld [vmem:[#allocation3 + $0x38] sm:$0xff]
        %v1087 = vld [vmem:[#allocation3 + $0x40] sm:$0xff]
        %v1088 = vld [vmem:[#allocation3 + $0x48] sm:$0xff]
        %v1089 = vld [vmem:[#allocation3 + $0x50] sm:$0xff]
        %v1090 = vld [vmem:[#allocation3 + $0x58] sm:$0xff]
        %v1091 = vld [vmem:[#allocation3 + $0x68] sm:$0xff]
        %v1092 = vld [vmem:[#allocation3 + $0x70] sm:$0xff]
        %v1093 = vld [vmem:[#allocation3 + $0x78] sm:$0xff]
        %v1094 = vld [vmem:[#allocation3 + $0x80] sm:$0xff]
        %v1095 = vld [vmem:[#allocation3 + $0x88] sm:$0xff]
        %v1096 = vld [vmem:[#allocation3 + $0x98] sm:$0xff]
        %v1097 = vld [vmem:[#allocation3 + $0xa0] sm:$0xff]
        %v1098 = vld [vmem:[#allocation3 + $0xa8] sm:$0xff]
        %v1099 = vld [vmem:[#allocation3 + $0xb0] sm:$0xff]
        %v1100 = vld [vmem:[#allocation3 + $0xb8] sm:$0xff]
        %s1101 = scalar_lea.vmem [#allocation10], 5
        %v1102 = vld [vmem:[%s1101] ss:$8 sm:$0xf]
        %v1104 = vlaneseq
        %v1105 = vshrl.u32 %v1104, 7
        %v1106 = vsub.s32 0, %v1105
        %v1107 = vrot.slane %v1102, %v1106
        %v1108 = vlaneseq
        %v1109 = vshrl.u32 %v1108, 7
        %v1110 = vsub.s32 1, %v1109
        %v1111 = vrot.slane %v1102, %v1110
        %v1112 = vlaneseq
        %v1113 = vshrl.u32 %v1112, 7
        %v1114 = vsub.s32 2, %v1113
        %v1115 = vrot.slane %v1102, %v1114
        %v1116 = vlaneseq
        %v1117 = vshrl.u32 %v1116, 7
        %v1118 = vsub.s32 3, %v1117
        %v1119 = vrot.slane %v1102, %v1118
        %vm1124 = vcmp.gt.f32.partialorder %v1107, 0.5
        %vm1125 = vcmp.gt.f32.partialorder %v1111, 0.5
        %vm1126 = vcmp.gt.f32.partialorder %v1115, 0.5
        %vm1127 = vcmp.gt.f32.partialorder %v1119, 0.5
        %1148 = vrot.lane.b32.xlu0 %v1081, 127
        %v1149 = vpop.permute.xlu0 %1148
        %1150 = vrot.lane.b32.xlu0 %v1082, 127
        %v1151 = vpop.permute.xlu0 %1150
        %1152 = vrot.lane.b32.xlu0 %v1083, 127
        %v1153 = vpop.permute.xlu0 %1152
        %1154 = vrot.lane.b32.xlu0 %v1084, 127
        %v1155 = vpop.permute.xlu0 %1154
        %1156 = vrot.lane.b32.xlu0 %v1085, 127
        %v1157 = vpop.permute.xlu0 %1156
        %1158 = vrot.lane.b32.xlu0 %v1086, 127
        %v1159 = vpop.permute.xlu0 %1158
        %1160 = vrot.lane.b32.xlu0 %v1087, 127
        %v1161 = vpop.permute.xlu0 %1160
        %1162 = vrot.lane.b32.xlu0 %v1088, 127
        %v1163 = vpop.permute.xlu0 %1162
        %1164 = vrot.lane.b32.xlu0 %v1089, 127
        %v1165 = vpop.permute.xlu0 %1164
        %1166 = vrot.lane.b32.xlu0 %v1090, 127
        %v1167 = vpop.permute.xlu0 %1166
        %1168 = vrot.lane.b32.xlu0 %v1091, 127
        %v1169 = vpop.permute.xlu0 %1168
        %1170 = vrot.lane.b32.xlu0 %v1092, 127
        %v1171 = vpop.permute.xlu0 %1170
        %1172 = vrot.lane.b32.xlu0 %v1093, 127
        %v1173 = vpop.permute.xlu0 %1172
        %1174 = vrot.lane.b32.xlu0 %v1094, 127
        %v1175 = vpop.permute.xlu0 %1174
        %1176 = vrot.lane.b32.xlu0 %v1095, 127
        %v1177 = vpop.permute.xlu0 %1176
        %1178 = vrot.lane.b32.xlu0 %v1096, 127
        %v1179 = vpop.permute.xlu0 %1178
        %1180 = vrot.lane.b32.xlu0 %v1097, 127
        %v1181 = vpop.permute.xlu0 %1180
        %1182 = vrot.lane.b32.xlu0 %v1098, 127
        %v1183 = vpop.permute.xlu0 %1182
        %1184 = vrot.lane.b32.xlu0 %v1099, 127
        %v1185 = vpop.permute.xlu0 %1184
        %1186 = vrot.lane.b32.xlu0 %v1100, 127
        %v1187 = vpop.permute.xlu0 %1186
        %vm1188 = vcmask 1039360
        %v1189 = vsel %vm1188, %v1149, %v1151
        %v1190 = vsel %vm1188, %v1151, %v1153
        %v1191 = vsel %vm1188, %v1153, %v1155
        %v1192 = vsel %vm1188, %v1155, %v1157
        %v1193 = vsel %vm1188, %v1159, %v1161
        %v1194 = vsel %vm1188, %v1161, %v1163
        %v1195 = vsel %vm1188, %v1163, %v1165
        %v1196 = vsel %vm1188, %v1165, %v1167
        %v1197 = vsel %vm1188, %v1169, %v1171
        %v1198 = vsel %vm1188, %v1171, %v1173
        %v1199 = vsel %vm1188, %v1173, %v1175
        %v1200 = vsel %vm1188, %v1175, %v1177
        %v1201 = vsel %vm1188, %v1179, %v1181
        %v1202 = vsel %vm1188, %v1181, %v1183
        %v1203 = vsel %vm1188, %v1183, %v1185
        %v1204 = vsel %vm1188, %v1185, %v1187
        %v1221 = vsel %vm1124, %v1189, 0.0
        %v1222 = vsel %vm1125, %v1190, 0.0
        %v1223 = vsel %vm1126, %v1191, 0.0
        %v1224 = vsel %vm1127, %v1192, 0.0
        %v1225 = vsel %vm1124, %v1193, 0.0
        %v1226 = vsel %vm1125, %v1194, 0.0
        %v1227 = vsel %vm1126, %v1195, 0.0
        %v1228 = vsel %vm1127, %v1196, 0.0
        %v1229 = vsel %vm1124, %v1197, 0.0
        %v1230 = vsel %vm1125, %v1198, 0.0
        %v1231 = vsel %vm1126, %v1199, 0.0
        %v1232 = vsel %vm1127, %v1200, 0.0
        %v1233 = vsel %vm1124, %v1201, 0.0
        %v1234 = vsel %vm1125, %v1202, 0.0
        %v1235 = vsel %vm1126, %v1203, 0.0
        %v1236 = vsel %vm1127, %v1204, 0.0
        %1237 = vst [vmem:[#allocation2 + $0x280] sm:$0xff] %v1221
        %1238 = vst [vmem:[#allocation2 + $0x288] sm:$0xff] %v1222
        %1239 = vst [vmem:[#allocation2 + $0x290] sm:$0xff] %v1223
        %1240 = vst [vmem:[#allocation2 + $0x298] sm:$0xff] %v1224
        %1241 = vst [vmem:[#allocation2 + $0x2a0] sm:$0xff] %v1225
        %1242 = vst [vmem:[#allocation2 + $0x2a8] sm:$0xff] %v1226
        %1243 = vst [vmem:[#allocation2 + $0x2b0] sm:$0xff] %v1227
        %1244 = vst [vmem:[#allocation2 + $0x2b8] sm:$0xff] %v1228
        %1245 = vst [vmem:[#allocation2 + $0x2c0] sm:$0xff] %v1229
        %1246 = vst [vmem:[#allocation2 + $0x2c8] sm:$0xff] %v1230
        %1247 = vst [vmem:[#allocation2 + $0x2d0] sm:$0xff] %v1231
        %1248 = vst [vmem:[#allocation2 + $0x2d8] sm:$0xff] %v1232
        %1249 = vst [vmem:[#allocation2 + $0x2e0] sm:$0xff] %v1233
        %1250 = vst [vmem:[#allocation2 + $0x2e8] sm:$0xff] %v1234
        %1251 = vst [vmem:[#allocation2 + $0x2f0] sm:$0xff] %v1235
        %1252 = vst [vmem:[#allocation2 + $0x2f8] sm:$0xff] %v1236
        %v1253 = vld [vmem:[#allocation3 + $0x8] sm:$0xff]
        %v1254 = vld [vmem:[#allocation3 + $0x10] sm:$0xff]
        %v1255 = vld [vmem:[#allocation3 + $0x18] sm:$0xff]
        %v1256 = vld [vmem:[#allocation3 + $0x20] sm:$0xff]
        %v1257 = vld [vmem:[#allocation3 + $0x28] sm:$0xff]
        %v1258 = vld [vmem:[#allocation3 + $0x38] sm:$0xff]
        %v1259 = vld [vmem:[#allocation3 + $0x40] sm:$0xff]
        %v1260 = vld [vmem:[#allocation3 + $0x48] sm:$0xff]
        %v1261 = vld [vmem:[#allocation3 + $0x50] sm:$0xff]
        %v1262 = vld [vmem:[#allocation3 + $0x58] sm:$0xff]
        %v1263 = vld [vmem:[#allocation3 + $0x68] sm:$0xff]
        %v1264 = vld [vmem:[#allocation3 + $0x70] sm:$0xff]
        %v1265 = vld [vmem:[#allocation3 + $0x78] sm:$0xff]
        %v1266 = vld [vmem:[#allocation3 + $0x80] sm:$0xff]
        %v1267 = vld [vmem:[#allocation3 + $0x88] sm:$0xff]
        %v1268 = vld [vmem:[#allocation3 + $0x98] sm:$0xff]
        %v1269 = vld [vmem:[#allocation3 + $0xa0] sm:$0xff]
        %v1270 = vld [vmem:[#allocation3 + $0xa8] sm:$0xff]
        %v1271 = vld [vmem:[#allocation3 + $0xb0] sm:$0xff]
        %v1272 = vld [vmem:[#allocation3 + $0xb8] sm:$0xff]
        %s1273 = scalar_lea.vmem [#allocation10], 6
        %v1274 = vld [vmem:[%s1273] ss:$8 sm:$0xf]
        %v1276 = vlaneseq
        %v1277 = vshrl.u32 %v1276, 7
        %v1278 = vsub.s32 0, %v1277
        %v1279 = vrot.slane %v1274, %v1278
        %v1280 = vlaneseq
        %v1281 = vshrl.u32 %v1280, 7
        %v1282 = vsub.s32 1, %v1281
        %v1283 = vrot.slane %v1274, %v1282
        %v1284 = vlaneseq
        %v1285 = vshrl.u32 %v1284, 7
        %v1286 = vsub.s32 2, %v1285
        %v1287 = vrot.slane %v1274, %v1286
        %v1288 = vlaneseq
        %v1289 = vshrl.u32 %v1288, 7
        %v1290 = vsub.s32 3, %v1289
        %v1291 = vrot.slane %v1274, %v1290
        %vm1296 = vcmp.gt.f32.partialorder %v1279, 0.5
        %vm1297 = vcmp.gt.f32.partialorder %v1283, 0.5
        %vm1298 = vcmp.gt.f32.partialorder %v1287, 0.5
        %vm1299 = vcmp.gt.f32.partialorder %v1291, 0.5
        %1320 = vrot.lane.b32.xlu0 %v1253, 113
        %v1321 = vpop.permute.xlu0 %1320
        %1322 = vrot.lane.b32.xlu0 %v1254, 113
        %v1323 = vpop.permute.xlu0 %1322
        %1324 = vrot.lane.b32.xlu0 %v1255, 113
        %v1325 = vpop.permute.xlu0 %1324
        %1326 = vrot.lane.b32.xlu0 %v1256, 113
        %v1327 = vpop.permute.xlu0 %1326
        %1328 = vrot.lane.b32.xlu0 %v1257, 113
        %v1329 = vpop.permute.xlu0 %1328
        %1330 = vrot.lane.b32.xlu0 %v1258, 113
        %v1331 = vpop.permute.xlu0 %1330
        %1332 = vrot.lane.b32.xlu0 %v1259, 113
        %v1333 = vpop.permute.xlu0 %1332
        %1334 = vrot.lane.b32.xlu0 %v1260, 113
        %v1335 = vpop.permute.xlu0 %1334
        %1336 = vrot.lane.b32.xlu0 %v1261, 113
        %v1337 = vpop.permute.xlu0 %1336
        %1338 = vrot.lane.b32.xlu0 %v1262, 113
        %v1339 = vpop.permute.xlu0 %1338
        %1340 = vrot.lane.b32.xlu0 %v1263, 113
        %v1341 = vpop.permute.xlu0 %1340
        %1342 = vrot.lane.b32.xlu0 %v1264, 113
        %v1343 = vpop.permute.xlu0 %1342
        %1344 = vrot.lane.b32.xlu0 %v1265, 113
        %v1345 = vpop.permute.xlu0 %1344
        %1346 = vrot.lane.b32.xlu0 %v1266, 113
        %v1347 = vpop.permute.xlu0 %1346
        %1348 = vrot.lane.b32.xlu0 %v1267, 113
        %v1349 = vpop.permute.xlu0 %1348
        %1350 = vrot.lane.b32.xlu0 %v1268, 113
        %v1351 = vpop.permute.xlu0 %1350
        %1352 = vrot.lane.b32.xlu0 %v1269, 113
        %v1353 = vpop.permute.xlu0 %1352
        %1354 = vrot.lane.b32.xlu0 %v1270, 113
        %v1355 = vpop.permute.xlu0 %1354
        %1356 = vrot.lane.b32.xlu0 %v1271, 113
        %v1357 = vpop.permute.xlu0 %1356
        %1358 = vrot.lane.b32.xlu0 %v1272, 113
        %v1359 = vpop.permute.xlu0 %1358
        %vm1360 = vcmask 924672
        %v1361 = vsel %vm1360, %v1321, %v1323
        %v1362 = vsel %vm1360, %v1323, %v1325
        %v1363 = vsel %vm1360, %v1325, %v1327
        %v1364 = vsel %vm1360, %v1327, %v1329
        %v1365 = vsel %vm1360, %v1331, %v1333
        %v1366 = vsel %vm1360, %v1333, %v1335
        %v1367 = vsel %vm1360, %v1335, %v1337
        %v1368 = vsel %vm1360, %v1337, %v1339
        %v1369 = vsel %vm1360, %v1341, %v1343
        %v1370 = vsel %vm1360, %v1343, %v1345
        %v1371 = vsel %vm1360, %v1345, %v1347
        %v1372 = vsel %vm1360, %v1347, %v1349
        %v1373 = vsel %vm1360, %v1351, %v1353
        %v1374 = vsel %vm1360, %v1353, %v1355
        %v1375 = vsel %vm1360, %v1355, %v1357
        %v1376 = vsel %vm1360, %v1357, %v1359
        %v1393 = vsel %vm1296, %v1361, 0.0
        %v1394 = vsel %vm1297, %v1362, 0.0
        %v1395 = vsel %vm1298, %v1363, 0.0
        %v1396 = vsel %vm1299, %v1364, 0.0
        %v1397 = vsel %vm1296, %v1365, 0.0
        %v1398 = vsel %vm1297, %v1366, 0.0
        %v1399 = vsel %vm1298, %v1367, 0.0
        %v1400 = vsel %vm1299, %v1368, 0.0
        %v1401 = vsel %vm1296, %v1369, 0.0
        %v1402 = vsel %vm1297, %v1370, 0.0
        %v1403 = vsel %vm1298, %v1371, 0.0
        %v1404 = vsel %vm1299, %v1372, 0.0
        %v1405 = vsel %vm1296, %v1373, 0.0
        %v1406 = vsel %vm1297, %v1374, 0.0
        %v1407 = vsel %vm1298, %v1375, 0.0
        %v1408 = vsel %vm1299, %v1376, 0.0
        %1409 = vst [vmem:[#allocation2 + $0x300] sm:$0xff] %v1393
        %1410 = vst [vmem:[#allocation2 + $0x308] sm:$0xff] %v1394
        %1411 = vst [vmem:[#allocation2 + $0x310] sm:$0xff] %v1395
        %1412 = vst [vmem:[#allocation2 + $0x318] sm:$0xff] %v1396
        %1413 = vst [vmem:[#allocation2 + $0x320] sm:$0xff] %v1397
        %1414 = vst [vmem:[#allocation2 + $0x328] sm:$0xff] %v1398
        %1415 = vst [vmem:[#allocation2 + $0x330] sm:$0xff] %v1399
        %1416 = vst [vmem:[#allocation2 + $0x338] sm:$0xff] %v1400
        %1417 = vst [vmem:[#allocation2 + $0x340] sm:$0xff] %v1401
        %1418 = vst [vmem:[#allocation2 + $0x348] sm:$0xff] %v1402
        %1419 = vst [vmem:[#allocation2 + $0x350] sm:$0xff] %v1403
        %1420 = vst [vmem:[#allocation2 + $0x358] sm:$0xff] %v1404
        %1421 = vst [vmem:[#allocation2 + $0x360] sm:$0xff] %v1405
        %1422 = vst [vmem:[#allocation2 + $0x368] sm:$0xff] %v1406
        %1423 = vst [vmem:[#allocation2 + $0x370] sm:$0xff] %v1407
        %1424 = vst [vmem:[#allocation2 + $0x378] sm:$0xff] %v1408
        %v1425 = vld [vmem:[#allocation3 + $0x8] sm:$0xff]
        %v1426 = vld [vmem:[#allocation3 + $0x10] sm:$0xff]
        %v1427 = vld [vmem:[#allocation3 + $0x18] sm:$0xff]
        %v1428 = vld [vmem:[#allocation3 + $0x20] sm:$0xff]
        %v1429 = vld [vmem:[#allocation3 + $0x28] sm:$0xff]
        %v1430 = vld [vmem:[#allocation3 + $0x38] sm:$0xff]
        %v1431 = vld [vmem:[#allocation3 + $0x40] sm:$0xff]
        %v1432 = vld [vmem:[#allocation3 + $0x48] sm:$0xff]
        %v1433 = vld [vmem:[#allocation3 + $0x50] sm:$0xff]
        %v1434 = vld [vmem:[#allocation3 + $0x58] sm:$0xff]
        %v1435 = vld [vmem:[#allocation3 + $0x68] sm:$0xff]
        %v1436 = vld [vmem:[#allocation3 + $0x70] sm:$0xff]
        %v1437 = vld [vmem:[#allocation3 + $0x78] sm:$0xff]
        %v1438 = vld [vmem:[#allocation3 + $0x80] sm:$0xff]
        %v1439 = vld [vmem:[#allocation3 + $0x88] sm:$0xff]
        %v1440 = vld [vmem:[#allocation3 + $0x98] sm:$0xff]
        %v1441 = vld [vmem:[#allocation3 + $0xa0] sm:$0xff]
        %v1442 = vld [vmem:[#allocation3 + $0xa8] sm:$0xff]
        %v1443 = vld [vmem:[#allocation3 + $0xb0] sm:$0xff]
        %v1444 = vld [vmem:[#allocation3 + $0xb8] sm:$0xff]
        %s1445 = scalar_lea.vmem [#allocation10], 7
        %v1446 = vld [vmem:[%s1445] ss:$8 sm:$0xf]
        %v1448 = vlaneseq
        %v1449 = vshrl.u32 %v1448, 7
        %v1450 = vsub.s32 0, %v1449
        %v1451 = vrot.slane %v1446, %v1450
        %v1452 = vlaneseq
        %v1453 = vshrl.u32 %v1452, 7
        %v1454 = vsub.s32 1, %v1453
        %v1455 = vrot.slane %v1446, %v1454
        %v1456 = vlaneseq
        %v1457 = vshrl.u32 %v1456, 7
        %v1458 = vsub.s32 2, %v1457
        %v1459 = vrot.slane %v1446, %v1458
        %v1460 = vlaneseq
        %v1461 = vshrl.u32 %v1460, 7
        %v1462 = vsub.s32 3, %v1461
        %v1463 = vrot.slane %v1446, %v1462
        %vm1468 = vcmp.gt.f32.partialorder %v1451, 0.5
        %vm1469 = vcmp.gt.f32.partialorder %v1455, 0.5
        %vm1470 = vcmp.gt.f32.partialorder %v1459, 0.5
        %vm1471 = vcmp.gt.f32.partialorder %v1463, 0.5
        %1492 = vrot.lane.b32.xlu0 %v1425, 112
        %v1493 = vpop.permute.xlu0 %1492
        %1494 = vrot.lane.b32.xlu0 %v1426, 112
        %v1495 = vpop.permute.xlu0 %1494
        %1496 = vrot.lane.b32.xlu0 %v1427, 112
        %v1497 = vpop.permute.xlu0 %1496
        %1498 = vrot.lane.b32.xlu0 %v1428, 112
        %v1499 = vpop.permute.xlu0 %1498
        %1500 = vrot.lane.b32.xlu0 %v1429, 112
        %v1501 = vpop.permute.xlu0 %1500
        %1502 = vrot.lane.b32.xlu0 %v1430, 112
        %v1503 = vpop.permute.xlu0 %1502
        %1504 = vrot.lane.b32.xlu0 %v1431, 112
        %v1505 = vpop.permute.xlu0 %1504
        %1506 = vrot.lane.b32.xlu0 %v1432, 112
        %v1507 = vpop.permute.xlu0 %1506
        %1508 = vrot.lane.b32.xlu0 %v1433, 112
        %v1509 = vpop.permute.xlu0 %1508
        %1510 = vrot.lane.b32.xlu0 %v1434, 112
        %v1511 = vpop.permute.xlu0 %1510
        %1512 = vrot.lane.b32.xlu0 %v1435, 112
        %v1513 = vpop.permute.xlu0 %1512
        %1514 = vrot.lane.b32.xlu0 %v1436, 112
        %v1515 = vpop.permute.xlu0 %1514
        %1516 = vrot.lane.b32.xlu0 %v1437, 112
        %v1517 = vpop.permute.xlu0 %1516
        %1518 = vrot.lane.b32.xlu0 %v1438, 112
        %v1519 = vpop.permute.xlu0 %1518
        %1520 = vrot.lane.b32.xlu0 %v1439, 112
        %v1521 = vpop.permute.xlu0 %1520
        %1522 = vrot.lane.b32.xlu0 %v1440, 112
        %v1523 = vpop.permute.xlu0 %1522
        %1524 = vrot.lane.b32.xlu0 %v1441, 112
        %v1525 = vpop.permute.xlu0 %1524
        %1526 = vrot.lane.b32.xlu0 %v1442, 112
        %v1527 = vpop.permute.xlu0 %1526
        %1528 = vrot.lane.b32.xlu0 %v1443, 112
        %v1529 = vpop.permute.xlu0 %1528
        %1530 = vrot.lane.b32.xlu0 %v1444, 112
        %v1531 = vpop.permute.xlu0 %1530
        %vm1532 = vcmask 916480
        %v1533 = vsel %vm1532, %v1493, %v1495
        %v1534 = vsel %vm1532, %v1495, %v1497
        %v1535 = vsel %vm1532, %v1497, %v1499
        %v1536 = vsel %vm1532, %v1499, %v1501
        %v1537 = vsel %vm1532, %v1503, %v1505
        %v1538 = vsel %vm1532, %v1505, %v1507
        %v1539 = vsel %vm1532, %v1507, %v1509
        %v1540 = vsel %vm1532, %v1509, %v1511
        %v1541 = vsel %vm1532, %v1513, %v1515
        %v1542 = vsel %vm1532, %v1515, %v1517
        %v1543 = vsel %vm1532, %v1517, %v1519
        %v1544 = vsel %vm1532, %v1519, %v1521
        %v1545 = vsel %vm1532, %v1523, %v1525
        %v1546 = vsel %vm1532, %v1525, %v1527
        %v1547 = vsel %vm1532, %v1527, %v1529
        %v1548 = vsel %vm1532, %v1529, %v1531
        %v1565 = vsel %vm1468, %v1533, 0.0
        %v1566 = vsel %vm1469, %v1534, 0.0
        %v1567 = vsel %vm1470, %v1535, 0.0
        %v1568 = vsel %vm1471, %v1536, 0.0
        %v1569 = vsel %vm1468, %v1537, 0.0
        %v1570 = vsel %vm1469, %v1538, 0.0
        %v1571 = vsel %vm1470, %v1539, 0.0
        %v1572 = vsel %vm1471, %v1540, 0.0
        %v1573 = vsel %vm1468, %v1541, 0.0
        %v1574 = vsel %vm1469, %v1542, 0.0
        %v1575 = vsel %vm1470, %v1543, 0.0
        %v1576 = vsel %vm1471, %v1544, 0.0
        %v1577 = vsel %vm1468, %v1545, 0.0
        %v1578 = vsel %vm1469, %v1546, 0.0
        %v1579 = vsel %vm1470, %v1547, 0.0
        %v1580 = vsel %vm1471, %v1548, 0.0
        %1581 = vst [vmem:[#allocation2 + $0x380] sm:$0xff] %v1565
        %1582 = vst [vmem:[#allocation2 + $0x388] sm:$0xff] %v1566
        %1583 = vst [vmem:[#allocation2 + $0x390] sm:$0xff] %v1567
        %1584 = vst [vmem:[#allocation2 + $0x398] sm:$0xff] %v1568
        %1585 = vst [vmem:[#allocation2 + $0x3a0] sm:$0xff] %v1569
        %1586 = vst [vmem:[#allocation2 + $0x3a8] sm:$0xff] %v1570
        %1587 = vst [vmem:[#allocation2 + $0x3b0] sm:$0xff] %v1571
        %1588 = vst [vmem:[#allocation2 + $0x3b8] sm:$0xff] %v1572
        %1589 = vst [vmem:[#allocation2 + $0x3c0] sm:$0xff] %v1573
        %1590 = vst [vmem:[#allocation2 + $0x3c8] sm:$0xff] %v1574
        %1591 = vst [vmem:[#allocation2 + $0x3d0] sm:$0xff] %v1575
        %1592 = vst [vmem:[#allocation2 + $0x3d8] sm:$0xff] %v1576
        %1593 = vst [vmem:[#allocation2 + $0x3e0] sm:$0xff] %v1577
        %1594 = vst [vmem:[#allocation2 + $0x3e8] sm:$0xff] %v1578
        %1595 = vst [vmem:[#allocation2 + $0x3f0] sm:$0xff] %v1579
        %1596 = vst [vmem:[#allocation2 + $0x3f8] sm:$0xff] %v1580
        %v1597 = vld [vmem:[#allocation3 + $0x8] sm:$0xff]
        %v1598 = vld [vmem:[#allocation3 + $0x10] sm:$0xff]
        %v1599 = vld [vmem:[#allocation3 + $0x18] sm:$0xff]
        %v1600 = vld [vmem:[#allocation3 + $0x20] sm:$0xff]
        %v1601 = vld [vmem:[#allocation3 + $0x28] sm:$0xff]
        %v1602 = vld [vmem:[#allocation3 + $0x38] sm:$0xff]
        %v1603 = vld [vmem:[#allocation3 + $0x40] sm:$0xff]
        %v1604 = vld [vmem:[#allocation3 + $0x48] sm:$0xff]
        %v1605 = vld [vmem:[#allocation3 + $0x50] sm:$0xff]
        %v1606 = vld [vmem:[#allocation3 + $0x58] sm:$0xff]
        %v1607 = vld [vmem:[#allocation3 + $0x68] sm:$0xff]
        %v1608 = vld [vmem:[#allocation3 + $0x70] sm:$0xff]
        %v1609 = vld [vmem:[#allocation3 + $0x78] sm:$0xff]
        %v1610 = vld [vmem:[#allocation3 + $0x80] sm:$0xff]
        %v1611 = vld [vmem:[#allocation3 + $0x88] sm:$0xff]
        %v1612 = vld [vmem:[#allocation3 + $0x98] sm:$0xff]
        %v1613 = vld [vmem:[#allocation3 + $0xa0] sm:$0xff]
        %v1614 = vld [vmem:[#allocation3 + $0xa8] sm:$0xff]
        %v1615 = vld [vmem:[#allocation3 + $0xb0] sm:$0xff]
        %v1616 = vld [vmem:[#allocation3 + $0xb8] sm:$0xff]
        %s1617 = scalar_lea.vmem [#allocation10], 32
        %v1618 = vld [vmem:[%s1617] ss:$8 sm:$0xf]
        %v1620 = vlaneseq
        %v1621 = vshrl.u32 %v1620, 7
        %v1622 = vsub.s32 0, %v1621
        %v1623 = vrot.slane %v1618, %v1622
        %v1624 = vlaneseq
        %v1625 = vshrl.u32 %v1624, 7
        %v1626 = vsub.s32 1, %v1625
        %v1627 = vrot.slane %v1618, %v1626
        %v1628 = vlaneseq
        %v1629 = vshrl.u32 %v1628, 7
        %v1630 = vsub.s32 2, %v1629
        %v1631 = vrot.slane %v1618, %v1630
        %v1632 = vlaneseq
        %v1633 = vshrl.u32 %v1632, 7
        %v1634 = vsub.s32 3, %v1633
        %v1635 = vrot.slane %v1618, %v1634
        %vm1640 = vcmp.gt.f32.partialorder %v1623, 0.5
        %vm1641 = vcmp.gt.f32.partialorder %v1627, 0.5
        %vm1642 = vcmp.gt.f32.partialorder %v1631, 0.5
        %vm1643 = vcmp.gt.f32.partialorder %v1635, 0.5
        %1664 = vrot.lane.b32.xlu0 %v1597, 111
        %v1665 = vpop.permute.xlu0 %1664
        %1666 = vrot.lane.b32.xlu0 %v1598, 111
        %v1667 = vpop.permute.xlu0 %1666
        %1668 = vrot.lane.b32.xlu0 %v1599, 111
        %v1669 = vpop.permute.xlu0 %1668
        %1670 = vrot.lane.b32.xlu0 %v1600, 111
        %v1671 = vpop.permute.xlu0 %1670
        %1672 = vrot.lane.b32.xlu0 %v1601, 111
        %v1673 = vpop.permute.xlu0 %1672
        %1674 = vrot.lane.b32.xlu0 %v1602, 111
        %v1675 = vpop.permute.xlu0 %1674
        %1676 = vrot.lane.b32.xlu0 %v1603, 111
        %v1677 = vpop.permute.xlu0 %1676
        %1678 = vrot.lane.b32.xlu0 %v1604, 111
        %v1679 = vpop.permute.xlu0 %1678
        %1680 = vrot.lane.b32.xlu0 %v1605, 111
        %v1681 = vpop.permute.xlu0 %1680
        %1682 = vrot.lane.b32.xlu0 %v1606, 111
        %v1683 = vpop.permute.xlu0 %1682
        %1684 = vrot.lane.b32.xlu0 %v1607, 111
        %v1685 = vpop.permute.xlu0 %1684
        %1686 = vrot.lane.b32.xlu0 %v1608, 111
        %v1687 = vpop.permute.xlu0 %1686
        %1688 = vrot.lane.b32.xlu0 %v1609, 111
        %v1689 = vpop.permute.xlu0 %1688
        %1690 = vrot.lane.b32.xlu0 %v1610, 111
        %v1691 = vpop.permute.xlu0 %1690
        %1692 = vrot.lane.b32.xlu0 %v1611, 111
        %v1693 = vpop.permute.xlu0 %1692
        %1694 = vrot.lane.b32.xlu0 %v1612, 111
        %v1695 = vpop.permute.xlu0 %1694
        %1696 = vrot.lane.b32.xlu0 %v1613, 111
        %v1697 = vpop.permute.xlu0 %1696
        %1698 = vrot.lane.b32.xlu0 %v1614, 111
        %v1699 = vpop.permute.xlu0 %1698
        %1700 = vrot.lane.b32.xlu0 %v1615, 111
        %v1701 = vpop.permute.xlu0 %1700
        %1702 = vrot.lane.b32.xlu0 %v1616, 111
        %v1703 = vpop.permute.xlu0 %1702
        %vm1704 = vcmask 908288
        %v1705 = vsel %vm1704, %v1665, %v1667
        %v1706 = vsel %vm1704, %v1667, %v1669
        %v1707 = vsel %vm1704, %v1669, %v1671
        %v1708 = vsel %vm1704, %v1671, %v1673
        %v1709 = vsel %vm1704, %v1675, %v1677
        %v1710 = vsel %vm1704, %v1677, %v1679
        %v1711 = vsel %vm1704, %v1679, %v1681
        %v1712 = vsel %vm1704, %v1681, %v1683
        %v1713 = vsel %vm1704, %v1685, %v1687
        %v1714 = vsel %vm1704, %v1687, %v1689
        %v1715 = vsel %vm1704, %v1689, %v1691
        %v1716 = vsel %vm1704, %v1691, %v1693
        %v1717 = vsel %vm1704, %v1695, %v1697
        %v1718 = vsel %vm1704, %v1697, %v1699
        %v1719 = vsel %vm1704, %v1699, %v1701
        %v1720 = vsel %vm1704, %v1701, %v1703
        %v1737 = vsel %vm1640, %v1705, 0.0
        %v1738 = vsel %vm1641, %v1706, 0.0
        %v1739 = vsel %vm1642, %v1707, 0.0
        %v1740 = vsel %vm1643, %v1708, 0.0
        %v1741 = vsel %vm1640, %v1709, 0.0
        %v1742 = vsel %vm1641, %v1710, 0.0
        %v1743 = vsel %vm1642, %v1711, 0.0
        %v1744 = vsel %vm1643, %v1712, 0.0
        %v1745 = vsel %vm1640, %v1713, 0.0
        %v1746 = vsel %vm1641, %v1714, 0.0
        %v1747 = vsel %vm1642, %v1715, 0.0
        %v1748 = vsel %vm1643, %v1716, 0.0
        %v1749 = vsel %vm1640, %v1717, 0.0
        %v1750 = vsel %vm1641, %v1718, 0.0
        %v1751 = vsel %vm1642, %v1719, 0.0
        %v1752 = vsel %vm1643, %v1720, 0.0
        %1753 = vst [vmem:[#allocation2 + $0x400] sm:$0xff] %v1737
        %1754 = vst [vmem:[#allocation2 + $0x408] sm:$0xff] %v1738
        %1755 = vst [vmem:[#allocation2 + $0x410] sm:$0xff] %v1739
        %1756 = vst [vmem:[#allocation2 + $0x418] sm:$0xff] %v1740
        %1757 = vst [vmem:[#allocation2 + $0x420] sm:$0xff] %v1741
        %1758 = vst [vmem:[#allocation2 + $0x428] sm:$0xff] %v1742
        %1759 = vst [vmem:[#allocation2 + $0x430] sm:$0xff] %v1743
        %1760 = vst [vmem:[#allocation2 + $0x438] sm:$0xff] %v1744
        %1761 = vst [vmem:[#allocation2 + $0x440] sm:$0xff] %v1745
        %1762 = vst [vmem:[#allocation2 + $0x448] sm:$0xff] %v1746
        %1763 = vst [vmem:[#allocation2 + $0x450] sm:$0xff] %v1747
        %1764 = vst [vmem:[#allocation2 + $0x458] sm:$0xff] %v1748
        %1765 = vst [vmem:[#allocation2 + $0x460] sm:$0xff] %v1749
        %1766 = vst [vmem:[#allocation2 + $0x468] sm:$0xff] %v1750
        %1767 = vst [vmem:[#allocation2 + $0x470] sm:$0xff] %v1751
        %1768 = vst [vmem:[#allocation2 + $0x478] sm:$0xff] %v1752
        %v1769 = vld [vmem:[%s1] sm:$0xff]
        %v1770 = vld [vmem:[%s1 + $0x8] sm:$0xff]
        %v1771 = vld [vmem:[%s1 + $0x10] sm:$0xff]
        %v1772 = vld [vmem:[%s1 + $0x18] sm:$0xff]
        %v1773 = vld [vmem:[%s1 + $0x20] sm:$0xff]
        %v1774 = vld [vmem:[%s1 + $0x28] sm:$0xff]
        %v1775 = vld [vmem:[%s1 + $0x30] sm:$0xff]
        %v1776 = vld [vmem:[%s1 + $0x38] sm:$0xff]
        %v1777 = vld [vmem:[%s1 + $0x40] sm:$0xff]
        %v1778 = vld [vmem:[%s1 + $0x48] sm:$0xff]
        %v1779 = vld [vmem:[%s1 + $0x50] sm:$0xff]
        %v1780 = vld [vmem:[%s1 + $0x58] sm:$0xff]
        %v1781 = vld [vmem:[#allocation2] sm:$0xff]
        %v1782 = vld [vmem:[#allocation2 + $0x8] sm:$0xff]
        %v1783 = vld [vmem:[#allocation2 + $0x10] sm:$0xff]
        %v1784 = vld [vmem:[#allocation2 + $0x18] sm:$0xff]
        %v1785 = vld [vmem:[#allocation2 + $0x20] sm:$0xff]
        %v1786 = vld [vmem:[#allocation2 + $0x28] sm:$0xff]
        %v1787 = vld [vmem:[#allocation2 + $0x30] sm:$0xff]
        %v1788 = vld [vmem:[#allocation2 + $0x38] sm:$0xff]
        %v1789 = vld [vmem:[#allocation2 + $0x40] sm:$0xff]
        %v1790 = vld [vmem:[#allocation2 + $0x48] sm:$0xff]
        %v1791 = vld [vmem:[#allocation2 + $0x50] sm:$0xff]
        %v1792 = vld [vmem:[#allocation2 + $0x58] sm:$0xff]
        %v1793 = vld [vmem:[#allocation2 + $0x60] sm:$0xff]
        %v1794 = vld [vmem:[#allocation2 + $0x68] sm:$0xff]
        %v1795 = vld [vmem:[#allocation2 + $0x70] sm:$0xff]
        %v1796 = vld [vmem:[#allocation2 + $0x78] sm:$0xff]
        %v1797 = vld [vmem:[#allocation2 + $0x80] sm:$0xff]
        %v1798 = vld [vmem:[#allocation2 + $0x88] sm:$0xff]
        %v1799 = vld [vmem:[#allocation2 + $0x90] sm:$0xff]
        %v1800 = vld [vmem:[#allocation2 + $0x98] sm:$0xff]
        %v1801 = vld [vmem:[#allocation2 + $0xa0] sm:$0xff]
        %v1802 = vld [vmem:[#allocation2 + $0xa8] sm:$0xff]
        %v1803 = vld [vmem:[#allocation2 + $0xb0] sm:$0xff]
        %v1804 = vld [vmem:[#allocation2 + $0xb8] sm:$0xff]
        %v1805 = vld [vmem:[#allocation2 + $0xc0] sm:$0xff]
        %v1806 = vld [vmem:[#allocation2 + $0xc8] sm:$0xff]
        %v1807 = vld [vmem:[#allocation2 + $0xd0] sm:$0xff]
        %v1808 = vld [vmem:[#allocation2 + $0xd8] sm:$0xff]
        %v1809 = vld [vmem:[#allocation2 + $0xe0] sm:$0xff]
        %v1810 = vld [vmem:[#allocation2 + $0xe8] sm:$0xff]
        %v1811 = vld [vmem:[#allocation2 + $0xf0] sm:$0xff]
        %v1812 = vld [vmem:[#allocation2 + $0xf8] sm:$0xff]
        %v1813 = vld [vmem:[#allocation2 + $0x100] sm:$0xff]
        %v1814 = vld [vmem:[#allocation2 + $0x108] sm:$0xff]
        %v1815 = vld [vmem:[#allocation2 + $0x110] sm:$0xff]
        %v1816 = vld [vmem:[#allocation2 + $0x118] sm:$0xff]
        %v1817 = vld [vmem:[#allocation2 + $0x120] sm:$0xff]
        %v1818 = vld [vmem:[#allocation2 + $0x128] sm:$0xff]
        %v1819 = vld [vmem:[#allocation2 + $0x130] sm:$0xff]
        %v1820 = vld [vmem:[#allocation2 + $0x138] sm:$0xff]
        %v1821 = vld [vmem:[#allocation2 + $0x140] sm:$0xff]
        %v1822 = vld [vmem:[#allocation2 + $0x148] sm:$0xff]
        %v1823 = vld [vmem:[#allocation2 + $0x150] sm:$0xff]
        %v1824 = vld [vmem:[#allocation2 + $0x158] sm:$0xff]
        %v1825 = vld [vmem:[#allocation2 + $0x160] sm:$0xff]
        %v1826 = vld [vmem:[#allocation2 + $0x168] sm:$0xff]
        %v1827 = vld [vmem:[#allocation2 + $0x170] sm:$0xff]
        %v1828 = vld [vmem:[#allocation2 + $0x178] sm:$0xff]
        %v1829 = vld [vmem:[#allocation2 + $0x180] sm:$0xff]
        %v1830 = vld [vmem:[#allocation2 + $0x188] sm:$0xff]
        %v1831 = vld [vmem:[#allocation2 + $0x190] sm:$0xff]
        %v1832 = vld [vmem:[#allocation2 + $0x198] sm:$0xff]
        %v1833 = vld [vmem:[#allocation2 + $0x1a0] sm:$0xff]
        %v1834 = vld [vmem:[#allocation2 + $0x1a8] sm:$0xff]
        %v1835 = vld [vmem:[#allocation2 + $0x1b0] sm:$0xff]
        %v1836 = vld [vmem:[#allocation2 + $0x1b8] sm:$0xff]
        %v1837 = vld [vmem:[#allocation2 + $0x1c0] sm:$0xff]
        %v1838 = vld [vmem:[#allocation2 + $0x1c8] sm:$0xff]
        %v1839 = vld [vmem:[#allocation2 + $0x1d0] sm:$0xff]
        %v1840 = vld [vmem:[#allocation2 + $0x1d8] sm:$0xff]
        %v1841 = vld [vmem:[#allocation2 + $0x1e0] sm:$0xff]
        %v1842 = vld [vmem:[#allocation2 + $0x1e8] sm:$0xff]
        %v1843 = vld [vmem:[#allocation2 + $0x1f0] sm:$0xff]
        %v1844 = vld [vmem:[#allocation2 + $0x1f8] sm:$0xff]
        %v1845 = vld [vmem:[#allocation2 + $0x200] sm:$0xff]
        %v1846 = vld [vmem:[#allocation2 + $0x208] sm:$0xff]
        %v1847 = vld [vmem:[#allocation2 + $0x210] sm:$0xff]
        %v1848 = vld [vmem:[#allocation2 + $0x218] sm:$0xff]
        %v1849 = vld [vmem:[#allocation2 + $0x220] sm:$0xff]
        %v1850 = vld [vmem:[#allocation2 + $0x228] sm:$0xff]
        %v1851 = vld [vmem:[#allocation2 + $0x230] sm:$0xff]
        %v1852 = vld [vmem:[#allocation2 + $0x238] sm:$0xff]
        %v1853 = vld [vmem:[#allocation2 + $0x240] sm:$0xff]
        %v1854 = vld [vmem:[#allocation2 + $0x248] sm:$0xff]
        %v1855 = vld [vmem:[#allocation2 + $0x250] sm:$0xff]
        %v1856 = vld [vmem:[#allocation2 + $0x258] sm:$0xff]
        %v1857 = vld [vmem:[#allocation2 + $0x260] sm:$0xff]
        %v1858 = vld [vmem:[#allocation2 + $0x268] sm:$0xff]
        %v1859 = vld [vmem:[#allocation2 + $0x270] sm:$0xff]
        %v1860 = vld [vmem:[#allocation2 + $0x278] sm:$0xff]
        %v1861 = vld [vmem:[#allocation2 + $0x280] sm:$0xff]
        %v1862 = vld [vmem:[#allocation2 + $0x288] sm:$0xff]
        %v1863 = vld [vmem:[#allocation2 + $0x290] sm:$0xff]
        %v1864 = vld [vmem:[#allocation2 + $0x298] sm:$0xff]
        %v1865 = vld [vmem:[#allocation2 + $0x2a0] sm:$0xff]
        %v1866 = vld [vmem:[#allocation2 + $0x2a8] sm:$0xff]
        %v1867 = vld [vmem:[#allocation2 + $0x2b0] sm:$0xff]
        %v1868 = vld [vmem:[#allocation2 + $0x2b8] sm:$0xff]
        %v1869 = vld [vmem:[#allocation2 + $0x2c0] sm:$0xff]
        %v1870 = vld [vmem:[#allocation2 + $0x2c8] sm:$0xff]
        %v1871 = vld [vmem:[#allocation2 + $0x2d0] sm:$0xff]
        %v1872 = vld [vmem:[#allocation2 + $0x2d8] sm:$0xff]
        %v1873 = vld [vmem:[#allocation2 + $0x2e0] sm:$0xff]
        %v1874 = vld [vmem:[#allocation2 + $0x2e8] sm:$0xff]
        %v1875 = vld [vmem:[#allocation2 + $0x2f0] sm:$0xff]
        %v1876 = vld [vmem:[#allocation2 + $0x2f8] sm:$0xff]
        %v1877 = vld [vmem:[#allocation2 + $0x300] sm:$0xff]
        %v1878 = vld [vmem:[#allocation2 + $0x308] sm:$0xff]
        %v1879 = vld [vmem:[#allocation2 + $0x310] sm:$0xff]
        %v1880 = vld [vmem:[#allocation2 + $0x318] sm:$0xff]
        %v1881 = vld [vmem:[#allocation2 + $0x320] sm:$0xff]
        %v1882 = vld [vmem:[#allocation2 + $0x328] sm:$0xff]
        %v1883 = vld [vmem:[#allocation2 + $0x330] sm:$0xff]
        %v1884 = vld [vmem:[#allocation2 + $0x338] sm:$0xff]
        %v1885 = vld [vmem:[#allocation2 + $0x340] sm:$0xff]
        %v1886 = vld [vmem:[#allocation2 + $0x348] sm:$0xff]
        %v1887 = vld [vmem:[#allocation2 + $0x350] sm:$0xff]
        %v1888 = vld [vmem:[#allocation2 + $0x358] sm:$0xff]
        %v1889 = vld [vmem:[#allocation2 + $0x360] sm:$0xff]
        %v1890 = vld [vmem:[#allocation2 + $0x368] sm:$0xff]
        %v1891 = vld [vmem:[#allocation2 + $0x370] sm:$0xff]
        %v1892 = vld [vmem:[#allocation2 + $0x378] sm:$0xff]
        %v1893 = vld [vmem:[#allocation2 + $0x380] sm:$0xff]
        %v1894 = vld [vmem:[#allocation2 + $0x388] sm:$0xff]
        %v1895 = vld [vmem:[#allocation2 + $0x390] sm:$0xff]
        %v1896 = vld [vmem:[#allocation2 + $0x398] sm:$0xff]
        %v1897 = vld [vmem:[#allocation2 + $0x3a0] sm:$0xff]
        %v1898 = vld [vmem:[#allocation2 + $0x3a8] sm:$0xff]
        %v1899 = vld [vmem:[#allocation2 + $0x3b0] sm:$0xff]
        %v1900 = vld [vmem:[#allocation2 + $0x3b8] sm:$0xff]
        %v1901 = vld [vmem:[#allocation2 + $0x3c0] sm:$0xff]
        %v1902 = vld [vmem:[#allocation2 + $0x3c8] sm:$0xff]
        %v1903 = vld [vmem:[#allocation2 + $0x3d0] sm:$0xff]
        %v1904 = vld [vmem:[#allocation2 + $0x3d8] sm:$0xff]
        %v1905 = vld [vmem:[#allocation2 + $0x3e0] sm:$0xff]
        %v1906 = vld [vmem:[#allocation2 + $0x3e8] sm:$0xff]
        %v1907 = vld [vmem:[#allocation2 + $0x3f0] sm:$0xff]
        %v1908 = vld [vmem:[#allocation2 + $0x3f8] sm:$0xff]
        %v1909 = vld [vmem:[#allocation2 + $0x400] sm:$0xff]
        %v1910 = vld [vmem:[#allocation2 + $0x408] sm:$0xff]
        %v1911 = vld [vmem:[#allocation2 + $0x410] sm:$0xff]
        %v1912 = vld [vmem:[#allocation2 + $0x418] sm:$0xff]
        %v1913 = vld [vmem:[#allocation2 + $0x420] sm:$0xff]
        %v1914 = vld [vmem:[#allocation2 + $0x428] sm:$0xff]
        %v1915 = vld [vmem:[#allocation2 + $0x430] sm:$0xff]
        %v1916 = vld [vmem:[#allocation2 + $0x438] sm:$0xff]
        %v1917 = vld [vmem:[#allocation2 + $0x440] sm:$0xff]
        %v1918 = vld [vmem:[#allocation2 + $0x448] sm:$0xff]
        %v1919 = vld [vmem:[#allocation2 + $0x450] sm:$0xff]
        %v1920 = vld [vmem:[#allocation2 + $0x458] sm:$0xff]
        %v1921 = vld [vmem:[#allocation2 + $0x460] sm:$0xff]
        %v1922 = vld [vmem:[#allocation2 + $0x468] sm:$0xff]
        %v1923 = vld [vmem:[#allocation2 + $0x470] sm:$0xff]
        %v1924 = vld [vmem:[#allocation2 + $0x478] sm:$0xff]
        %v1925 = vld [vmem:[%s3] sm:$0xff]
        %v1926 = vld [vmem:[%s3 + $0x8] sm:$0xff]
        %v1927 = vld [vmem:[%s3 + $0x10] sm:$0xff]
        %v1928 = vld [vmem:[%s3 + $0x18] sm:$0xff]
        %1930 = vset.pattern.permute.xlu0 0
        %1931 = vperm.xlu0 %1930, %v1925
        %v1932 = vpop.permute.xlu0 %1931
        %1935 = vset.pattern.permute.xlu0 0
        %1936 = vperm.xlu0 %1935, %v1926
        %v1937 = vpop.permute.xlu0 %1936
        %1940 = vset.pattern.permute.xlu0 0
        %1941 = vperm.xlu0 %1940, %v1927
        %v1942 = vpop.permute.xlu0 %1941
        %1945 = vset.pattern.permute.xlu0 0
        %1946 = vperm.xlu0 %1945, %v1928
        %v1947 = vpop.permute.xlu0 %1946
        %vm1949 = vcmask 261120
        %v1951 = vsel %vm1949, %v1771, 0
        %v1954 = vsel %vm1949, %v1774, 0
        %v1957 = vsel %vm1949, %v1777, 0
        %v1960 = vsel %vm1949, %v1780, 0
        %1962 = vmatprep.subr.mxu0 %v1782
        %1963 = vmatpush1.msra.mxu0 %v1781
        %1964 = vmatprep.subr.mxu0 %v1786
        %1965 = vmatpush1.msra.mxu0 %v1785
        %1966 = vmatprep.subr.mxu0 %v1790
        %1967 = vmatpush1.msra.mxu0 %v1789
        %1968 = vmatprep.subr.mxu0 %v1794
        %1969 = vmatpush1.msra.mxu0 %v1793
        %1970 = vmatprep.subr.mxu0 %v1798
        %1971 = vmatpush1.msra.mxu0 %v1797
        %1972 = vmatprep.subr.mxu0 %v1802
        %1973 = vmatpush1.msra.mxu0 %v1801
        %1974 = vmatprep.subr.mxu0 %v1806
        %1975 = vmatpush1.msra.mxu0 %v1805
        %1976 = vmatprep.subr.mxu0 %v1810
        %1977 = vmatpush1.msra.mxu0 %v1809
        %1978 = vmatprep.subr.mxu0 %v1814
        %1979 = vmatpush1.msra.mxu0 %v1813
        %1980 = vmatprep.subr.mxu0 %v1818
        %1981 = vmatpush1.msra.mxu0 %v1817
        %1982 = vmatprep.subr.mxu0 %v1822
        %1983 = vmatpush1.msra.mxu0 %v1821
        %1984 = vmatprep.subr.mxu0 %v1826
        %1985 = vmatpush1.msra.mxu0 %v1825
        %1986 = vmatprep.subr.mxu0 %v1830
        %1987 = vmatpush1.msra.mxu0 %v1829
        %1988 = vmatprep.subr.mxu0 %v1834
        %1989 = vmatpush1.msra.mxu0 %v1833
        %1990 = vmatprep.subr.mxu0 %v1838
        %1991 = vmatpush1.msra.mxu0 %v1837
        %1992 = vmatprep.subr.mxu0 %v1842
        %1993 = vmatpush1.msra.mxu0 %v1841
        %1994 = vmatprep.subr.mxu0 %v1846
        %1995 = vmatpush1.msra.mxu0 %v1845
        %1996 = vmatprep.subr.mxu0 %v1850
        %1997 = vmatpush1.msra.mxu0 %v1849
        %1998 = vmatprep.subr.mxu0 %v1854
        %1999 = vmatpush1.msra.mxu0 %v1853
        %2000 = vmatprep.subr.mxu0 %v1858
        %2001 = vmatpush1.msra.mxu0 %v1857
        %2002 = vmatprep.subr.mxu0 %v1862
        %2003 = vmatpush1.msra.mxu0 %v1861
        %2004 = vmatprep.subr.mxu0 %v1866
        %2005 = vmatpush1.msra.mxu0 %v1865
        %2006 = vmatprep.subr.mxu0 %v1870
        %2007 = vmatpush1.msra.mxu0 %v1869
        %2008 = vmatprep.subr.mxu0 %v1874
        %2009 = vmatpush1.msra.mxu0 %v1873
        %2010 = vmatprep.subr.mxu0 %v1878
        %2011 = vmatpush1.msra.mxu0 %v1877
        %2012 = vmatprep.subr.mxu0 %v1882
        %2013 = vmatpush1.msra.mxu0 %v1881
        %2014 = vmatprep.subr.mxu0 %v1886
        %2015 = vmatpush1.msra.mxu0 %v1885
        %2016 = vmatprep.subr.mxu0 %v1890
        %2017 = vmatpush1.msra.mxu0 %v1889
        %2018 = vmatprep.subr.mxu0 %v1894
        %2019 = vmatpush1.msra.mxu0 %v1893
        %2020 = vmatprep.subr.mxu0 %v1898
        %2021 = vmatpush1.msra.mxu0 %v1897
        %2022 = vmatprep.subr.mxu0 %v1902
        %2023 = vmatpush1.msra.mxu0 %v1901
        %2024 = vmatprep.subr.mxu0 %v1906
        %2025 = vmatpush1.msra.mxu0 %v1905
        %2026 = vmatprep.mubr.f32.mxu0 %v1770
        %2027 = vmatmul.mubr.f32.gmra.mrb[0].mxu0 %v1769
        %v2028 = vpop.f32.mrb[0].mxu0
        %v2029 = vadd.f32 %v1932, %v2028
        %v2030 = vpop.f32.mrb[0].mxu0
        %v2031 = vadd.f32 %v1932, %v2030
        %2032 = vmatprep.mubr.f32.mxu0 %v1773
        %2033 = vmatmul.mubr.f32.gmra.mrb[0].mxu0 %v1772
        %v2034 = vpop.f32.mrb[0].mxu0
        %v2035 = vadd.f32 %v1937, %v2034
        %v2036 = vpop.f32.mrb[0].mxu0
        %v2037 = vadd.f32 %v1937, %v2036
        %2038 = vmatprep.mubr.f32.mxu0 %v1776
        %2039 = vmatmul.mubr.f32.gmra.mrb[0].mxu0 %v1775
        %v2040 = vpop.f32.mrb[0].mxu0
        %v2041 = vadd.f32 %v1942, %v2040
        %v2042 = vpop.f32.mrb[0].mxu0
        %v2043 = vadd.f32 %v1942, %v2042
        %2044 = vmatprep.mubr.f32.mxu0 %v1779
        %2045 = vmatmul.mubr.f32.gmra.mrb[0].mxu0 %v1778
        %v2046 = vpop.f32.mrb[0].mxu0
        %v2047 = vadd.f32 %v1947, %v2046
        %v2048 = vpop.f32.mrb[0].mxu0
        %v2049 = vadd.f32 %v1947, %v2048
        %2050 = vdwg.mxu0
        %2051 = vmatprep.subr.mxu0 %v1910
        %2052 = vmatpush1.msra.mxu0 %v1909
        %2053 = vmatprep.subr.mxu0 %v1914
        %2054 = vmatpush1.msra.mxu0 %v1913
        %2055 = vmatprep.subr.mxu0 %v1918
        %2056 = vmatpush1.msra.mxu0 %v1917
        %2057 = vmatprep.subr.mxu0 %v1922
        %2058 = vmatpush1.msra.mxu0 %v1921
        %2059 = vmatprep.subr.mxu0 0.0
        %2060 = vmatpush1.msra.mxu0 0.0
        %2061 = vmatprep.subr.mxu0 0.0
        %2062 = vmatpush1.msra.mxu0 0.0
        %2063 = vmatprep.subr.mxu0 0.0
        %2064 = vmatpush1.msra.mxu0 0.0
        %2065 = vmatprep.subr.mxu0 0.0
        %2066 = vmatpush1.msra.mxu0 0.0
        %2067 = vmatprep.subr.mxu0 0.0
        %2068 = vmatpush1.msra.mxu0 0.0
        %2069 = vmatprep.subr.mxu0 0.0
        %2070 = vmatpush1.msra.mxu0 0.0
        %2071 = vmatprep.subr.mxu0 0.0
        %2072 = vmatpush1.msra.mxu0 0.0
        %2073 = vmatprep.subr.mxu0 0.0
        %2074 = vmatpush1.msra.mxu0 0.0
        %2075 = vmatprep.subr.mxu0 0.0
        %2076 = vmatpush1.msra.mxu0 0.0
        %2077 = vmatprep.subr.mxu0 0.0
        %2078 = vmatpush1.msra.mxu0 0.0
        %2079 = vmatprep.subr.mxu0 0.0
        %2080 = vmatpush1.msra.mxu0 0.0
        %2081 = vmatprep.subr.mxu0 0.0
        %2082 = vmatpush1.msra.mxu0 0.0
        %2083 = vmatprep.subr.mxu0 0.0
        %2084 = vmatpush1.msra.mxu0 0.0
        %2085 = vmatprep.subr.mxu0 0.0
        %2086 = vmatpush1.msra.mxu0 0.0
        %2087 = vmatprep.subr.mxu0 0.0
        %2088 = vmatpush1.msra.mxu0 0.0
        %2089 = vmatprep.subr.mxu0 0.0
        %2090 = vmatpush1.msra.mxu0 0.0
        %2091 = vmatprep.subr.mxu0 0.0
        %2092 = vmatpush1.msra.mxu0 0.0
        %2093 = vmatprep.subr.mxu0 0.0
        %2094 = vmatpush1.msra.mxu0 0.0
        %2095 = vmatprep.subr.mxu0 0.0
        %2096 = vmatpush1.msra.mxu0 0.0
        %2097 = vmatprep.subr.mxu0 0.0
        %2098 = vmatpush1.msra.mxu0 0.0
        %2099 = vmatprep.subr.mxu0 0.0
        %2100 = vmatpush1.msra.mxu0 0.0
        %2101 = vmatprep.subr.mxu0 0.0
        %2102 = vmatpush1.msra.mxu0 0.0
        %2103 = vmatprep.subr.mxu0 0.0
        %2104 = vmatpush1.msra.mxu0 0.0
        %2105 = vmatprep.subr.mxu0 0.0
        %2106 = vmatpush1.msra.mxu0 0.0
        %2107 = vmatprep.subr.mxu0 0.0
        %2108 = vmatpush1.msra.mxu0 0.0
        %2109 = vmatprep.subr.mxu0 0.0
        %2110 = vmatpush1.msra.mxu0 0.0
        %2111 = vmatprep.subr.mxu0 0.0
        %2112 = vmatpush1.msra.mxu0 0.0
        %2113 = vmatprep.subr.mxu0 0.0
        %2114 = vmatpush1.msra.mxu0 0.0
        %2115 = vmatprep.mubr.f32.mxu0 0.0
        %2116 = vmatmul.mubr.f32.gmra.mrb[0].mxu0 %v1951
        %v2117 = vpop.f32.mrb[0].mxu0
        %v2118 = vadd.f32 %v2029, %v2117
        %v2119 = vpop.f32.mrb[0].mxu0
        %v2120 = vadd.f32 %v2031, %v2119
        %2121 = vmatprep.mubr.f32.mxu0 0.0
        %2122 = vmatmul.mubr.f32.gmra.mrb[0].mxu0 %v1954
        %v2123 = vpop.f32.mrb[0].mxu0
        %v2124 = vadd.f32 %v2035, %v2123
        %v2125 = vpop.f32.mrb[0].mxu0
        %v2126 = vadd.f32 %v2037, %v2125
        %2127 = vmatprep.mubr.f32.mxu0 0.0
        %2128 = vmatmul.mubr.f32.gmra.mrb[0].mxu0 %v1957
        %v2129 = vpop.f32.mrb[0].mxu0
        %v2130 = vadd.f32 %v2041, %v2129
        %v2131 = vpop.f32.mrb[0].mxu0
        %v2132 = vadd.f32 %v2043, %v2131
        %2133 = vmatprep.mubr.f32.mxu0 0.0
        %2134 = vmatmul.mubr.f32.gmra.mrb[0].mxu0 %v1960
        %v2135 = vpop.f32.mrb[0].mxu0
        %v2136 = vadd.f32 %v2047, %v2135
        %v2137 = vpop.f32.mrb[0].mxu0
        %v2138 = vadd.f32 %v2049, %v2137
        %2139 = vdwg.mxu0
        %2140 = vmatprep.subr.mxu0 %v1784
        %2141 = vmatpush1.msra.mxu0 %v1783
        %2142 = vmatprep.subr.mxu0 %v1788
        %2143 = vmatpush1.msra.mxu0 %v1787
        %2144 = vmatprep.subr.mxu0 %v1792
        %2145 = vmatpush1.msra.mxu0 %v1791
        %2146 = vmatprep.subr.mxu0 %v1796
        %2147 = vmatpush1.msra.mxu0 %v1795
        %2148 = vmatprep.subr.mxu0 %v1800
        %2149 = vmatpush1.msra.mxu0 %v1799
        %2150 = vmatprep.subr.mxu0 %v1804
        %2151 = vmatpush1.msra.mxu0 %v1803
        %2152 = vmatprep.subr.mxu0 %v1808
        %2153 = vmatpush1.msra.mxu0 %v1807
        %2154 = vmatprep.subr.mxu0 %v1812
        %2155 = vmatpush1.msra.mxu0 %v1811
        %2156 = vmatprep.subr.mxu0 %v1816
        %2157 = vmatpush1.msra.mxu0 %v1815
        %2158 = vmatprep.subr.mxu0 %v1820
        %2159 = vmatpush1.msra.mxu0 %v1819
        %2160 = vmatprep.subr.mxu0 %v1824
        %2161 = vmatpush1.msra.mxu0 %v1823
        %2162 = vmatprep.subr.mxu0 %v1828
        %2163 = vmatpush1.msra.mxu0 %v1827
        %2164 = vmatprep.subr.mxu0 %v1832
        %2165 = vmatpush1.msra.mxu0 %v1831
        %2166 = vmatprep.subr.mxu0 %v1836
        %2167 = vmatpush1.msra.mxu0 %v1835
        %2168 = vmatprep.subr.mxu0 %v1840
        %2169 = vmatpush1.msra.mxu0 %v1839
        %2170 = vmatprep.subr.mxu0 %v1844
        %2171 = vmatpush1.msra.mxu0 %v1843
        %2172 = vmatprep.subr.mxu0 %v1848
        %2173 = vmatpush1.msra.mxu0 %v1847
        %2174 = vmatprep.subr.mxu0 %v1852
        %2175 = vmatpush1.msra.mxu0 %v1851
        %2176 = vmatprep.subr.mxu0 %v1856
        %2177 = vmatpush1.msra.mxu0 %v1855
        %2178 = vmatprep.subr.mxu0 %v1860
        %2179 = vmatpush1.msra.mxu0 %v1859
        %2180 = vmatprep.subr.mxu0 %v1864
        %2181 = vmatpush1.msra.mxu0 %v1863
        %2182 = vmatprep.subr.mxu0 %v1868
        %2183 = vmatpush1.msra.mxu0 %v1867
        %2184 = vmatprep.subr.mxu0 %v1872
        %2185 = vmatpush1.msra.mxu0 %v1871
        %2186 = vmatprep.subr.mxu0 %v1876
        %2187 = vmatpush1.msra.mxu0 %v1875
        %2188 = vmatprep.subr.mxu0 %v1880
        %2189 = vmatpush1.msra.mxu0 %v1879
        %2190 = vmatprep.subr.mxu0 %v1884
        %2191 = vmatpush1.msra.mxu0 %v1883
        %2192 = vmatprep.subr.mxu0 %v1888
        %2193 = vmatpush1.msra.mxu0 %v1887
        %2194 = vmatprep.subr.mxu0 %v1892
        %2195 = vmatpush1.msra.mxu0 %v1891
        %2196 = vmatprep.subr.mxu0 %v1896
        %2197 = vmatpush1.msra.mxu0 %v1895
        %2198 = vmatprep.subr.mxu0 %v1900
        %2199 = vmatpush1.msra.mxu0 %v1899
        %2200 = vmatprep.subr.mxu0 %v1904
        %2201 = vmatpush1.msra.mxu0 %v1903
        %2202 = vmatprep.subr.mxu0 %v1908
        %2203 = vmatpush1.msra.mxu0 %v1907
        %2204 = vmatprep.mubr.f32.mxu0 %v1770
        %2205 = vmatmul.mubr.f32.gmra.mrb[0].mxu0 %v1769
        %v2206 = vpop.f32.mrb[0].mxu0
        %v2207 = vadd.f32 %v1932, %v2206
        %v2208 = vpop.f32.mrb[0].mxu0
        %v2209 = vadd.f32 %v1932, %v2208
        %2210 = vmatprep.mubr.f32.mxu0 %v1773
        %2211 = vmatmul.mubr.f32.gmra.mrb[0].mxu0 %v1772
        %v2212 = vpop.f32.mrb[0].mxu0
        %v2213 = vadd.f32 %v1937, %v2212
        %v2214 = vpop.f32.mrb[0].mxu0
        %v2215 = vadd.f32 %v1937, %v2214
        %2216 = vmatprep.mubr.f32.mxu0 %v1776
        %2217 = vmatmul.mubr.f32.gmra.mrb[0].mxu0 %v1775
        %v2218 = vpop.f32.mrb[0].mxu0
        %v2219 = vadd.f32 %v1942, %v2218
        %v2220 = vpop.f32.mrb[0].mxu0
        %v2221 = vadd.f32 %v1942, %v2220
        %2222 = vmatprep.mubr.f32.mxu0 %v1779
        %2223 = vmatmul.mubr.f32.gmra.mrb[0].mxu0 %v1778
        %v2224 = vpop.f32.mrb[0].mxu0
        %v2225 = vadd.f32 %v1947, %v2224
        %v2226 = vpop.f32.mrb[0].mxu0
        %v2227 = vadd.f32 %v1947, %v2226
        %2228 = vdwg.mxu0
        %2229 = vmatprep.subr.mxu0 %v1912
        %2230 = vmatpush1.msra.mxu0 %v1911
        %2231 = vmatprep.subr.mxu0 %v1916
        %2232 = vmatpush1.msra.mxu0 %v1915
        %2233 = vmatprep.subr.mxu0 %v1920
        %2234 = vmatpush1.msra.mxu0 %v1919
        %2235 = vmatprep.subr.mxu0 %v1924
        %2236 = vmatpush1.msra.mxu0 %v1923
        %2237 = vmatprep.subr.mxu0 0.0
        %2238 = vmatpush1.msra.mxu0 0.0
        %2239 = vmatprep.subr.mxu0 0.0
        %2240 = vmatpush1.msra.mxu0 0.0
        %2241 = vmatprep.subr.mxu0 0.0
        %2242 = vmatpush1.msra.mxu0 0.0
        %2243 = vmatprep.subr.mxu0 0.0
        %2244 = vmatpush1.msra.mxu0 0.0
        %2245 = vmatprep.subr.mxu0 0.0
        %2246 = vmatpush1.msra.mxu0 0.0
        %2247 = vmatprep.subr.mxu0 0.0
        %2248 = vmatpush1.msra.mxu0 0.0
        %2249 = vmatprep.subr.mxu0 0.0
        %2250 = vmatpush1.msra.mxu0 0.0
        %2251 = vmatprep.subr.mxu0 0.0
        %2252 = vmatpush1.msra.mxu0 0.0
        %2253 = vmatprep.subr.mxu0 0.0
        %2254 = vmatpush1.msra.mxu0 0.0
        %2255 = vmatprep.subr.mxu0 0.0
        %2256 = vmatpush1.msra.mxu0 0.0
        %2257 = vmatprep.subr.mxu0 0.0
        %2258 = vmatpush1.msra.mxu0 0.0
        %2259 = vmatprep.subr.mxu0 0.0
        %2260 = vmatpush1.msra.mxu0 0.0
        %2261 = vmatprep.subr.mxu0 0.0
        %2262 = vmatpush1.msra.mxu0 0.0
        %2263 = vmatprep.subr.mxu0 0.0
        %2264 = vmatpush1.msra.mxu0 0.0
        %2265 = vmatprep.subr.mxu0 0.0
        %2266 = vmatpush1.msra.mxu0 0.0
        %2267 = vmatprep.subr.mxu0 0.0
        %2268 = vmatpush1.msra.mxu0 0.0
        %2269 = vmatprep.subr.mxu0 0.0
        %2270 = vmatpush1.msra.mxu0 0.0
        %2271 = vmatprep.subr.mxu0 0.0
        %2272 = vmatpush1.msra.mxu0 0.0
        %2273 = vmatprep.subr.mxu0 0.0
        %2274 = vmatpush1.msra.mxu0 0.0
        %2275 = vmatprep.subr.mxu0 0.0
        %2276 = vmatpush1.msra.mxu0 0.0
        %2277 = vmatprep.subr.mxu0 0.0
        %2278 = vmatpush1.msra.mxu0 0.0
        %2279 = vmatprep.subr.mxu0 0.0
        %2280 = vmatpush1.msra.mxu0 0.0
        %2281 = vmatprep.subr.mxu0 0.0
        %2282 = vmatpush1.msra.mxu0 0.0
        %2283 = vmatprep.subr.mxu0 0.0
        %2284 = vmatpush1.msra.mxu0 0.0
        %2285 = vmatprep.subr.mxu0 0.0
        %2286 = vmatpush1.msra.mxu0 0.0
        %2287 = vmatprep.subr.mxu0 0.0
        %2288 = vmatpush1.msra.mxu0 0.0
        %2289 = vmatprep.subr.mxu0 0.0
        %2290 = vmatpush1.msra.mxu0 0.0
        %2291 = vmatprep.subr.mxu0 0.0
        %2292 = vmatpush1.msra.mxu0 0.0
        %2293 = vmatprep.mubr.f32.mxu0 0.0
        %2294 = vmatmul.mubr.f32.gmra.mrb[0].mxu0 %v1951
        %v2295 = vpop.f32.mrb[0].mxu0
        %v2296 = vadd.f32 %v2207, %v2295
        %v2297 = vpop.f32.mrb[0].mxu0
        %v2298 = vadd.f32 %v2209, %v2297
        %2299 = vmatprep.mubr.f32.mxu0 0.0
        %2300 = vmatmul.mubr.f32.gmra.mrb[0].mxu0 %v1954
        %v2301 = vpop.f32.mrb[0].mxu0
        %v2302 = vadd.f32 %v2213, %v2301
        %v2303 = vpop.f32.mrb[0].mxu0
        %v2304 = vadd.f32 %v2215, %v2303
        %2305 = vmatprep.mubr.f32.mxu0 0.0
        %2306 = vmatmul.mubr.f32.gmra.mrb[0].mxu0 %v1957
        %v2307 = vpop.f32.mrb[0].mxu0
        %v2308 = vadd.f32 %v2219, %v2307
        %v2309 = vpop.f32.mrb[0].mxu0
        %v2310 = vadd.f32 %v2221, %v2309
        %2311 = vmatprep.mubr.f32.mxu0 0.0
        %2312 = vmatmul.mubr.f32.gmra.mrb[0].mxu0 %v1960
        %v2313 = vpop.f32.mrb[0].mxu0
        %v2314 = vadd.f32 %v2225, %v2313
        %v2315 = vpop.f32.mrb[0].mxu0
        %v2316 = vadd.f32 %v2227, %v2315
        %2317 = vdwg.mxu0
        %v2318 = vmax.f32 %v2118, 0.0
        %v2319 = vmax.f32 %v2120, 0.0
        %v2320 = vmax.f32 %v2296, 0.0
        %v2321 = vmax.f32 %v2298, 0.0
        %v2322 = vmax.f32 %v2124, 0.0
        %v2323 = vmax.f32 %v2126, 0.0
        %v2324 = vmax.f32 %v2302, 0.0
        %v2325 = vmax.f32 %v2304, 0.0
        %v2326 = vmax.f32 %v2130, 0.0
        %v2327 = vmax.f32 %v2132, 0.0
        %v2328 = vmax.f32 %v2308, 0.0
        %v2329 = vmax.f32 %v2310, 0.0
        %v2330 = vmax.f32 %v2136, 0.0
        %v2331 = vmax.f32 %v2138, 0.0
        %v2332 = vmax.f32 %v2314, 0.0
        %v2333 = vmax.f32 %v2316, 0.0
        %2334 = vst [vmem:[#allocation4 + $0x8] sm:$0xff] %v2318
        %2335 = vst [vmem:[#allocation4 + $0x10] sm:$0xff] %v2319
        %2336 = vst [vmem:[#allocation4 + $0x18] sm:$0xff] %v2320
        %2337 = vst [vmem:[#allocation4 + $0x20] sm:$0xff] %v2321
        %2338 = vst [vmem:[#allocation4 + $0x38] sm:$0xff] %v2322
        %2339 = vst [vmem:[#allocation4 + $0x40] sm:$0xff] %v2323
        %2340 = vst [vmem:[#allocation4 + $0x48] sm:$0xff] %v2324
        %2341 = vst [vmem:[#allocation4 + $0x50] sm:$0xff] %v2325
        %2342 = vst [vmem:[#allocation4 + $0x68] sm:$0xff] %v2326
        %2343 = vst [vmem:[#allocation4 + $0x70] sm:$0xff] %v2327
        %2344 = vst [vmem:[#allocation4 + $0x78] sm:$0xff] %v2328
        %2345 = vst [vmem:[#allocation4 + $0x80] sm:$0xff] %v2329
        %2346 = vst [vmem:[#allocation4 + $0x98] sm:$0xff] %v2330
        %2347 = vst [vmem:[#allocation4 + $0xa0] sm:$0xff] %v2331
        %2348 = vst [vmem:[#allocation4 + $0xa8] sm:$0xff] %v2332
        %2349 = vst [vmem:[#allocation4 + $0xb0] sm:$0xff] %v2333
        %v2350 = vld [vmem:[#allocation4] sm:$0xff]
        %v2351 = vld [vmem:[#allocation4 + $0x8] sm:$0xff]
        %v2352 = vld [vmem:[#allocation4 + $0x10] sm:$0xff]
        %v2353 = vld [vmem:[#allocation4 + $0x18] sm:$0xff]
        %v2354 = vld [vmem:[#allocation4 + $0x20] sm:$0xff]
        %v2355 = vld [vmem:[#allocation4 + $0x30] sm:$0xff]
        %v2356 = vld [vmem:[#allocation4 + $0x38] sm:$0xff]
        %v2357 = vld [vmem:[#allocation4 + $0x40] sm:$0xff]
        %v2358 = vld [vmem:[#allocation4 + $0x48] sm:$0xff]
        %v2359 = vld [vmem:[#allocation4 + $0x50] sm:$0xff]
        %v2360 = vld [vmem:[#allocation4 + $0x60] sm:$0xff]
        %v2361 = vld [vmem:[#allocation4 + $0x68] sm:$0xff]
        %v2362 = vld [vmem:[#allocation4 + $0x70] sm:$0xff]
        %v2363 = vld [vmem:[#allocation4 + $0x78] sm:$0xff]
        %v2364 = vld [vmem:[#allocation4 + $0x80] sm:$0xff]
        %v2365 = vld [vmem:[#allocation4 + $0x90] sm:$0xff]
        %v2366 = vld [vmem:[#allocation4 + $0x98] sm:$0xff]
        %v2367 = vld [vmem:[#allocation4 + $0xa0] sm:$0xff]
        %v2368 = vld [vmem:[#allocation4 + $0xa8] sm:$0xff]
        %v2369 = vld [vmem:[#allocation4 + $0xb0] sm:$0xff]
        %v2370 = vld [vmem:[#allocation10] ss:$8 sm:$0xf]
        %v2372 = vlaneseq
        %v2373 = vshrl.u32 %v2372, 7
        %v2374 = vsub.s32 0, %v2373
        %v2375 = vrot.slane %v2370, %v2374
        %v2376 = vlaneseq
        %v2377 = vshrl.u32 %v2376, 7
        %v2378 = vsub.s32 1, %v2377
        %v2379 = vrot.slane %v2370, %v2378
        %v2380 = vlaneseq
        %v2381 = vshrl.u32 %v2380, 7
        %v2382 = vsub.s32 2, %v2381
        %v2383 = vrot.slane %v2370, %v2382
        %v2384 = vlaneseq
        %v2385 = vshrl.u32 %v2384, 7
        %v2386 = vsub.s32 3, %v2385
        %v2387 = vrot.slane %v2370, %v2386
        %vm2392 = vcmp.gt.f32.partialorder %v2375, 0.5
        %vm2393 = vcmp.gt.f32.partialorder %v2379, 0.5
        %vm2394 = vcmp.gt.f32.partialorder %v2383, 0.5
        %vm2395 = vcmp.gt.f32.partialorder %v2387, 0.5
        %2416 = vrot.lane.b32.xlu0 %v2350, 17
        %v2417 = vpop.permute.xlu0 %2416
        %2418 = vrot.lane.b32.xlu0 %v2351, 17
        %v2419 = vpop.permute.xlu0 %2418
        %2420 = vrot.lane.b32.xlu0 %v2352, 17
        %v2421 = vpop.permute.xlu0 %2420
        %2422 = vrot.lane.b32.xlu0 %v2353, 17
        %v2423 = vpop.permute.xlu0 %2422
        %2424 = vrot.lane.b32.xlu0 %v2354, 17
        %v2425 = vpop.permute.xlu0 %2424
        %2426 = vrot.lane.b32.xlu0 %v2355, 17
        %v2427 = vpop.permute.xlu0 %2426
        %2428 = vrot.lane.b32.xlu0 %v2356, 17
        %v2429 = vpop.permute.xlu0 %2428
        %2430 = vrot.lane.b32.xlu0 %v2357, 17
        %v2431 = vpop.permute.xlu0 %2430
        %2432 = vrot.lane.b32.xlu0 %v2358, 17
        %v2433 = vpop.permute.xlu0 %2432
        %2434 = vrot.lane.b32.xlu0 %v2359, 17
        %v2435 = vpop.permute.xlu0 %2434
        %2436 = vrot.lane.b32.xlu0 %v2360, 17
        %v2437 = vpop.permute.xlu0 %2436
        %2438 = vrot.lane.b32.xlu0 %v2361, 17
        %v2439 = vpop.permute.xlu0 %2438
        %2440 = vrot.lane.b32.xlu0 %v2362, 17
        %v2441 = vpop.permute.xlu0 %2440
        %2442 = vrot.lane.b32.xlu0 %v2363, 17
        %v2443 = vpop.permute.xlu0 %2442
        %2444 = vrot.lane.b32.xlu0 %v2364, 17
        %v2445 = vpop.permute.xlu0 %2444
        %2446 = vrot.lane.b32.xlu0 %v2365, 17
        %v2447 = vpop.permute.xlu0 %2446
        %2448 = vrot.lane.b32.xlu0 %v2366, 17
        %v2449 = vpop.permute.xlu0 %2448
        %2450 = vrot.lane.b32.xlu0 %v2367, 17
        %v2451 = vpop.permute.xlu0 %2450
        %2452 = vrot.lane.b32.xlu0 %v2368, 17
        %v2453 = vpop.permute.xlu0 %2452
        %2454 = vrot.lane.b32.xlu0 %v2369, 17
        %v2455 = vpop.permute.xlu0 %2454
        %v2456 = vsel %vm468, %v2417, %v2419
        %v2457 = vsel %vm468, %v2419, %v2421
        %v2458 = vsel %vm468, %v2421, %v2423
        %v2459 = vsel %vm468, %v2423, %v2425
        %v2460 = vsel %vm468, %v2427, %v2429
        %v2461 = vsel %vm468, %v2429, %v2431
        %v2462 = vsel %vm468, %v2431, %v2433
        %v2463 = vsel %vm468, %v2433, %v2435
        %v2464 = vsel %vm468, %v2437, %v2439
        %v2465 = vsel %vm468, %v2439, %v2441
        %v2466 = vsel %vm468, %v2441, %v2443
        %v2467 = vsel %vm468, %v2443, %v2445
        %v2468 = vsel %vm468, %v2447, %v2449
        %v2469 = vsel %vm468, %v2449, %v2451
        %v2470 = vsel %vm468, %v2451, %v2453
        %v2471 = vsel %vm468, %v2453, %v2455
        %v2488 = vsel %vm2392, %v2456, 0.0
        %v2489 = vsel %vm2393, %v2457, 0.0
        %v2490 = vsel %vm2394, %v2458, 0.0
        %v2491 = vsel %vm2395, %v2459, 0.0
        %v2492 = vsel %vm2392, %v2460, 0.0
        %v2493 = vsel %vm2393, %v2461, 0.0
        %v2494 = vsel %vm2394, %v2462, 0.0
        %v2495 = vsel %vm2395, %v2463, 0.0
        %v2496 = vsel %vm2392, %v2464, 0.0
        %v2497 = vsel %vm2393, %v2465, 0.0
        %v2498 = vsel %vm2394, %v2466, 0.0
        %v2499 = vsel %vm2395, %v2467, 0.0
        %v2500 = vsel %vm2392, %v2468, 0.0
        %v2501 = vsel %vm2393, %v2469, 0.0
        %v2502 = vsel %vm2394, %v2470, 0.0
        %v2503 = vsel %vm2395, %v2471, 0.0
        %2504 = vst [vmem:[#allocation2] sm:$0xff] %v2488
        %2505 = vst [vmem:[#allocation2 + $0x8] sm:$0xff] %v2489
        %2506 = vst [vmem:[#allocation2 + $0x10] sm:$0xff] %v2490
        %2507 = vst [vmem:[#allocation2 + $0x18] sm:$0xff] %v2491
        %2508 = vst [vmem:[#allocation2 + $0x20] sm:$0xff] %v2492
        %2509 = vst [vmem:[#allocation2 + $0x28] sm:$0xff] %v2493
        %2510 = vst [vmem:[#allocation2 + $0x30] sm:$0xff] %v2494
        %2511 = vst [vmem:[#allocation2 + $0x38] sm:$0xff] %v2495
        %2512 = vst [vmem:[#allocation2 + $0x40] sm:$0xff] %v2496
        %2513 = vst [vmem:[#allocation2 + $0x48] sm:$0xff] %v2497
        %2514 = vst [vmem:[#allocation2 + $0x50] sm:$0xff] %v2498
        %2515 = vst [vmem:[#allocation2 + $0x58] sm:$0xff] %v2499
        %2516 = vst [vmem:[#allocation2 + $0x60] sm:$0xff] %v2500
        %2517 = vst [vmem:[#allocation2 + $0x68] sm:$0xff] %v2501
        %2518 = vst [vmem:[#allocation2 + $0x70] sm:$0xff] %v2502
        %2519 = vst [vmem:[#allocation2 + $0x78] sm:$0xff] %v2503
        %v2520 = vld [vmem:[#allocation4] sm:$0xff]
        %v2521 = vld [vmem:[#allocation4 + $0x8] sm:$0xff]
        %v2522 = vld [vmem:[#allocation4 + $0x10] sm:$0xff]
        %v2523 = vld [vmem:[#allocation4 + $0x18] sm:$0xff]
        %v2524 = vld [vmem:[#allocation4 + $0x20] sm:$0xff]
        %v2525 = vld [vmem:[#allocation4 + $0x30] sm:$0xff]
        %v2526 = vld [vmem:[#allocation4 + $0x38] sm:$0xff]
        %v2527 = vld [vmem:[#allocation4 + $0x40] sm:$0xff]
        %v2528 = vld [vmem:[#allocation4 + $0x48] sm:$0xff]
        %v2529 = vld [vmem:[#allocation4 + $0x50] sm:$0xff]
        %v2530 = vld [vmem:[#allocation4 + $0x60] sm:$0xff]
        %v2531 = vld [vmem:[#allocation4 + $0x68] sm:$0xff]
        %v2532 = vld [vmem:[#allocation4 + $0x70] sm:$0xff]
        %v2533 = vld [vmem:[#allocation4 + $0x78] sm:$0xff]
        %v2534 = vld [vmem:[#allocation4 + $0x80] sm:$0xff]
        %v2535 = vld [vmem:[#allocation4 + $0x90] sm:$0xff]
        %v2536 = vld [vmem:[#allocation4 + $0x98] sm:$0xff]
        %v2537 = vld [vmem:[#allocation4 + $0xa0] sm:$0xff]
        %v2538 = vld [vmem:[#allocation4 + $0xa8] sm:$0xff]
        %v2539 = vld [vmem:[#allocation4 + $0xb0] sm:$0xff]
        %v2540 = vld [vmem:[%s553] ss:$8 sm:$0xf]
        %v2542 = vlaneseq
        %v2543 = vshrl.u32 %v2542, 7
        %v2544 = vsub.s32 0, %v2543
        %v2545 = vrot.slane %v2540, %v2544
        %v2546 = vlaneseq
        %v2547 = vshrl.u32 %v2546, 7
        %v2548 = vsub.s32 1, %v2547
        %v2549 = vrot.slane %v2540, %v2548
        %v2550 = vlaneseq
        %v2551 = vshrl.u32 %v2550, 7
        %v2552 = vsub.s32 2, %v2551
        %v2553 = vrot.slane %v2540, %v2552
        %v2554 = vlaneseq
        %v2555 = vshrl.u32 %v2554, 7
        %v2556 = vsub.s32 3, %v2555
        %v2557 = vrot.slane %v2540, %v2556
        %vm2562 = vcmp.gt.f32.partialorder %v2545, 0.5
        %vm2563 = vcmp.gt.f32.partialorder %v2549, 0.5
        %vm2564 = vcmp.gt.f32.partialorder %v2553, 0.5
        %vm2565 = vcmp.gt.f32.partialorder %v2557, 0.5
        %2586 = vrot.lane.b32.xlu0 %v2520, 16
        %v2587 = vpop.permute.xlu0 %2586
        %2588 = vrot.lane.b32.xlu0 %v2521, 16
        %v2589 = vpop.permute.xlu0 %2588
        %2590 = vrot.lane.b32.xlu0 %v2522, 16
        %v2591 = vpop.permute.xlu0 %2590
        %2592 = vrot.lane.b32.xlu0 %v2523, 16
        %v2593 = vpop.permute.xlu0 %2592
        %2594 = vrot.lane.b32.xlu0 %v2524, 16
        %v2595 = vpop.permute.xlu0 %2594
        %2596 = vrot.lane.b32.xlu0 %v2525, 16
        %v2597 = vpop.permute.xlu0 %2596
        %2598 = vrot.lane.b32.xlu0 %v2526, 16
        %v2599 = vpop.permute.xlu0 %2598
        %2600 = vrot.lane.b32.xlu0 %v2527, 16
        %v2601 = vpop.permute.xlu0 %2600
        %2602 = vrot.lane.b32.xlu0 %v2528, 16
        %v2603 = vpop.permute.xlu0 %2602
        %2604 = vrot.lane.b32.xlu0 %v2529, 16
        %v2605 = vpop.permute.xlu0 %2604
        %2606 = vrot.lane.b32.xlu0 %v2530, 16
        %v2607 = vpop.permute.xlu0 %2606
        %2608 = vrot.lane.b32.xlu0 %v2531, 16
        %v2609 = vpop.permute.xlu0 %2608
        %2610 = vrot.lane.b32.xlu0 %v2532, 16
        %v2611 = vpop.permute.xlu0 %2610
        %2612 = vrot.lane.b32.xlu0 %v2533, 16
        %v2613 = vpop.permute.xlu0 %2612
        %2614 = vrot.lane.b32.xlu0 %v2534, 16
        %v2615 = vpop.permute.xlu0 %2614
        %2616 = vrot.lane.b32.xlu0 %v2535, 16
        %v2617 = vpop.permute.xlu0 %2616
        %2618 = vrot.lane.b32.xlu0 %v2536, 16
        %v2619 = vpop.permute.xlu0 %2618
        %2620 = vrot.lane.b32.xlu0 %v2537, 16
        %v2621 = vpop.permute.xlu0 %2620
        %2622 = vrot.lane.b32.xlu0 %v2538, 16
        %v2623 = vpop.permute.xlu0 %2622
        %2624 = vrot.lane.b32.xlu0 %v2539, 16
        %v2625 = vpop.permute.xlu0 %2624
        %v2626 = vsel %vm640, %v2587, %v2589
        %v2627 = vsel %vm640, %v2589, %v2591
        %v2628 = vsel %vm640, %v2591, %v2593
        %v2629 = vsel %vm640, %v2593, %v2595
        %v2630 = vsel %vm640, %v2597, %v2599
        %v2631 = vsel %vm640, %v2599, %v2601
        %v2632 = vsel %vm640, %v2601, %v2603
        %v2633 = vsel %vm640, %v2603, %v2605
        %v2634 = vsel %vm640, %v2607, %v2609
        %v2635 = vsel %vm640, %v2609, %v2611
        %v2636 = vsel %vm640, %v2611, %v2613
        %v2637 = vsel %vm640, %v2613, %v2615
        %v2638 = vsel %vm640, %v2617, %v2619
        %v2639 = vsel %vm640, %v2619, %v2621
        %v2640 = vsel %vm640, %v2621, %v2623
        %v2641 = vsel %vm640, %v2623, %v2625
        %v2658 = vsel %vm2562, %v2626, 0.0
        %v2659 = vsel %vm2563, %v2627, 0.0
        %v2660 = vsel %vm2564, %v2628, 0.0
        %v2661 = vsel %vm2565, %v2629, 0.0
        %v2662 = vsel %vm2562, %v2630, 0.0
        %v2663 = vsel %vm2563, %v2631, 0.0
        %v2664 = vsel %vm2564, %v2632, 0.0
        %v2665 = vsel %vm2565, %v2633, 0.0
        %v2666 = vsel %vm2562, %v2634, 0.0
        %v2667 = vsel %vm2563, %v2635, 0.0
        %v2668 = vsel %vm2564, %v2636, 0.0
        %v2669 = vsel %vm2565, %v2637, 0.0
        %v2670 = vsel %vm2562, %v2638, 0.0
        %v2671 = vsel %vm2563, %v2639, 0.0
        %v2672 = vsel %vm2564, %v2640, 0.0
        %v2673 = vsel %vm2565, %v2641, 0.0
        %2674 = vst [vmem:[#allocation2 + $0x80] sm:$0xff] %v2658
        %2675 = vst [vmem:[#allocation2 + $0x88] sm:$0xff] %v2659
        %2676 = vst [vmem:[#allocation2 + $0x90] sm:$0xff] %v2660
        %2677 = vst [vmem:[#allocation2 + $0x98] sm:$0xff] %v2661
        %2678 = vst [vmem:[#allocation2 + $0xa0] sm:$0xff] %v2662
        %2679 = vst [vmem:[#allocation2 + $0xa8] sm:$0xff] %v2663
        %2680 = vst [vmem:[#allocation2 + $0xb0] sm:$0xff] %v2664
        %2681 = vst [vmem:[#allocation2 + $0xb8] sm:$0xff] %v2665
        %2682 = vst [vmem:[#allocation2 + $0xc0] sm:$0xff] %v2666
        %2683 = vst [vmem:[#allocation2 + $0xc8] sm:$0xff] %v2667
        %2684 = vst [vmem:[#allocation2 + $0xd0] sm:$0xff] %v2668
        %2685 = vst [vmem:[#allocation2 + $0xd8] sm:$0xff] %v2669
        %2686 = vst [vmem:[#allocation2 + $0xe0] sm:$0xff] %v2670
        %2687 = vst [vmem:[#allocation2 + $0xe8] sm:$0xff] %v2671
        %2688 = vst [vmem:[#allocation2 + $0xf0] sm:$0xff] %v2672
        %2689 = vst [vmem:[#allocation2 + $0xf8] sm:$0xff] %v2673
        %v2690 = vld [vmem:[#allocation4] sm:$0xff]
        %v2691 = vld [vmem:[#allocation4 + $0x8] sm:$0xff]
        %v2692 = vld [vmem:[#allocation4 + $0x10] sm:$0xff]
        %v2693 = vld [vmem:[#allocation4 + $0x18] sm:$0xff]
        %v2694 = vld [vmem:[#allocation4 + $0x20] sm:$0xff]
        %v2695 = vld [vmem:[#allocation4 + $0x30] sm:$0xff]
        %v2696 = vld [vmem:[#allocation4 + $0x38] sm:$0xff]
        %v2697 = vld [vmem:[#allocation4 + $0x40] sm:$0xff]
        %v2698 = vld [vmem:[#allocation4 + $0x48] sm:$0xff]
        %v2699 = vld [vmem:[#allocation4 + $0x50] sm:$0xff]
        %v2700 = vld [vmem:[#allocation4 + $0x60] sm:$0xff]
        %v2701 = vld [vmem:[#allocation4 + $0x68] sm:$0xff]
        %v2702 = vld [vmem:[#allocation4 + $0x70] sm:$0xff]
        %v2703 = vld [vmem:[#allocation4 + $0x78] sm:$0xff]
        %v2704 = vld [vmem:[#allocation4 + $0x80] sm:$0xff]
        %v2705 = vld [vmem:[#allocation4 + $0x90] sm:$0xff]
        %v2706 = vld [vmem:[#allocation4 + $0x98] sm:$0xff]
        %v2707 = vld [vmem:[#allocation4 + $0xa0] sm:$0xff]
        %v2708 = vld [vmem:[#allocation4 + $0xa8] sm:$0xff]
        %v2709 = vld [vmem:[#allocation4 + $0xb0] sm:$0xff]
        %v2710 = vld [vmem:[%s725] ss:$8 sm:$0xf]
        %v2712 = vlaneseq
        %v2713 = vshrl.u32 %v2712, 7
        %v2714 = vsub.s32 0, %v2713
        %v2715 = vrot.slane %v2710, %v2714
        %v2716 = vlaneseq
        %v2717 = vshrl.u32 %v2716, 7
        %v2718 = vsub.s32 1, %v2717
        %v2719 = vrot.slane %v2710, %v2718
        %v2720 = vlaneseq
        %v2721 = vshrl.u32 %v2720, 7
        %v2722 = vsub.s32 2, %v2721
        %v2723 = vrot.slane %v2710, %v2722
        %v2724 = vlaneseq
        %v2725 = vshrl.u32 %v2724, 7
        %v2726 = vsub.s32 3, %v2725
        %v2727 = vrot.slane %v2710, %v2726
        %vm2732 = vcmp.gt.f32.partialorder %v2715, 0.5
        %vm2733 = vcmp.gt.f32.partialorder %v2719, 0.5
        %vm2734 = vcmp.gt.f32.partialorder %v2723, 0.5
        %vm2735 = vcmp.gt.f32.partialorder %v2727, 0.5
        %2756 = vrot.lane.b32.xlu0 %v2690, 15
        %v2757 = vpop.permute.xlu0 %2756
        %2758 = vrot.lane.b32.xlu0 %v2691, 15
        %v2759 = vpop.permute.xlu0 %2758
        %2760 = vrot.lane.b32.xlu0 %v2692, 15
        %v2761 = vpop.permute.xlu0 %2760
        %2762 = vrot.lane.b32.xlu0 %v2693, 15
        %v2763 = vpop.permute.xlu0 %2762
        %2764 = vrot.lane.b32.xlu0 %v2694, 15
        %v2765 = vpop.permute.xlu0 %2764
        %2766 = vrot.lane.b32.xlu0 %v2695, 15
        %v2767 = vpop.permute.xlu0 %2766
        %2768 = vrot.lane.b32.xlu0 %v2696, 15
        %v2769 = vpop.permute.xlu0 %2768
        %2770 = vrot.lane.b32.xlu0 %v2697, 15
        %v2771 = vpop.permute.xlu0 %2770
        %2772 = vrot.lane.b32.xlu0 %v2698, 15
        %v2773 = vpop.permute.xlu0 %2772
        %2774 = vrot.lane.b32.xlu0 %v2699, 15
        %v2775 = vpop.permute.xlu0 %2774
        %2776 = vrot.lane.b32.xlu0 %v2700, 15
        %v2777 = vpop.permute.xlu0 %2776
        %2778 = vrot.lane.b32.xlu0 %v2701, 15
        %v2779 = vpop.permute.xlu0 %2778
        %2780 = vrot.lane.b32.xlu0 %v2702, 15
        %v2781 = vpop.permute.xlu0 %2780
        %2782 = vrot.lane.b32.xlu0 %v2703, 15
        %v2783 = vpop.permute.xlu0 %2782
        %2784 = vrot.lane.b32.xlu0 %v2704, 15
        %v2785 = vpop.permute.xlu0 %2784
        %2786 = vrot.lane.b32.xlu0 %v2705, 15
        %v2787 = vpop.permute.xlu0 %2786
        %2788 = vrot.lane.b32.xlu0 %v2706, 15
        %v2789 = vpop.permute.xlu0 %2788
        %2790 = vrot.lane.b32.xlu0 %v2707, 15
        %v2791 = vpop.permute.xlu0 %2790
        %2792 = vrot.lane.b32.xlu0 %v2708, 15
        %v2793 = vpop.permute.xlu0 %2792
        %2794 = vrot.lane.b32.xlu0 %v2709, 15
        %v2795 = vpop.permute.xlu0 %2794
        %v2796 = vsel %vm812, %v2757, %v2759
        %v2797 = vsel %vm812, %v2759, %v2761
        %v2798 = vsel %vm812, %v2761, %v2763
        %v2799 = vsel %vm812, %v2763, %v2765
        %v2800 = vsel %vm812, %v2767, %v2769
        %v2801 = vsel %vm812, %v2769, %v2771
        %v2802 = vsel %vm812, %v2771, %v2773
        %v2803 = vsel %vm812, %v2773, %v2775
        %v2804 = vsel %vm812, %v2777, %v2779
        %v2805 = vsel %vm812, %v2779, %v2781
        %v2806 = vsel %vm812, %v2781, %v2783
        %v2807 = vsel %vm812, %v2783, %v2785
        %v2808 = vsel %vm812, %v2787, %v2789
        %v2809 = vsel %vm812, %v2789, %v2791
        %v2810 = vsel %vm812, %v2791, %v2793
        %v2811 = vsel %vm812, %v2793, %v2795
        %v2828 = vsel %vm2732, %v2796, 0.0
        %v2829 = vsel %vm2733, %v2797, 0.0
        %v2830 = vsel %vm2734, %v2798, 0.0
        %v2831 = vsel %vm2735, %v2799, 0.0
        %v2832 = vsel %vm2732, %v2800, 0.0
        %v2833 = vsel %vm2733, %v2801, 0.0
        %v2834 = vsel %vm2734, %v2802, 0.0
        %v2835 = vsel %vm2735, %v2803, 0.0
        %v2836 = vsel %vm2732, %v2804, 0.0
        %v2837 = vsel %vm2733, %v2805, 0.0
        %v2838 = vsel %vm2734, %v2806, 0.0
        %v2839 = vsel %vm2735, %v2807, 0.0
        %v2840 = vsel %vm2732, %v2808, 0.0
        %v2841 = vsel %vm2733, %v2809, 0.0
        %v2842 = vsel %vm2734, %v2810, 0.0
        %v2843 = vsel %vm2735, %v2811, 0.0
        %2844 = vst [vmem:[#allocation2 + $0x100] sm:$0xff] %v2828
        %2845 = vst [vmem:[#allocation2 + $0x108] sm:$0xff] %v2829
        %2846 = vst [vmem:[#allocation2 + $0x110] sm:$0xff] %v2830
        %2847 = vst [vmem:[#allocation2 + $0x118] sm:$0xff] %v2831
        %2848 = vst [vmem:[#allocation2 + $0x120] sm:$0xff] %v2832
        %2849 = vst [vmem:[#allocation2 + $0x128] sm:$0xff] %v2833
        %2850 = vst [vmem:[#allocation2 + $0x130] sm:$0xff] %v2834
        %2851 = vst [vmem:[#allocation2 + $0x138] sm:$0xff] %v2835
        %2852 = vst [vmem:[#allocation2 + $0x140] sm:$0xff] %v2836
        %2853 = vst [vmem:[#allocation2 + $0x148] sm:$0xff] %v2837
        %2854 = vst [vmem:[#allocation2 + $0x150] sm:$0xff] %v2838
        %2855 = vst [vmem:[#allocation2 + $0x158] sm:$0xff] %v2839
        %2856 = vst [vmem:[#allocation2 + $0x160] sm:$0xff] %v2840
        %2857 = vst [vmem:[#allocation2 + $0x168] sm:$0xff] %v2841
        %2858 = vst [vmem:[#allocation2 + $0x170] sm:$0xff] %v2842
        %2859 = vst [vmem:[#allocation2 + $0x178] sm:$0xff] %v2843
        %v2860 = vld [vmem:[#allocation4] sm:$0xff]
        %v2861 = vld [vmem:[#allocation4 + $0x8] sm:$0xff]
        %v2862 = vld [vmem:[#allocation4 + $0x10] sm:$0xff]
        %v2863 = vld [vmem:[#allocation4 + $0x18] sm:$0xff]
        %v2864 = vld [vmem:[#allocation4 + $0x20] sm:$0xff]
        %v2865 = vld [vmem:[#allocation4 + $0x30] sm:$0xff]
        %v2866 = vld [vmem:[#allocation4 + $0x38] sm:$0xff]
        %v2867 = vld [vmem:[#allocation4 + $0x40] sm:$0xff]
        %v2868 = vld [vmem:[#allocation4 + $0x48] sm:$0xff]
        %v2869 = vld [vmem:[#allocation4 + $0x50] sm:$0xff]
        %v2870 = vld [vmem:[#allocation4 + $0x60] sm:$0xff]
        %v2871 = vld [vmem:[#allocation4 + $0x68] sm:$0xff]
        %v2872 = vld [vmem:[#allocation4 + $0x70] sm:$0xff]
        %v2873 = vld [vmem:[#allocation4 + $0x78] sm:$0xff]
        %v2874 = vld [vmem:[#allocation4 + $0x80] sm:$0xff]
        %v2875 = vld [vmem:[#allocation4 + $0x90] sm:$0xff]
        %v2876 = vld [vmem:[#allocation4 + $0x98] sm:$0xff]
        %v2877 = vld [vmem:[#allocation4 + $0xa0] sm:$0xff]
        %v2878 = vld [vmem:[#allocation4 + $0xa8] sm:$0xff]
        %v2879 = vld [vmem:[#allocation4 + $0xb0] sm:$0xff]
        %v2880 = vld [vmem:[%s897] ss:$8 sm:$0xf]
        %v2882 = vlaneseq
        %v2883 = vshrl.u32 %v2882, 7
        %v2884 = vsub.s32 0, %v2883
        %v2885 = vrot.slane %v2880, %v2884
        %v2886 = vlaneseq
        %v2887 = vshrl.u32 %v2886, 7
        %v2888 = vsub.s32 1, %v2887
        %v2889 = vrot.slane %v2880, %v2888
        %v2890 = vlaneseq
        %v2891 = vshrl.u32 %v2890, 7
        %v2892 = vsub.s32 2, %v2891
        %v2893 = vrot.slane %v2880, %v2892
        %v2894 = vlaneseq
        %v2895 = vshrl.u32 %v2894, 7
        %v2896 = vsub.s32 3, %v2895
        %v2897 = vrot.slane %v2880, %v2896
        %vm2902 = vcmp.gt.f32.partialorder %v2885, 0.5
        %vm2903 = vcmp.gt.f32.partialorder %v2889, 0.5
        %vm2904 = vcmp.gt.f32.partialorder %v2893, 0.5
        %vm2905 = vcmp.gt.f32.partialorder %v2897, 0.5
        %2926 = vrot.lane.b32.xlu0 %v2860, 1
        %v2927 = vpop.permute.xlu0 %2926
        %2928 = vrot.lane.b32.xlu0 %v2861, 1
        %v2929 = vpop.permute.xlu0 %2928
        %2930 = vrot.lane.b32.xlu0 %v2862, 1
        %v2931 = vpop.permute.xlu0 %2930
        %2932 = vrot.lane.b32.xlu0 %v2863, 1
        %v2933 = vpop.permute.xlu0 %2932
        %2934 = vrot.lane.b32.xlu0 %v2864, 1
        %v2935 = vpop.permute.xlu0 %2934
        %2936 = vrot.lane.b32.xlu0 %v2865, 1
        %v2937 = vpop.permute.xlu0 %2936
        %2938 = vrot.lane.b32.xlu0 %v2866, 1
        %v2939 = vpop.permute.xlu0 %2938
        %2940 = vrot.lane.b32.xlu0 %v2867, 1
        %v2941 = vpop.permute.xlu0 %2940
        %2942 = vrot.lane.b32.xlu0 %v2868, 1
        %v2943 = vpop.permute.xlu0 %2942
        %2944 = vrot.lane.b32.xlu0 %v2869, 1
        %v2945 = vpop.permute.xlu0 %2944
        %2946 = vrot.lane.b32.xlu0 %v2870, 1
        %v2947 = vpop.permute.xlu0 %2946
        %2948 = vrot.lane.b32.xlu0 %v2871, 1
        %v2949 = vpop.permute.xlu0 %2948
        %2950 = vrot.lane.b32.xlu0 %v2872, 1
        %v2951 = vpop.permute.xlu0 %2950
        %2952 = vrot.lane.b32.xlu0 %v2873, 1
        %v2953 = vpop.permute.xlu0 %2952
        %2954 = vrot.lane.b32.xlu0 %v2874, 1
        %v2955 = vpop.permute.xlu0 %2954
        %2956 = vrot.lane.b32.xlu0 %v2875, 1
        %v2957 = vpop.permute.xlu0 %2956
        %2958 = vrot.lane.b32.xlu0 %v2876, 1
        %v2959 = vpop.permute.xlu0 %2958
        %2960 = vrot.lane.b32.xlu0 %v2877, 1
        %v2961 = vpop.permute.xlu0 %2960
        %2962 = vrot.lane.b32.xlu0 %v2878, 1
        %v2963 = vpop.permute.xlu0 %2962
        %2964 = vrot.lane.b32.xlu0 %v2879, 1
        %v2965 = vpop.permute.xlu0 %2964
        %v2966 = vsel %vm984, %v2927, %v2929
        %v2967 = vsel %vm984, %v2929, %v2931
        %v2968 = vsel %vm984, %v2931, %v2933
        %v2969 = vsel %vm984, %v2933, %v2935
        %v2970 = vsel %vm984, %v2937, %v2939
        %v2971 = vsel %vm984, %v2939, %v2941
        %v2972 = vsel %vm984, %v2941, %v2943
        %v2973 = vsel %vm984, %v2943, %v2945
        %v2974 = vsel %vm984, %v2947, %v2949
        %v2975 = vsel %vm984, %v2949, %v2951
        %v2976 = vsel %vm984, %v2951, %v2953
        %v2977 = vsel %vm984, %v2953, %v2955
        %v2978 = vsel %vm984, %v2957, %v2959
        %v2979 = vsel %vm984, %v2959, %v2961
        %v2980 = vsel %vm984, %v2961, %v2963
        %v2981 = vsel %vm984, %v2963, %v2965
        %v2998 = vsel %vm2902, %v2966, 0.0
        %v2999 = vsel %vm2903, %v2967, 0.0
        %v3000 = vsel %vm2904, %v2968, 0.0
        %v3001 = vsel %vm2905, %v2969, 0.0
        %v3002 = vsel %vm2902, %v2970, 0.0
        %v3003 = vsel %vm2903, %v2971, 0.0
        %v3004 = vsel %vm2904, %v2972, 0.0
        %v3005 = vsel %vm2905, %v2973, 0.0
        %v3006 = vsel %vm2902, %v2974, 0.0
        %v3007 = vsel %vm2903, %v2975, 0.0
        %v3008 = vsel %vm2904, %v2976, 0.0
        %v3009 = vsel %vm2905, %v2977, 0.0
        %v3010 = vsel %vm2902, %v2978, 0.0
        %v3011 = vsel %vm2903, %v2979, 0.0
        %v3012 = vsel %vm2904, %v2980, 0.0
        %v3013 = vsel %vm2905, %v2981, 0.0
        %3014 = vst [vmem:[#allocation2 + $0x180] sm:$0xff] %v2998
        %3015 = vst [vmem:[#allocation2 + $0x188] sm:$0xff] %v2999
        %3016 = vst [vmem:[#allocation2 + $0x190] sm:$0xff] %v3000
        %3017 = vst [vmem:[#allocation2 + $0x198] sm:$0xff] %v3001
        %3018 = vst [vmem:[#allocation2 + $0x1a0] sm:$0xff] %v3002
        %3019 = vst [vmem:[#allocation2 + $0x1a8] sm:$0xff] %v3003
        %3020 = vst [vmem:[#allocation2 + $0x1b0] sm:$0xff] %v3004
        %3021 = vst [vmem:[#allocation2 + $0x1b8] sm:$0xff] %v3005
        %3022 = vst [vmem:[#allocation2 + $0x1c0] sm:$0xff] %v3006
        %3023 = vst [vmem:[#allocation2 + $0x1c8] sm:$0xff] %v3007
        %3024 = vst [vmem:[#allocation2 + $0x1d0] sm:$0xff] %v3008
        %3025 = vst [vmem:[#allocation2 + $0x1d8] sm:$0xff] %v3009
        %3026 = vst [vmem:[#allocation2 + $0x1e0] sm:$0xff] %v3010
        %3027 = vst [vmem:[#allocation2 + $0x1e8] sm:$0xff] %v3011
        %3028 = vst [vmem:[#allocation2 + $0x1f0] sm:$0xff] %v3012
        %3029 = vst [vmem:[#allocation2 + $0x1f8] sm:$0xff] %v3013
        %v3030 = vld [vmem:[#allocation4 + $0x8] sm:$0xff]
        %v3031 = vld [vmem:[#allocation4 + $0x10] sm:$0xff]
        %v3032 = vld [vmem:[#allocation4 + $0x18] sm:$0xff]
        %v3033 = vld [vmem:[#allocation4 + $0x20] sm:$0xff]
        %v3034 = vld [vmem:[#allocation4 + $0x38] sm:$0xff]
        %v3035 = vld [vmem:[#allocation4 + $0x40] sm:$0xff]
        %v3036 = vld [vmem:[#allocation4 + $0x48] sm:$0xff]
        %v3037 = vld [vmem:[#allocation4 + $0x50] sm:$0xff]
        %v3038 = vld [vmem:[#allocation4 + $0x68] sm:$0xff]
        %v3039 = vld [vmem:[#allocation4 + $0x70] sm:$0xff]
        %v3040 = vld [vmem:[#allocation4 + $0x78] sm:$0xff]
        %v3041 = vld [vmem:[#allocation4 + $0x80] sm:$0xff]
        %v3042 = vld [vmem:[#allocation4 + $0x98] sm:$0xff]
        %v3043 = vld [vmem:[#allocation4 + $0xa0] sm:$0xff]
        %v3044 = vld [vmem:[#allocation4 + $0xa8] sm:$0xff]
        %v3045 = vld [vmem:[#allocation4 + $0xb0] sm:$0xff]
        %3046 = vst [vmem:[#allocation2 + $0x200] sm:$0xff] %v3030
        %3047 = vst [vmem:[#allocation2 + $0x208] sm:$0xff] %v3031
        %3048 = vst [vmem:[#allocation2 + $0x210] sm:$0xff] %v3032
        %3049 = vst [vmem:[#allocation2 + $0x218] sm:$0xff] %v3033
        %3050 = vst [vmem:[#allocation2 + $0x220] sm:$0xff] %v3034
        %3051 = vst [vmem:[#allocation2 + $0x228] sm:$0xff] %v3035
        %3052 = vst [vmem:[#allocation2 + $0x230] sm:$0xff] %v3036
        %3053 = vst [vmem:[#allocation2 + $0x238] sm:$0xff] %v3037
        %3054 = vst [vmem:[#allocation2 + $0x240] sm:$0xff] %v3038
        %3055 = vst [vmem:[#allocation2 + $0x248] sm:$0xff] %v3039
        %3056 = vst [vmem:[#allocation2 + $0x250] sm:$0xff] %v3040
        %3057 = vst [vmem:[#allocation2 + $0x258] sm:$0xff] %v3041
        %3058 = vst [vmem:[#allocation2 + $0x260] sm:$0xff] %v3042
        %3059 = vst [vmem:[#allocation2 + $0x268] sm:$0xff] %v3043
        %3060 = vst [vmem:[#allocation2 + $0x270] sm:$0xff] %v3044
        %3061 = vst [vmem:[#allocation2 + $0x278] sm:$0xff] %v3045
        %v3062 = vld [vmem:[#allocation4 + $0x8] sm:$0xff]
        %v3063 = vld [vmem:[#allocation4 + $0x10] sm:$0xff]
        %v3064 = vld [vmem:[#allocation4 + $0x18] sm:$0xff]
        %v3065 = vld [vmem:[#allocation4 + $0x20] sm:$0xff]
        %v3066 = vld [vmem:[#allocation4 + $0x28] sm:$0xff]
        %v3067 = vld [vmem:[#allocation4 + $0x38] sm:$0xff]
        %v3068 = vld [vmem:[#allocation4 + $0x40] sm:$0xff]
        %v3069 = vld [vmem:[#allocation4 + $0x48] sm:$0xff]
        %v3070 = vld [vmem:[#allocation4 + $0x50] sm:$0xff]
        %v3071 = vld [vmem:[#allocation4 + $0x58] sm:$0xff]
        %v3072 = vld [vmem:[#allocation4 + $0x68] sm:$0xff]
        %v3073 = vld [vmem:[#allocation4 + $0x70] sm:$0xff]
        %v3074 = vld [vmem:[#allocation4 + $0x78] sm:$0xff]
        %v3075 = vld [vmem:[#allocation4 + $0x80] sm:$0xff]
        %v3076 = vld [vmem:[#allocation4 + $0x88] sm:$0xff]
        %v3077 = vld [vmem:[#allocation4 + $0x98] sm:$0xff]
        %v3078 = vld [vmem:[#allocation4 + $0xa0] sm:$0xff]
        %v3079 = vld [vmem:[#allocation4 + $0xa8] sm:$0xff]
        %v3080 = vld [vmem:[#allocation4 + $0xb0] sm:$0xff]
        %v3081 = vld [vmem:[#allocation4 + $0xb8] sm:$0xff]
        %v3082 = vld [vmem:[%s1101] ss:$8 sm:$0xf]
        %v3084 = vlaneseq
        %v3085 = vshrl.u32 %v3084, 7
        %v3086 = vsub.s32 0, %v3085
        %v3087 = vrot.slane %v3082, %v3086
        %v3088 = vlaneseq
        %v3089 = vshrl.u32 %v3088, 7
        %v3090 = vsub.s32 1, %v3089
        %v3091 = vrot.slane %v3082, %v3090
        %v3092 = vlaneseq
        %v3093 = vshrl.u32 %v3092, 7
        %v3094 = vsub.s32 2, %v3093
        %v3095 = vrot.slane %v3082, %v3094
        %v3096 = vlaneseq
        %v3097 = vshrl.u32 %v3096, 7
        %v3098 = vsub.s32 3, %v3097
        %v3099 = vrot.slane %v3082, %v3098
        %vm3104 = vcmp.gt.f32.partialorder %v3087, 0.5
        %vm3105 = vcmp.gt.f32.partialorder %v3091, 0.5
        %vm3106 = vcmp.gt.f32.partialorder %v3095, 0.5
        %vm3107 = vcmp.gt.f32.partialorder %v3099, 0.5
        %3128 = vrot.lane.b32.xlu0 %v3062, 127
        %v3129 = vpop.permute.xlu0 %3128
        %3130 = vrot.lane.b32.xlu0 %v3063, 127
        %v3131 = vpop.permute.xlu0 %3130
        %3132 = vrot.lane.b32.xlu0 %v3064, 127
        %v3133 = vpop.permute.xlu0 %3132
        %3134 = vrot.lane.b32.xlu0 %v3065, 127
        %v3135 = vpop.permute.xlu0 %3134
        %3136 = vrot.lane.b32.xlu0 %v3066, 127
        %v3137 = vpop.permute.xlu0 %3136
        %3138 = vrot.lane.b32.xlu0 %v3067, 127
        %v3139 = vpop.permute.xlu0 %3138
        %3140 = vrot.lane.b32.xlu0 %v3068, 127
        %v3141 = vpop.permute.xlu0 %3140
        %3142 = vrot.lane.b32.xlu0 %v3069, 127
        %v3143 = vpop.permute.xlu0 %3142
        %3144 = vrot.lane.b32.xlu0 %v3070, 127
        %v3145 = vpop.permute.xlu0 %3144
        %3146 = vrot.lane.b32.xlu0 %v3071, 127
        %v3147 = vpop.permute.xlu0 %3146
        %3148 = vrot.lane.b32.xlu0 %v3072, 127
        %v3149 = vpop.permute.xlu0 %3148
        %3150 = vrot.lane.b32.xlu0 %v3073, 127
        %v3151 = vpop.permute.xlu0 %3150
        %3152 = vrot.lane.b32.xlu0 %v3074, 127
        %v3153 = vpop.permute.xlu0 %3152
        %3154 = vrot.lane.b32.xlu0 %v3075, 127
        %v3155 = vpop.permute.xlu0 %3154
        %3156 = vrot.lane.b32.xlu0 %v3076, 127
        %v3157 = vpop.permute.xlu0 %3156
        %3158 = vrot.lane.b32.xlu0 %v3077, 127
        %v3159 = vpop.permute.xlu0 %3158
        %3160 = vrot.lane.b32.xlu0 %v3078, 127
        %v3161 = vpop.permute.xlu0 %3160
        %3162 = vrot.lane.b32.xlu0 %v3079, 127
        %v3163 = vpop.permute.xlu0 %3162
        %3164 = vrot.lane.b32.xlu0 %v3080, 127
        %v3165 = vpop.permute.xlu0 %3164
        %3166 = vrot.lane.b32.xlu0 %v3081, 127
        %v3167 = vpop.permute.xlu0 %3166
        %v3168 = vsel %vm1188, %v3129, %v3131
        %v3169 = vsel %vm1188, %v3131, %v3133
        %v3170 = vsel %vm1188, %v3133, %v3135
        %v3171 = vsel %vm1188, %v3135, %v3137
        %v3172 = vsel %vm1188, %v3139, %v3141
        %v3173 = vsel %vm1188, %v3141, %v3143
        %v3174 = vsel %vm1188, %v3143, %v3145
        %v3175 = vsel %vm1188, %v3145, %v3147
        %v3176 = vsel %vm1188, %v3149, %v3151
        %v3177 = vsel %vm1188, %v3151, %v3153
        %v3178 = vsel %vm1188, %v3153, %v3155
        %v3179 = vsel %vm1188, %v3155, %v3157
        %v3180 = vsel %vm1188, %v3159, %v3161
        %v3181 = vsel %vm1188, %v3161, %v3163
        %v3182 = vsel %vm1188, %v3163, %v3165
        %v3183 = vsel %vm1188, %v3165, %v3167
        %v3200 = vsel %vm3104, %v3168, 0.0
        %v3201 = vsel %vm3105, %v3169, 0.0
        %v3202 = vsel %vm3106, %v3170, 0.0
        %v3203 = vsel %vm3107, %v3171, 0.0
        %v3204 = vsel %vm3104, %v3172, 0.0
        %v3205 = vsel %vm3105, %v3173, 0.0
        %v3206 = vsel %vm3106, %v3174, 0.0
        %v3207 = vsel %vm3107, %v3175, 0.0
        %v3208 = vsel %vm3104, %v3176, 0.0
        %v3209 = vsel %vm3105, %v3177, 0.0
        %v3210 = vsel %vm3106, %v3178, 0.0
        %v3211 = vsel %vm3107, %v3179, 0.0
        %v3212 = vsel %vm3104, %v3180, 0.0
        %v3213 = vsel %vm3105, %v3181, 0.0
        %v3214 = vsel %vm3106, %v3182, 0.0
        %v3215 = vsel %vm3107, %v3183, 0.0
        %3216 = vst [vmem:[#allocation2 + $0x280] sm:$0xff] %v3200
        %3217 = vst [vmem:[#allocation2 + $0x288] sm:$0xff] %v3201
        %3218 = vst [vmem:[#allocation2 + $0x290] sm:$0xff] %v3202
        %3219 = vst [vmem:[#allocation2 + $0x298] sm:$0xff] %v3203
        %3220 = vst [vmem:[#allocation2 + $0x2a0] sm:$0xff] %v3204
        %3221 = vst [vmem:[#allocation2 + $0x2a8] sm:$0xff] %v3205
        %3222 = vst [vmem:[#allocation2 + $0x2b0] sm:$0xff] %v3206
        %3223 = vst [vmem:[#allocation2 + $0x2b8] sm:$0xff] %v3207
        %3224 = vst [vmem:[#allocation2 + $0x2c0] sm:$0xff] %v3208
        %3225 = vst [vmem:[#allocation2 + $0x2c8] sm:$0xff] %v3209
        %3226 = vst [vmem:[#allocation2 + $0x2d0] sm:$0xff] %v3210
        %3227 = vst [vmem:[#allocation2 + $0x2d8] sm:$0xff] %v3211
        %3228 = vst [vmem:[#allocation2 + $0x2e0] sm:$0xff] %v3212
        %3229 = vst [vmem:[#allocation2 + $0x2e8] sm:$0xff] %v3213
        %3230 = vst [vmem:[#allocation2 + $0x2f0] sm:$0xff] %v3214
        %3231 = vst [vmem:[#allocation2 + $0x2f8] sm:$0xff] %v3215
        %v3232 = vld [vmem:[#allocation4 + $0x8] sm:$0xff]
        %v3233 = vld [vmem:[#allocation4 + $0x10] sm:$0xff]
        %v3234 = vld [vmem:[#allocation4 + $0x18] sm:$0xff]
        %v3235 = vld [vmem:[#allocation4 + $0x20] sm:$0xff]
        %v3236 = vld [vmem:[#allocation4 + $0x28] sm:$0xff]
        %v3237 = vld [vmem:[#allocation4 + $0x38] sm:$0xff]
        %v3238 = vld [vmem:[#allocation4 + $0x40] sm:$0xff]
        %v3239 = vld [vmem:[#allocation4 + $0x48] sm:$0xff]
        %v3240 = vld [vmem:[#allocation4 + $0x50] sm:$0xff]
        %v3241 = vld [vmem:[#allocation4 + $0x58] sm:$0xff]
        %v3242 = vld [vmem:[#allocation4 + $0x68] sm:$0xff]
        %v3243 = vld [vmem:[#allocation4 + $0x70] sm:$0xff]
        %v3244 = vld [vmem:[#allocation4 + $0x78] sm:$0xff]
        %v3245 = vld [vmem:[#allocation4 + $0x80] sm:$0xff]
        %v3246 = vld [vmem:[#allocation4 + $0x88] sm:$0xff]
        %v3247 = vld [vmem:[#allocation4 + $0x98] sm:$0xff]
        %v3248 = vld [vmem:[#allocation4 + $0xa0] sm:$0xff]
        %v3249 = vld [vmem:[#allocation4 + $0xa8] sm:$0xff]
        %v3250 = vld [vmem:[#allocation4 + $0xb0] sm:$0xff]
        %v3251 = vld [vmem:[#allocation4 + $0xb8] sm:$0xff]
        %v3252 = vld [vmem:[%s1273] ss:$8 sm:$0xf]
        %v3254 = vlaneseq
        %v3255 = vshrl.u32 %v3254, 7
        %v3256 = vsub.s32 0, %v3255
        %v3257 = vrot.slane %v3252, %v3256
        %v3258 = vlaneseq
        %v3259 = vshrl.u32 %v3258, 7
        %v3260 = vsub.s32 1, %v3259
        %v3261 = vrot.slane %v3252, %v3260
        %v3262 = vlaneseq
        %v3263 = vshrl.u32 %v3262, 7
        %v3264 = vsub.s32 2, %v3263
        %v3265 = vrot.slane %v3252, %v3264
        %v3266 = vlaneseq
        %v3267 = vshrl.u32 %v3266, 7
        %v3268 = vsub.s32 3, %v3267
        %v3269 = vrot.slane %v3252, %v3268
        %vm3274 = vcmp.gt.f32.partialorder %v3257, 0.5
        %vm3275 = vcmp.gt.f32.partialorder %v3261, 0.5
        %vm3276 = vcmp.gt.f32.partialorder %v3265, 0.5
        %vm3277 = vcmp.gt.f32.partialorder %v3269, 0.5
        %3298 = vrot.lane.b32.xlu0 %v3232, 113
        %v3299 = vpop.permute.xlu0 %3298
        %3300 = vrot.lane.b32.xlu0 %v3233, 113
        %v3301 = vpop.permute.xlu0 %3300
        %3302 = vrot.lane.b32.xlu0 %v3234, 113
        %v3303 = vpop.permute.xlu0 %3302
        %3304 = vrot.lane.b32.xlu0 %v3235, 113
        %v3305 = vpop.permute.xlu0 %3304
        %3306 = vrot.lane.b32.xlu0 %v3236, 113
        %v3307 = vpop.permute.xlu0 %3306
        %3308 = vrot.lane.b32.xlu0 %v3237, 113
        %v3309 = vpop.permute.xlu0 %3308
        %3310 = vrot.lane.b32.xlu0 %v3238, 113
        %v3311 = vpop.permute.xlu0 %3310
        %3312 = vrot.lane.b32.xlu0 %v3239, 113
        %v3313 = vpop.permute.xlu0 %3312
        %3314 = vrot.lane.b32.xlu0 %v3240, 113
        %v3315 = vpop.permute.xlu0 %3314
        %3316 = vrot.lane.b32.xlu0 %v3241, 113
        %v3317 = vpop.permute.xlu0 %3316
        %3318 = vrot.lane.b32.xlu0 %v3242, 113
        %v3319 = vpop.permute.xlu0 %3318
        %3320 = vrot.lane.b32.xlu0 %v3243, 113
        %v3321 = vpop.permute.xlu0 %3320
        %3322 = vrot.lane.b32.xlu0 %v3244, 113
        %v3323 = vpop.permute.xlu0 %3322
        %3324 = vrot.lane.b32.xlu0 %v3245, 113
        %v3325 = vpop.permute.xlu0 %3324
        %3326 = vrot.lane.b32.xlu0 %v3246, 113
        %v3327 = vpop.permute.xlu0 %3326
        %3328 = vrot.lane.b32.xlu0 %v3247, 113
        %v3329 = vpop.permute.xlu0 %3328
        %3330 = vrot.lane.b32.xlu0 %v3248, 113
        %v3331 = vpop.permute.xlu0 %3330
        %3332 = vrot.lane.b32.xlu0 %v3249, 113
        %v3333 = vpop.permute.xlu0 %3332
        %3334 = vrot.lane.b32.xlu0 %v3250, 113
        %v3335 = vpop.permute.xlu0 %3334
        %3336 = vrot.lane.b32.xlu0 %v3251, 113
        %v3337 = vpop.permute.xlu0 %3336
        %v3338 = vsel %vm1360, %v3299, %v3301
        %v3339 = vsel %vm1360, %v3301, %v3303
        %v3340 = vsel %vm1360, %v3303, %v3305
        %v3341 = vsel %vm1360, %v3305, %v3307
        %v3342 = vsel %vm1360, %v3309, %v3311
        %v3343 = vsel %vm1360, %v3311, %v3313
        %v3344 = vsel %vm1360, %v3313, %v3315
        %v3345 = vsel %vm1360, %v3315, %v3317
        %v3346 = vsel %vm1360, %v3319, %v3321
        %v3347 = vsel %vm1360, %v3321, %v3323
        %v3348 = vsel %vm1360, %v3323, %v3325
        %v3349 = vsel %vm1360, %v3325, %v3327
        %v3350 = vsel %vm1360, %v3329, %v3331
        %v3351 = vsel %vm1360, %v3331, %v3333
        %v3352 = vsel %vm1360, %v3333, %v3335
        %v3353 = vsel %vm1360, %v3335, %v3337
        %v3370 = vsel %vm3274, %v3338, 0.0
        %v3371 = vsel %vm3275, %v3339, 0.0
        %v3372 = vsel %vm3276, %v3340, 0.0
        %v3373 = vsel %vm3277, %v3341, 0.0
        %v3374 = vsel %vm3274, %v3342, 0.0
        %v3375 = vsel %vm3275, %v3343, 0.0
        %v3376 = vsel %vm3276, %v3344, 0.0
        %v3377 = vsel %vm3277, %v3345, 0.0
        %v3378 = vsel %vm3274, %v3346, 0.0
        %v3379 = vsel %vm3275, %v3347, 0.0
        %v3380 = vsel %vm3276, %v3348, 0.0
        %v3381 = vsel %vm3277, %v3349, 0.0
        %v3382 = vsel %vm3274, %v3350, 0.0
        %v3383 = vsel %vm3275, %v3351, 0.0
        %v3384 = vsel %vm3276, %v3352, 0.0
        %v3385 = vsel %vm3277, %v3353, 0.0
        %3386 = vst [vmem:[#allocation2 + $0x300] sm:$0xff] %v3370
        %3387 = vst [vmem:[#allocation2 + $0x308] sm:$0xff] %v3371
        %3388 = vst [vmem:[#allocation2 + $0x310] sm:$0xff] %v3372
        %3389 = vst [vmem:[#allocation2 + $0x318] sm:$0xff] %v3373
        %3390 = vst [vmem:[#allocation2 + $0x320] sm:$0xff] %v3374
        %3391 = vst [vmem:[#allocation2 + $0x328] sm:$0xff] %v3375
        %3392 = vst [vmem:[#allocation2 + $0x330] sm:$0xff] %v3376
        %3393 = vst [vmem:[#allocation2 + $0x338] sm:$0xff] %v3377
        %3394 = vst [vmem:[#allocation2 + $0x340] sm:$0xff] %v3378
        %3395 = vst [vmem:[#allocation2 + $0x348] sm:$0xff] %v3379
        %3396 = vst [vmem:[#allocation2 + $0x350] sm:$0xff] %v3380
        %3397 = vst [vmem:[#allocation2 + $0x358] sm:$0xff] %v3381
        %3398 = vst [vmem:[#allocation2 + $0x360] sm:$0xff] %v3382
        %3399 = vst [vmem:[#allocation2 + $0x368] sm:$0xff] %v3383
        %3400 = vst [vmem:[#allocation2 + $0x370] sm:$0xff] %v3384
        %3401 = vst [vmem:[#allocation2 + $0x378] sm:$0xff] %v3385
        %v3402 = vld [vmem:[#allocation4 + $0x8] sm:$0xff]
        %v3403 = vld [vmem:[#allocation4 + $0x10] sm:$0xff]
        %v3404 = vld [vmem:[#allocation4 + $0x18] sm:$0xff]
        %v3405 = vld [vmem:[#allocation4 + $0x20] sm:$0xff]
        %v3406 = vld [vmem:[#allocation4 + $0x28] sm:$0xff]
        %v3407 = vld [vmem:[#allocation4 + $0x38] sm:$0xff]
        %v3408 = vld [vmem:[#allocation4 + $0x40] sm:$0xff]
        %v3409 = vld [vmem:[#allocation4 + $0x48] sm:$0xff]
        %v3410 = vld [vmem:[#allocation4 + $0x50] sm:$0xff]
        %v3411 = vld [vmem:[#allocation4 + $0x58] sm:$0xff]
        %v3412 = vld [vmem:[#allocation4 + $0x68] sm:$0xff]
        %v3413 = vld [vmem:[#allocation4 + $0x70] sm:$0xff]
        %v3414 = vld [vmem:[#allocation4 + $0x78] sm:$0xff]
        %v3415 = vld [vmem:[#allocation4 + $0x80] sm:$0xff]
        %v3416 = vld [vmem:[#allocation4 + $0x88] sm:$0xff]
        %v3417 = vld [vmem:[#allocation4 + $0x98] sm:$0xff]
        %v3418 = vld [vmem:[#allocation4 + $0xa0] sm:$0xff]
        %v3419 = vld [vmem:[#allocation4 + $0xa8] sm:$0xff]
        %v3420 = vld [vmem:[#allocation4 + $0xb0] sm:$0xff]
        %v3421 = vld [vmem:[#allocation4 + $0xb8] sm:$0xff]
        %v3422 = vld [vmem:[%s1445] ss:$8 sm:$0xf]
        %v3424 = vlaneseq
        %v3425 = vshrl.u32 %v3424, 7
        %v3426 = vsub.s32 0, %v3425
        %v3427 = vrot.slane %v3422, %v3426
        %v3428 = vlaneseq
        %v3429 = vshrl.u32 %v3428, 7
        %v3430 = vsub.s32 1, %v3429
        %v3431 = vrot.slane %v3422, %v3430
        %v3432 = vlaneseq
        %v3433 = vshrl.u32 %v3432, 7
        %v3434 = vsub.s32 2, %v3433
        %v3435 = vrot.slane %v3422, %v3434
        %v3436 = vlaneseq
        %v3437 = vshrl.u32 %v3436, 7
        %v3438 = vsub.s32 3, %v3437
        %v3439 = vrot.slane %v3422, %v3438
        %vm3444 = vcmp.gt.f32.partialorder %v3427, 0.5
        %vm3445 = vcmp.gt.f32.partialorder %v3431, 0.5
        %vm3446 = vcmp.gt.f32.partialorder %v3435, 0.5
        %vm3447 = vcmp.gt.f32.partialorder %v3439, 0.5
        %3468 = vrot.lane.b32.xlu0 %v3402, 112
        %v3469 = vpop.permute.xlu0 %3468
        %3470 = vrot.lane.b32.xlu0 %v3403, 112
        %v3471 = vpop.permute.xlu0 %3470
        %3472 = vrot.lane.b32.xlu0 %v3404, 112
        %v3473 = vpop.permute.xlu0 %3472
        %3474 = vrot.lane.b32.xlu0 %v3405, 112
        %v3475 = vpop.permute.xlu0 %3474
        %3476 = vrot.lane.b32.xlu0 %v3406, 112
        %v3477 = vpop.permute.xlu0 %3476
        %3478 = vrot.lane.b32.xlu0 %v3407, 112
        %v3479 = vpop.permute.xlu0 %3478
        %3480 = vrot.lane.b32.xlu0 %v3408, 112
        %v3481 = vpop.permute.xlu0 %3480
        %3482 = vrot.lane.b32.xlu0 %v3409, 112
        %v3483 = vpop.permute.xlu0 %3482
        %3484 = vrot.lane.b32.xlu0 %v3410, 112
        %v3485 = vpop.permute.xlu0 %3484
        %3486 = vrot.lane.b32.xlu0 %v3411, 112
        %v3487 = vpop.permute.xlu0 %3486
        %3488 = vrot.lane.b32.xlu0 %v3412, 112
        %v3489 = vpop.permute.xlu0 %3488
        %3490 = vrot.lane.b32.xlu0 %v3413, 112
        %v3491 = vpop.permute.xlu0 %3490
        %3492 = vrot.lane.b32.xlu0 %v3414, 112
        %v3493 = vpop.permute.xlu0 %3492
        %3494 = vrot.lane.b32.xlu0 %v3415, 112
        %v3495 = vpop.permute.xlu0 %3494
        %3496 = vrot.lane.b32.xlu0 %v3416, 112
        %v3497 = vpop.permute.xlu0 %3496
        %3498 = vrot.lane.b32.xlu0 %v3417, 112
        %v3499 = vpop.permute.xlu0 %3498
        %3500 = vrot.lane.b32.xlu0 %v3418, 112
        %v3501 = vpop.permute.xlu0 %3500
        %3502 = vrot.lane.b32.xlu0 %v3419, 112
        %v3503 = vpop.permute.xlu0 %3502
        %3504 = vrot.lane.b32.xlu0 %v3420, 112
        %v3505 = vpop.permute.xlu0 %3504
        %3506 = vrot.lane.b32.xlu0 %v3421, 112
        %v3507 = vpop.permute.xlu0 %3506
        %v3508 = vsel %vm1532, %v3469, %v3471
        %v3509 = vsel %vm1532, %v3471, %v3473
        %v3510 = vsel %vm1532, %v3473, %v3475
        %v3511 = vsel %vm1532, %v3475, %v3477
        %v3512 = vsel %vm1532, %v3479, %v3481
        %v3513 = vsel %vm1532, %v3481, %v3483
        %v3514 = vsel %vm1532, %v3483, %v3485
        %v3515 = vsel %vm1532, %v3485, %v3487
        %v3516 = vsel %vm1532, %v3489, %v3491
        %v3517 = vsel %vm1532, %v3491, %v3493
        %v3518 = vsel %vm1532, %v3493, %v3495
        %v3519 = vsel %vm1532, %v3495, %v3497
        %v3520 = vsel %vm1532, %v3499, %v3501
        %v3521 = vsel %vm1532, %v3501, %v3503
        %v3522 = vsel %vm1532, %v3503, %v3505
        %v3523 = vsel %vm1532, %v3505, %v3507
        %v3540 = vsel %vm3444, %v3508, 0.0
        %v3541 = vsel %vm3445, %v3509, 0.0
        %v3542 = vsel %vm3446, %v3510, 0.0
        %v3543 = vsel %vm3447, %v3511, 0.0
        %v3544 = vsel %vm3444, %v3512, 0.0
        %v3545 = vsel %vm3445, %v3513, 0.0
        %v3546 = vsel %vm3446, %v3514, 0.0
        %v3547 = vsel %vm3447, %v3515, 0.0
        %v3548 = vsel %vm3444, %v3516, 0.0
        %v3549 = vsel %vm3445, %v3517, 0.0
        %v3550 = vsel %vm3446, %v3518, 0.0
        %v3551 = vsel %vm3447, %v3519, 0.0
        %v3552 = vsel %vm3444, %v3520, 0.0
        %v3553 = vsel %vm3445, %v3521, 0.0
        %v3554 = vsel %vm3446, %v3522, 0.0
        %v3555 = vsel %vm3447, %v3523, 0.0
        %3556 = vst [vmem:[#allocation2 + $0x380] sm:$0xff] %v3540
        %3557 = vst [vmem:[#allocation2 + $0x388] sm:$0xff] %v3541
        %3558 = vst [vmem:[#allocation2 + $0x390] sm:$0xff] %v3542
        %3559 = vst [vmem:[#allocation2 + $0x398] sm:$0xff] %v3543
        %3560 = vst [vmem:[#allocation2 + $0x3a0] sm:$0xff] %v3544
        %3561 = vst [vmem:[#allocation2 + $0x3a8] sm:$0xff] %v3545
        %3562 = vst [vmem:[#allocation2 + $0x3b0] sm:$0xff] %v3546
        %3563 = vst [vmem:[#allocation2 + $0x3b8] sm:$0xff] %v3547
        %3564 = vst [vmem:[#allocation2 + $0x3c0] sm:$0xff] %v3548
        %3565 = vst [vmem:[#allocation2 + $0x3c8] sm:$0xff] %v3549
        %3566 = vst [vmem:[#allocation2 + $0x3d0] sm:$0xff] %v3550
        %3567 = vst [vmem:[#allocation2 + $0x3d8] sm:$0xff] %v3551
        %3568 = vst [vmem:[#allocation2 + $0x3e0] sm:$0xff] %v3552
        %3569 = vst [vmem:[#allocation2 + $0x3e8] sm:$0xff] %v3553
        %3570 = vst [vmem:[#allocation2 + $0x3f0] sm:$0xff] %v3554
        %3571 = vst [vmem:[#allocation2 + $0x3f8] sm:$0xff] %v3555
        %v3572 = vld [vmem:[#allocation4 + $0x8] sm:$0xff]
        %v3573 = vld [vmem:[#allocation4 + $0x10] sm:$0xff]
        %v3574 = vld [vmem:[#allocation4 + $0x18] sm:$0xff]
        %v3575 = vld [vmem:[#allocation4 + $0x20] sm:$0xff]
        %v3576 = vld [vmem:[#allocation4 + $0x28] sm:$0xff]
        %v3577 = vld [vmem:[#allocation4 + $0x38] sm:$0xff]
        %v3578 = vld [vmem:[#allocation4 + $0x40] sm:$0xff]
        %v3579 = vld [vmem:[#allocation4 + $0x48] sm:$0xff]
        %v3580 = vld [vmem:[#allocation4 + $0x50] sm:$0xff]
        %v3581 = vld [vmem:[#allocation4 + $0x58] sm:$0xff]
        %v3582 = vld [vmem:[#allocation4 + $0x68] sm:$0xff]
        %v3583 = vld [vmem:[#allocation4 + $0x70] sm:$0xff]
        %v3584 = vld [vmem:[#allocation4 + $0x78] sm:$0xff]
        %v3585 = vld [vmem:[#allocation4 + $0x80] sm:$0xff]
        %v3586 = vld [vmem:[#allocation4 + $0x88] sm:$0xff]
        %v3587 = vld [vmem:[#allocation4 + $0x98] sm:$0xff]
        %v3588 = vld [vmem:[#allocation4 + $0xa0] sm:$0xff]
        %v3589 = vld [vmem:[#allocation4 + $0xa8] sm:$0xff]
        %v3590 = vld [vmem:[#allocation4 + $0xb0] sm:$0xff]
        %v3591 = vld [vmem:[#allocation4 + $0xb8] sm:$0xff]
        %v3592 = vld [vmem:[%s1617] ss:$8 sm:$0xf]
        %v3594 = vlaneseq
        %v3595 = vshrl.u32 %v3594, 7
        %v3596 = vsub.s32 0, %v3595
        %v3597 = vrot.slane %v3592, %v3596
        %v3598 = vlaneseq
        %v3599 = vshrl.u32 %v3598, 7
        %v3600 = vsub.s32 1, %v3599
        %v3601 = vrot.slane %v3592, %v3600
        %v3602 = vlaneseq
        %v3603 = vshrl.u32 %v3602, 7
        %v3604 = vsub.s32 2, %v3603
        %v3605 = vrot.slane %v3592, %v3604
        %v3606 = vlaneseq
        %v3607 = vshrl.u32 %v3606, 7
        %v3608 = vsub.s32 3, %v3607
        %v3609 = vrot.slane %v3592, %v3608
        %vm3614 = vcmp.gt.f32.partialorder %v3597, 0.5
        %vm3615 = vcmp.gt.f32.partialorder %v3601, 0.5
        %vm3616 = vcmp.gt.f32.partialorder %v3605, 0.5
        %vm3617 = vcmp.gt.f32.partialorder %v3609, 0.5
        %3638 = vrot.lane.b32.xlu0 %v3572, 111
        %v3639 = vpop.permute.xlu0 %3638
        %3640 = vrot.lane.b32.xlu0 %v3573, 111
        %v3641 = vpop.permute.xlu0 %3640
        %3642 = vrot.lane.b32.xlu0 %v3574, 111
        %v3643 = vpop.permute.xlu0 %3642
        %3644 = vrot.lane.b32.xlu0 %v3575, 111
        %v3645 = vpop.permute.xlu0 %3644
        %3646 = vrot.lane.b32.xlu0 %v3576, 111
        %v3647 = vpop.permute.xlu0 %3646
        %3648 = vrot.lane.b32.xlu0 %v3577, 111
        %v3649 = vpop.permute.xlu0 %3648
        %3650 = vrot.lane.b32.xlu0 %v3578, 111
        %v3651 = vpop.permute.xlu0 %3650
        %3652 = vrot.lane.b32.xlu0 %v3579, 111
        %v3653 = vpop.permute.xlu0 %3652
        %3654 = vrot.lane.b32.xlu0 %v3580, 111
        %v3655 = vpop.permute.xlu0 %3654
        %3656 = vrot.lane.b32.xlu0 %v3581, 111
        %v3657 = vpop.permute.xlu0 %3656
        %3658 = vrot.lane.b32.xlu0 %v3582, 111
        %v3659 = vpop.permute.xlu0 %3658
        %3660 = vrot.lane.b32.xlu0 %v3583, 111
        %v3661 = vpop.permute.xlu0 %3660
        %3662 = vrot.lane.b32.xlu0 %v3584, 111
        %v3663 = vpop.permute.xlu0 %3662
        %3664 = vrot.lane.b32.xlu0 %v3585, 111
        %v3665 = vpop.permute.xlu0 %3664
        %3666 = vrot.lane.b32.xlu0 %v3586, 111
        %v3667 = vpop.permute.xlu0 %3666
        %3668 = vrot.lane.b32.xlu0 %v3587, 111
        %v3669 = vpop.permute.xlu0 %3668
        %3670 = vrot.lane.b32.xlu0 %v3588, 111
        %v3671 = vpop.permute.xlu0 %3670
        %3672 = vrot.lane.b32.xlu0 %v3589, 111
        %v3673 = vpop.permute.xlu0 %3672
        %3674 = vrot.lane.b32.xlu0 %v3590, 111
        %v3675 = vpop.permute.xlu0 %3674
        %3676 = vrot.lane.b32.xlu0 %v3591, 111
        %v3677 = vpop.permute.xlu0 %3676
        %v3678 = vsel %vm1704, %v3639, %v3641
        %v3679 = vsel %vm1704, %v3641, %v3643
        %v3680 = vsel %vm1704, %v3643, %v3645
        %v3681 = vsel %vm1704, %v3645, %v3647
        %v3682 = vsel %vm1704, %v3649, %v3651
        %v3683 = vsel %vm1704, %v3651, %v3653
        %v3684 = vsel %vm1704, %v3653, %v3655
        %v3685 = vsel %vm1704, %v3655, %v3657
        %v3686 = vsel %vm1704, %v3659, %v3661
        %v3687 = vsel %vm1704, %v3661, %v3663
        %v3688 = vsel %vm1704, %v3663, %v3665
        %v3689 = vsel %vm1704, %v3665, %v3667
        %v3690 = vsel %vm1704, %v3669, %v3671
        %v3691 = vsel %vm1704, %v3671, %v3673
        %v3692 = vsel %vm1704, %v3673, %v3675
        %v3693 = vsel %vm1704, %v3675, %v3677
        %v3710 = vsel %vm3614, %v3678, 0.0
        %v3711 = vsel %vm3615, %v3679, 0.0
        %v3712 = vsel %vm3616, %v3680, 0.0
        %v3713 = vsel %vm3617, %v3681, 0.0
        %v3714 = vsel %vm3614, %v3682, 0.0
        %v3715 = vsel %vm3615, %v3683, 0.0
        %v3716 = vsel %vm3616, %v3684, 0.0
        %v3717 = vsel %vm3617, %v3685, 0.0
        %v3718 = vsel %vm3614, %v3686, 0.0
        %v3719 = vsel %vm3615, %v3687, 0.0
        %v3720 = vsel %vm3616, %v3688, 0.0
        %v3721 = vsel %vm3617, %v3689, 0.0
        %v3722 = vsel %vm3614, %v3690, 0.0
        %v3723 = vsel %vm3615, %v3691, 0.0
        %v3724 = vsel %vm3616, %v3692, 0.0
        %v3725 = vsel %vm3617, %v3693, 0.0
        %3726 = vst [vmem:[#allocation2 + $0x400] sm:$0xff] %v3710
        %3727 = vst [vmem:[#allocation2 + $0x408] sm:$0xff] %v3711
        %3728 = vst [vmem:[#allocation2 + $0x410] sm:$0xff] %v3712
        %3729 = vst [vmem:[#allocation2 + $0x418] sm:$0xff] %v3713
        %3730 = vst [vmem:[#allocation2 + $0x420] sm:$0xff] %v3714
        %3731 = vst [vmem:[#allocation2 + $0x428] sm:$0xff] %v3715
        %3732 = vst [vmem:[#allocation2 + $0x430] sm:$0xff] %v3716
        %3733 = vst [vmem:[#allocation2 + $0x438] sm:$0xff] %v3717
        %3734 = vst [vmem:[#allocation2 + $0x440] sm:$0xff] %v3718
        %3735 = vst [vmem:[#allocation2 + $0x448] sm:$0xff] %v3719
        %3736 = vst [vmem:[#allocation2 + $0x450] sm:$0xff] %v3720
        %3737 = vst [vmem:[#allocation2 + $0x458] sm:$0xff] %v3721
        %3738 = vst [vmem:[#allocation2 + $0x460] sm:$0xff] %v3722
        %3739 = vst [vmem:[#allocation2 + $0x468] sm:$0xff] %v3723
        %3740 = vst [vmem:[#allocation2 + $0x470] sm:$0xff] %v3724
        %3741 = vst [vmem:[#allocation2 + $0x478] sm:$0xff] %v3725
        %v3742 = vld [vmem:[#allocation8] sm:$0xff]
        %v3743 = vld [vmem:[#allocation8 + $0x8] sm:$0xff]
        %v3744 = vld [vmem:[#allocation8 + $0x10] sm:$0xff]
        %v3745 = vld [vmem:[#allocation8 + $0x18] sm:$0xff]
        %v3746 = vld [vmem:[#allocation8 + $0x20] sm:$0xff]
        %v3747 = vld [vmem:[#allocation8 + $0x28] sm:$0xff]
        %v3748 = vld [vmem:[#allocation8 + $0x30] sm:$0xff]
        %v3749 = vld [vmem:[#allocation8 + $0x38] sm:$0xff]
        %v3750 = vld [vmem:[#allocation8 + $0x40] sm:$0xff]
        %v3751 = vld [vmem:[#allocation8 + $0x48] sm:$0xff]
        %v3752 = vld [vmem:[#allocation8 + $0x50] sm:$0xff]
        %v3753 = vld [vmem:[#allocation8 + $0x58] sm:$0xff]
        %v3754 = vld [vmem:[#allocation2] sm:$0xff]
        %v3755 = vld [vmem:[#allocation2 + $0x8] sm:$0xff]
        %v3756 = vld [vmem:[#allocation2 + $0x10] sm:$0xff]
        %v3757 = vld [vmem:[#allocation2 + $0x18] sm:$0xff]
        %v3758 = vld [vmem:[#allocation2 + $0x20] sm:$0xff]
        %v3759 = vld [vmem:[#allocation2 + $0x28] sm:$0xff]
        %v3760 = vld [vmem:[#allocation2 + $0x30] sm:$0xff]
        %v3761 = vld [vmem:[#allocation2 + $0x38] sm:$0xff]
        %v3762 = vld [vmem:[#allocation2 + $0x40] sm:$0xff]
        %v3763 = vld [vmem:[#allocation2 + $0x48] sm:$0xff]
        %v3764 = vld [vmem:[#allocation2 + $0x50] sm:$0xff]
        %v3765 = vld [vmem:[#allocation2 + $0x58] sm:$0xff]
        %v3766 = vld [vmem:[#allocation2 + $0x60] sm:$0xff]
        %v3767 = vld [vmem:[#allocation2 + $0x68] sm:$0xff]
        %v3768 = vld [vmem:[#allocation2 + $0x70] sm:$0xff]
        %v3769 = vld [vmem:[#allocation2 + $0x78] sm:$0xff]
        %v3770 = vld [vmem:[#allocation2 + $0x80] sm:$0xff]
        %v3771 = vld [vmem:[#allocation2 + $0x88] sm:$0xff]
        %v3772 = vld [vmem:[#allocation2 + $0x90] sm:$0xff]
        %v3773 = vld [vmem:[#allocation2 + $0x98] sm:$0xff]
        %v3774 = vld [vmem:[#allocation2 + $0xa0] sm:$0xff]
        %v3775 = vld [vmem:[#allocation2 + $0xa8] sm:$0xff]
        %v3776 = vld [vmem:[#allocation2 + $0xb0] sm:$0xff]
        %v3777 = vld [vmem:[#allocation2 + $0xb8] sm:$0xff]
        %v3778 = vld [vmem:[#allocation2 + $0xc0] sm:$0xff]
        %v3779 = vld [vmem:[#allocation2 + $0xc8] sm:$0xff]
        %v3780 = vld [vmem:[#allocation2 + $0xd0] sm:$0xff]
        %v3781 = vld [vmem:[#allocation2 + $0xd8] sm:$0xff]
        %v3782 = vld [vmem:[#allocation2 + $0xe0] sm:$0xff]
        %v3783 = vld [vmem:[#allocation2 + $0xe8] sm:$0xff]
        %v3784 = vld [vmem:[#allocation2 + $0xf0] sm:$0xff]
        %v3785 = vld [vmem:[#allocation2 + $0xf8] sm:$0xff]
        %v3786 = vld [vmem:[#allocation2 + $0x100] sm:$0xff]
        %v3787 = vld [vmem:[#allocation2 + $0x108] sm:$0xff]
        %v3788 = vld [vmem:[#allocation2 + $0x110] sm:$0xff]
        %v3789 = vld [vmem:[#allocation2 + $0x118] sm:$0xff]
        %v3790 = vld [vmem:[#allocation2 + $0x120] sm:$0xff]
        %v3791 = vld [vmem:[#allocation2 + $0x128] sm:$0xff]
        %v3792 = vld [vmem:[#allocation2 + $0x130] sm:$0xff]
        %v3793 = vld [vmem:[#allocation2 + $0x138] sm:$0xff]
        %v3794 = vld [vmem:[#allocation2 + $0x140] sm:$0xff]
        %v3795 = vld [vmem:[#allocation2 + $0x148] sm:$0xff]
        %v3796 = vld [vmem:[#allocation2 + $0x150] sm:$0xff]
        %v3797 = vld [vmem:[#allocation2 + $0x158] sm:$0xff]
        %v3798 = vld [vmem:[#allocation2 + $0x160] sm:$0xff]
        %v3799 = vld [vmem:[#allocation2 + $0x168] sm:$0xff]
        %v3800 = vld [vmem:[#allocation2 + $0x170] sm:$0xff]
        %v3801 = vld [vmem:[#allocation2 + $0x178] sm:$0xff]
        %v3802 = vld [vmem:[#allocation2 + $0x180] sm:$0xff]
        %v3803 = vld [vmem:[#allocation2 + $0x188] sm:$0xff]
        %v3804 = vld [vmem:[#allocation2 + $0x190] sm:$0xff]
        %v3805 = vld [vmem:[#allocation2 + $0x198] sm:$0xff]
        %v3806 = vld [vmem:[#allocation2 + $0x1a0] sm:$0xff]
        %v3807 = vld [vmem:[#allocation2 + $0x1a8] sm:$0xff]
        %v3808 = vld [vmem:[#allocation2 + $0x1b0] sm:$0xff]
        %v3809 = vld [vmem:[#allocation2 + $0x1b8] sm:$0xff]
        %v3810 = vld [vmem:[#allocation2 + $0x1c0] sm:$0xff]
        %v3811 = vld [vmem:[#allocation2 + $0x1c8] sm:$0xff]
        %v3812 = vld [vmem:[#allocation2 + $0x1d0] sm:$0xff]
        %v3813 = vld [vmem:[#allocation2 + $0x1d8] sm:$0xff]
        %v3814 = vld [vmem:[#allocation2 + $0x1e0] sm:$0xff]
        %v3815 = vld [vmem:[#allocation2 + $0x1e8] sm:$0xff]
        %v3816 = vld [vmem:[#allocation2 + $0x1f0] sm:$0xff]
        %v3817 = vld [vmem:[#allocation2 + $0x1f8] sm:$0xff]
        %v3818 = vld [vmem:[#allocation2 + $0x200] sm:$0xff]
        %v3819 = vld [vmem:[#allocation2 + $0x208] sm:$0xff]
        %v3820 = vld [vmem:[#allocation2 + $0x210] sm:$0xff]
        %v3821 = vld [vmem:[#allocation2 + $0x218] sm:$0xff]
        %v3822 = vld [vmem:[#allocation2 + $0x220] sm:$0xff]
        %v3823 = vld [vmem:[#allocation2 + $0x228] sm:$0xff]
        %v3824 = vld [vmem:[#allocation2 + $0x230] sm:$0xff]
        %v3825 = vld [vmem:[#allocation2 + $0x238] sm:$0xff]
        %v3826 = vld [vmem:[#allocation2 + $0x240] sm:$0xff]
        %v3827 = vld [vmem:[#allocation2 + $0x248] sm:$0xff]
        %v3828 = vld [vmem:[#allocation2 + $0x250] sm:$0xff]
        %v3829 = vld [vmem:[#allocation2 + $0x258] sm:$0xff]
        %v3830 = vld [vmem:[#allocation2 + $0x260] sm:$0xff]
        %v3831 = vld [vmem:[#allocation2 + $0x268] sm:$0xff]
        %v3832 = vld [vmem:[#allocation2 + $0x270] sm:$0xff]
        %v3833 = vld [vmem:[#allocation2 + $0x278] sm:$0xff]
        %v3834 = vld [vmem:[#allocation2 + $0x280] sm:$0xff]
        %v3835 = vld [vmem:[#allocation2 + $0x288] sm:$0xff]
        %v3836 = vld [vmem:[#allocation2 + $0x290] sm:$0xff]
        %v3837 = vld [vmem:[#allocation2 + $0x298] sm:$0xff]
        %v3838 = vld [vmem:[#allocation2 + $0x2a0] sm:$0xff]
        %v3839 = vld [vmem:[#allocation2 + $0x2a8] sm:$0xff]
        %v3840 = vld [vmem:[#allocation2 + $0x2b0] sm:$0xff]
        %v3841 = vld [vmem:[#allocation2 + $0x2b8] sm:$0xff]
        %v3842 = vld [vmem:[#allocation2 + $0x2c0] sm:$0xff]
        %v3843 = vld [vmem:[#allocation2 + $0x2c8] sm:$0xff]
        %v3844 = vld [vmem:[#allocation2 + $0x2d0] sm:$0xff]
        %v3845 = vld [vmem:[#allocation2 + $0x2d8] sm:$0xff]
        %v3846 = vld [vmem:[#allocation2 + $0x2e0] sm:$0xff]
        %v3847 = vld [vmem:[#allocation2 + $0x2e8] sm:$0xff]
        %v3848 = vld [vmem:[#allocation2 + $0x2f0] sm:$0xff]
        %v3849 = vld [vmem:[#allocation2 + $0x2f8] sm:$0xff]
        %v3850 = vld [vmem:[#allocation2 + $0x300] sm:$0xff]
        %v3851 = vld [vmem:[#allocation2 + $0x308] sm:$0xff]
        %v3852 = vld [vmem:[#allocation2 + $0x310] sm:$0xff]
        %v3853 = vld [vmem:[#allocation2 + $0x318] sm:$0xff]
        %v3854 = vld [vmem:[#allocation2 + $0x320] sm:$0xff]
        %v3855 = vld [vmem:[#allocation2 + $0x328] sm:$0xff]
        %v3856 = vld [vmem:[#allocation2 + $0x330] sm:$0xff]
        %v3857 = vld [vmem:[#allocation2 + $0x338] sm:$0xff]
        %v3858 = vld [vmem:[#allocation2 + $0x340] sm:$0xff]
        %v3859 = vld [vmem:[#allocation2 + $0x348] sm:$0xff]
        %v3860 = vld [vmem:[#allocation2 + $0x350] sm:$0xff]
        %v3861 = vld [vmem:[#allocation2 + $0x358] sm:$0xff]
        %v3862 = vld [vmem:[#allocation2 + $0x360] sm:$0xff]
        %v3863 = vld [vmem:[#allocation2 + $0x368] sm:$0xff]
        %v3864 = vld [vmem:[#allocation2 + $0x370] sm:$0xff]
        %v3865 = vld [vmem:[#allocation2 + $0x378] sm:$0xff]
        %v3866 = vld [vmem:[#allocation2 + $0x380] sm:$0xff]
        %v3867 = vld [vmem:[#allocation2 + $0x388] sm:$0xff]
        %v3868 = vld [vmem:[#allocation2 + $0x390] sm:$0xff]
        %v3869 = vld [vmem:[#allocation2 + $0x398] sm:$0xff]
        %v3870 = vld [vmem:[#allocation2 + $0x3a0] sm:$0xff]
        %v3871 = vld [vmem:[#allocation2 + $0x3a8] sm:$0xff]
        %v3872 = vld [vmem:[#allocation2 + $0x3b0] sm:$0xff]
        %v3873 = vld [vmem:[#allocation2 + $0x3b8] sm:$0xff]
        %v3874 = vld [vmem:[#allocation2 + $0x3c0] sm:$0xff]
        %v3875 = vld [vmem:[#allocation2 + $0x3c8] sm:$0xff]
        %v3876 = vld [vmem:[#allocation2 + $0x3d0] sm:$0xff]
        %v3877 = vld [vmem:[#allocation2 + $0x3d8] sm:$0xff]
        %v3878 = vld [vmem:[#allocation2 + $0x3e0] sm:$0xff]
        %v3879 = vld [vmem:[#allocation2 + $0x3e8] sm:$0xff]
        %v3880 = vld [vmem:[#allocation2 + $0x3f0] sm:$0xff]
        %v3881 = vld [vmem:[#allocation2 + $0x3f8] sm:$0xff]
        %v3882 = vld [vmem:[#allocation2 + $0x400] sm:$0xff]
        %v3883 = vld [vmem:[#allocation2 + $0x408] sm:$0xff]
        %v3884 = vld [vmem:[#allocation2 + $0x410] sm:$0xff]
        %v3885 = vld [vmem:[#allocation2 + $0x418] sm:$0xff]
        %v3886 = vld [vmem:[#allocation2 + $0x420] sm:$0xff]
        %v3887 = vld [vmem:[#allocation2 + $0x428] sm:$0xff]
        %v3888 = vld [vmem:[#allocation2 + $0x430] sm:$0xff]
        %v3889 = vld [vmem:[#allocation2 + $0x438] sm:$0xff]
        %v3890 = vld [vmem:[#allocation2 + $0x440] sm:$0xff]
        %v3891 = vld [vmem:[#allocation2 + $0x448] sm:$0xff]
        %v3892 = vld [vmem:[#allocation2 + $0x450] sm:$0xff]
        %v3893 = vld [vmem:[#allocation2 + $0x458] sm:$0xff]
        %v3894 = vld [vmem:[#allocation2 + $0x460] sm:$0xff]
        %v3895 = vld [vmem:[#allocation2 + $0x468] sm:$0xff]
        %v3896 = vld [vmem:[#allocation2 + $0x470] sm:$0xff]
        %v3897 = vld [vmem:[#allocation2 + $0x478] sm:$0xff]
        %v3898 = vld [vmem:[%s3] sm:$0xff]
        %v3899 = vld [vmem:[%s3 + $0x8] sm:$0xff]
        %v3900 = vld [vmem:[%s3 + $0x10] sm:$0xff]
        %v3901 = vld [vmem:[%s3 + $0x18] sm:$0xff]
        %3903 = vset.pattern.permute.xlu0 1
        %3904 = vperm.xlu0 %3903, %v3898
        %v3905 = vpop.permute.xlu0 %3904
        %3908 = vset.pattern.permute.xlu0 1
        %3909 = vperm.xlu0 %3908, %v3899
        %v3910 = vpop.permute.xlu0 %3909
        %3913 = vset.pattern.permute.xlu0 1
        %3914 = vperm.xlu0 %3913, %v3900
        %v3915 = vpop.permute.xlu0 %3914
        %3918 = vset.pattern.permute.xlu0 1
        %3919 = vperm.xlu0 %3918, %v3901
        %v3920 = vpop.permute.xlu0 %3919
        %v3923 = vsel %vm1949, %v3744, 0
        %v3926 = vsel %vm1949, %v3747, 0
        %v3929 = vsel %vm1949, %v3750, 0
        %v3932 = vsel %vm1949, %v3753, 0
        %3934 = vmatprep.subr.mxu0 %v3755
        %3935 = vmatpush1.msra.mxu0 %v3754
        %3936 = vmatprep.subr.mxu0 %v3759
        %3937 = vmatpush1.msra.mxu0 %v3758
        %3938 = vmatprep.subr.mxu0 %v3763
        %3939 = vmatpush1.msra.mxu0 %v3762
        %3940 = vmatprep.subr.mxu0 %v3767
        %3941 = vmatpush1.msra.mxu0 %v3766
        %3942 = vmatprep.subr.mxu0 %v3771
        %3943 = vmatpush1.msra.mxu0 %v3770
        %3944 = vmatprep.subr.mxu0 %v3775
        %3945 = vmatpush1.msra.mxu0 %v3774
        %3946 = vmatprep.subr.mxu0 %v3779
        %3947 = vmatpush1.msra.mxu0 %v3778
        %3948 = vmatprep.subr.mxu0 %v3783
        %3949 = vmatpush1.msra.mxu0 %v3782
        %3950 = vmatprep.subr.mxu0 %v3787
        %3951 = vmatpush1.msra.mxu0 %v3786
        %3952 = vmatprep.subr.mxu0 %v3791
        %3953 = vmatpush1.msra.mxu0 %v3790
        %3954 = vmatprep.subr.mxu0 %v3795
        %3955 = vmatpush1.msra.mxu0 %v3794
        %3956 = vmatprep.subr.mxu0 %v3799
        %3957 = vmatpush1.msra.mxu0 %v3798
        %3958 = vmatprep.subr.mxu0 %v3803
        %3959 = vmatpush1.msra.mxu0 %v3802
        %3960 = vmatprep.subr.mxu0 %v3807
        %3961 = vmatpush1.msra.mxu0 %v3806
        %3962 = vmatprep.subr.mxu0 %v3811
        %3963 = vmatpush1.msra.mxu0 %v3810
        %3964 = vmatprep.subr.mxu0 %v3815
        %3965 = vmatpush1.msra.mxu0 %v3814
        %3966 = vmatprep.subr.mxu0 %v3819
        %3967 = vmatpush1.msra.mxu0 %v3818
        %3968 = vmatprep.subr.mxu0 %v3823
        %3969 = vmatpush1.msra.mxu0 %v3822
        %3970 = vmatprep.subr.mxu0 %v3827
        %3971 = vmatpush1.msra.mxu0 %v3826
        %3972 = vmatprep.subr.mxu0 %v3831
        %3973 = vmatpush1.msra.mxu0 %v3830
        %3974 = vmatprep.subr.mxu0 %v3835
        %3975 = vmatpush1.msra.mxu0 %v3834
        %3976 = vmatprep.subr.mxu0 %v3839
        %3977 = vmatpush1.msra.mxu0 %v3838
        %3978 = vmatprep.subr.mxu0 %v3843
        %3979 = vmatpush1.msra.mxu0 %v3842
        %3980 = vmatprep.subr.mxu0 %v3847
        %3981 = vmatpush1.msra.mxu0 %v3846
        %3982 = vmatprep.subr.mxu0 %v3851
        %3983 = vmatpush1.msra.mxu0 %v3850
        %3984 = vmatprep.subr.mxu0 %v3855
        %3985 = vmatpush1.msra.mxu0 %v3854
        %3986 = vmatprep.subr.mxu0 %v3859
        %3987 = vmatpush1.msra.mxu0 %v3858
        %3988 = vmatprep.subr.mxu0 %v3863
        %3989 = vmatpush1.msra.mxu0 %v3862
        %3990 = vmatprep.subr.mxu0 %v3867
        %3991 = vmatpush1.msra.mxu0 %v3866
        %3992 = vmatprep.subr.mxu0 %v3871
        %3993 = vmatpush1.msra.mxu0 %v3870
        %3994 = vmatprep.subr.mxu0 %v3875
        %3995 = vmatpush1.msra.mxu0 %v3874
        %3996 = vmatprep.subr.mxu0 %v3879
        %3997 = vmatpush1.msra.mxu0 %v3878
        %3998 = vmatprep.mubr.f32.mxu0 %v3743
        %3999 = vmatmul.mubr.f32.gmra.mrb[0].mxu0 %v3742
        %v4000 = vpop.f32.mrb[0].mxu0
        %v4001 = vadd.f32 %v3905, %v4000
        %v4002 = vpop.f32.mrb[0].mxu0
        %v4003 = vadd.f32 %v3905, %v4002
        %4004 = vmatprep.mubr.f32.mxu0 %v3746
        %4005 = vmatmul.mubr.f32.gmra.mrb[0].mxu0 %v3745
        %v4006 = vpop.f32.mrb[0].mxu0
        %v4007 = vadd.f32 %v3910, %v4006
        %v4008 = vpop.f32.mrb[0].mxu0
        %v4009 = vadd.f32 %v3910, %v4008
        %4010 = vmatprep.mubr.f32.mxu0 %v3749
        %4011 = vmatmul.mubr.f32.gmra.mrb[0].mxu0 %v3748
        %v4012 = vpop.f32.mrb[0].mxu0
        %v4013 = vadd.f32 %v3915, %v4012
        %v4014 = vpop.f32.mrb[0].mxu0
        %v4015 = vadd.f32 %v3915, %v4014
        %4016 = vmatprep.mubr.f32.mxu0 %v3752
        %4017 = vmatmul.mubr.f32.gmra.mrb[0].mxu0 %v3751
        %v4018 = vpop.f32.mrb[0].mxu0
        %v4019 = vadd.f32 %v3920, %v4018
        %v4020 = vpop.f32.mrb[0].mxu0
        %v4021 = vadd.f32 %v3920, %v4020
        %4022 = vdwg.mxu0
        %4023 = vmatprep.subr.mxu0 %v3883
        %4024 = vmatpush1.msra.mxu0 %v3882
        %4025 = vmatprep.subr.mxu0 %v3887
        %4026 = vmatpush1.msra.mxu0 %v3886
        %4027 = vmatprep.subr.mxu0 %v3891
        %4028 = vmatpush1.msra.mxu0 %v3890
        %4029 = vmatprep.subr.mxu0 %v3895
        %4030 = vmatpush1.msra.mxu0 %v3894
        %4031 = vmatprep.subr.mxu0 0.0
        %4032 = vmatpush1.msra.mxu0 0.0
        %4033 = vmatprep.subr.mxu0 0.0
        %4034 = vmatpush1.msra.mxu0 0.0
        %4035 = vmatprep.subr.mxu0 0.0
        %4036 = vmatpush1.msra.mxu0 0.0
        %4037 = vmatprep.subr.mxu0 0.0
        %4038 = vmatpush1.msra.mxu0 0.0
        %4039 = vmatprep.subr.mxu0 0.0
        %4040 = vmatpush1.msra.mxu0 0.0
        %4041 = vmatprep.subr.mxu0 0.0
        %4042 = vmatpush1.msra.mxu0 0.0
        %4043 = vmatprep.subr.mxu0 0.0
        %4044 = vmatpush1.msra.mxu0 0.0
        %4045 = vmatprep.subr.mxu0 0.0
        %4046 = vmatpush1.msra.mxu0 0.0
        %4047 = vmatprep.subr.mxu0 0.0
        %4048 = vmatpush1.msra.mxu0 0.0
        %4049 = vmatprep.subr.mxu0 0.0
        %4050 = vmatpush1.msra.mxu0 0.0
        %4051 = vmatprep.subr.mxu0 0.0
        %4052 = vmatpush1.msra.mxu0 0.0
        %4053 = vmatprep.subr.mxu0 0.0
        %4054 = vmatpush1.msra.mxu0 0.0
        %4055 = vmatprep.subr.mxu0 0.0
        %4056 = vmatpush1.msra.mxu0 0.0
        %4057 = vmatprep.subr.mxu0 0.0
        %4058 = vmatpush1.msra.mxu0 0.0
        %4059 = vmatprep.subr.mxu0 0.0
        %4060 = vmatpush1.msra.mxu0 0.0
        %4061 = vmatprep.subr.mxu0 0.0
        %4062 = vmatpush1.msra.mxu0 0.0
        %4063 = vmatprep.subr.mxu0 0.0
        %4064 = vmatpush1.msra.mxu0 0.0
        %4065 = vmatprep.subr.mxu0 0.0
        %4066 = vmatpush1.msra.mxu0 0.0
        %4067 = vmatprep.subr.mxu0 0.0
        %4068 = vmatpush1.msra.mxu0 0.0
        %4069 = vmatprep.subr.mxu0 0.0
        %4070 = vmatpush1.msra.mxu0 0.0
        %4071 = vmatprep.subr.mxu0 0.0
        %4072 = vmatpush1.msra.mxu0 0.0
        %4073 = vmatprep.subr.mxu0 0.0
        %4074 = vmatpush1.msra.mxu0 0.0
        %4075 = vmatprep.subr.mxu0 0.0
        %4076 = vmatpush1.msra.mxu0 0.0
        %4077 = vmatprep.subr.mxu0 0.0
        %4078 = vmatpush1.msra.mxu0 0.0
        %4079 = vmatprep.subr.mxu0 0.0
        %4080 = vmatpush1.msra.mxu0 0.0
        %4081 = vmatprep.subr.mxu0 0.0
        %4082 = vmatpush1.msra.mxu0 0.0
        %4083 = vmatprep.subr.mxu0 0.0
        %4084 = vmatpush1.msra.mxu0 0.0
        %4085 = vmatprep.subr.mxu0 0.0
        %4086 = vmatpush1.msra.mxu0 0.0
        %4087 = vmatprep.mubr.f32.mxu0 0.0
        %4088 = vmatmul.mubr.f32.gmra.mrb[0].mxu0 %v3923
        %v4089 = vpop.f32.mrb[0].mxu0
        %v4090 = vadd.f32 %v4001, %v4089
        %v4091 = vpop.f32.mrb[0].mxu0
        %v4092 = vadd.f32 %v4003, %v4091
        %4093 = vmatprep.mubr.f32.mxu0 0.0
        %4094 = vmatmul.mubr.f32.gmra.mrb[0].mxu0 %v3926
        %v4095 = vpop.f32.mrb[0].mxu0
        %v4096 = vadd.f32 %v4007, %v4095
        %v4097 = vpop.f32.mrb[0].mxu0
        %v4098 = vadd.f32 %v4009, %v4097
        %4099 = vmatprep.mubr.f32.mxu0 0.0
        %4100 = vmatmul.mubr.f32.gmra.mrb[0].mxu0 %v3929
        %v4101 = vpop.f32.mrb[0].mxu0
        %v4102 = vadd.f32 %v4013, %v4101
        %v4103 = vpop.f32.mrb[0].mxu0
        %v4104 = vadd.f32 %v4015, %v4103
        %4105 = vmatprep.mubr.f32.mxu0 0.0
        %4106 = vmatmul.mubr.f32.gmra.mrb[0].mxu0 %v3932
        %v4107 = vpop.f32.mrb[0].mxu0
        %v4108 = vadd.f32 %v4019, %v4107
        %v4109 = vpop.f32.mrb[0].mxu0
        %v4110 = vadd.f32 %v4021, %v4109
        %4111 = vdwg.mxu0
        %4112 = vmatprep.subr.mxu0 %v3757
        %4113 = vmatpush1.msra.mxu0 %v3756
        %4114 = vmatprep.subr.mxu0 %v3761
        %4115 = vmatpush1.msra.mxu0 %v3760
        %4116 = vmatprep.subr.mxu0 %v3765
        %4117 = vmatpush1.msra.mxu0 %v3764
        %4118 = vmatprep.subr.mxu0 %v3769
        %4119 = vmatpush1.msra.mxu0 %v3768
        %4120 = vmatprep.subr.mxu0 %v3773
        %4121 = vmatpush1.msra.mxu0 %v3772
        %4122 = vmatprep.subr.mxu0 %v3777
        %4123 = vmatpush1.msra.mxu0 %v3776
        %4124 = vmatprep.subr.mxu0 %v3781
        %4125 = vmatpush1.msra.mxu0 %v3780
        %4126 = vmatprep.subr.mxu0 %v3785
        %4127 = vmatpush1.msra.mxu0 %v3784
        %4128 = vmatprep.subr.mxu0 %v3789
        %4129 = vmatpush1.msra.mxu0 %v3788
        %4130 = vmatprep.subr.mxu0 %v3793
        %4131 = vmatpush1.msra.mxu0 %v3792
        %4132 = vmatprep.subr.mxu0 %v3797
        %4133 = vmatpush1.msra.mxu0 %v3796
        %4134 = vmatprep.subr.mxu0 %v3801
        %4135 = vmatpush1.msra.mxu0 %v3800
        %4136 = vmatprep.subr.mxu0 %v3805
        %4137 = vmatpush1.msra.mxu0 %v3804
        %4138 = vmatprep.subr.mxu0 %v3809
        %4139 = vmatpush1.msra.mxu0 %v3808
        %4140 = vmatprep.subr.mxu0 %v3813
        %4141 = vmatpush1.msra.mxu0 %v3812
        %4142 = vmatprep.subr.mxu0 %v3817
        %4143 = vmatpush1.msra.mxu0 %v3816
        %4144 = vmatprep.subr.mxu0 %v3821
        %4145 = vmatpush1.msra.mxu0 %v3820
        %4146 = vmatprep.subr.mxu0 %v3825
        %4147 = vmatpush1.msra.mxu0 %v3824
        %4148 = vmatprep.subr.mxu0 %v3829
        %4149 = vmatpush1.msra.mxu0 %v3828
        %4150 = vmatprep.subr.mxu0 %v3833
        %4151 = vmatpush1.msra.mxu0 %v3832
        %4152 = vmatprep.subr.mxu0 %v3837
        %4153 = vmatpush1.msra.mxu0 %v3836
        %4154 = vmatprep.subr.mxu0 %v3841
        %4155 = vmatpush1.msra.mxu0 %v3840
        %4156 = vmatprep.subr.mxu0 %v3845
        %4157 = vmatpush1.msra.mxu0 %v3844
        %4158 = vmatprep.subr.mxu0 %v3849
        %4159 = vmatpush1.msra.mxu0 %v3848
        %4160 = vmatprep.subr.mxu0 %v3853
        %4161 = vmatpush1.msra.mxu0 %v3852
        %4162 = vmatprep.subr.mxu0 %v3857
        %4163 = vmatpush1.msra.mxu0 %v3856
        %4164 = vmatprep.subr.mxu0 %v3861
        %4165 = vmatpush1.msra.mxu0 %v3860
        %4166 = vmatprep.subr.mxu0 %v3865
        %4167 = vmatpush1.msra.mxu0 %v3864
        %4168 = vmatprep.subr.mxu0 %v3869
        %4169 = vmatpush1.msra.mxu0 %v3868
        %4170 = vmatprep.subr.mxu0 %v3873
        %4171 = vmatpush1.msra.mxu0 %v3872
        %4172 = vmatprep.subr.mxu0 %v3877
        %4173 = vmatpush1.msra.mxu0 %v3876
        %4174 = vmatprep.subr.mxu0 %v3881
        %4175 = vmatpush1.msra.mxu0 %v3880
        %4176 = vmatprep.mubr.f32.mxu0 %v3743
        %4177 = vmatmul.mubr.f32.gmra.mrb[0].mxu0 %v3742
        %v4178 = vpop.f32.mrb[0].mxu0
        %v4179 = vadd.f32 %v3905, %v4178
        %v4180 = vpop.f32.mrb[0].mxu0
        %v4181 = vadd.f32 %v3905, %v4180
        %4182 = vmatprep.mubr.f32.mxu0 %v3746
        %4183 = vmatmul.mubr.f32.gmra.mrb[0].mxu0 %v3745
        %v4184 = vpop.f32.mrb[0].mxu0
        %v4185 = vadd.f32 %v3910, %v4184
        %v4186 = vpop.f32.mrb[0].mxu0
        %v4187 = vadd.f32 %v3910, %v4186
        %4188 = vmatprep.mubr.f32.mxu0 %v3749
        %4189 = vmatmul.mubr.f32.gmra.mrb[0].mxu0 %v3748
        %v4190 = vpop.f32.mrb[0].mxu0
        %v4191 = vadd.f32 %v3915, %v4190
        %v4192 = vpop.f32.mrb[0].mxu0
        %v4193 = vadd.f32 %v3915, %v4192
        %4194 = vmatprep.mubr.f32.mxu0 %v3752
        %4195 = vmatmul.mubr.f32.gmra.mrb[0].mxu0 %v3751
        %v4196 = vpop.f32.mrb[0].mxu0
        %v4197 = vadd.f32 %v3920, %v4196
        %v4198 = vpop.f32.mrb[0].mxu0
        %v4199 = vadd.f32 %v3920, %v4198
        %4200 = vdwg.mxu0
        %4201 = vmatprep.subr.mxu0 %v3885
        %4202 = vmatpush1.msra.mxu0 %v3884
        %4203 = vmatprep.subr.mxu0 %v3889
        %4204 = vmatpush1.msra.mxu0 %v3888
        %4205 = vmatprep.subr.mxu0 %v3893
        %4206 = vmatpush1.msra.mxu0 %v3892
        %4207 = vmatprep.subr.mxu0 %v3897
        %4208 = vmatpush1.msra.mxu0 %v3896
        %4209 = vmatprep.subr.mxu0 0.0
        %4210 = vmatpush1.msra.mxu0 0.0
        %4211 = vmatprep.subr.mxu0 0.0
        %4212 = vmatpush1.msra.mxu0 0.0
        %4213 = vmatprep.subr.mxu0 0.0
        %4214 = vmatpush1.msra.mxu0 0.0
        %4215 = vmatprep.subr.mxu0 0.0
        %4216 = vmatpush1.msra.mxu0 0.0
        %4217 = vmatprep.subr.mxu0 0.0
        %4218 = vmatpush1.msra.mxu0 0.0
        %4219 = vmatprep.subr.mxu0 0.0
        %4220 = vmatpush1.msra.mxu0 0.0
        %4221 = vmatprep.subr.mxu0 0.0
        %4222 = vmatpush1.msra.mxu0 0.0
        %4223 = vmatprep.subr.mxu0 0.0
        %4224 = vmatpush1.msra.mxu0 0.0
        %4225 = vmatprep.subr.mxu0 0.0
        %4226 = vmatpush1.msra.mxu0 0.0
        %4227 = vmatprep.subr.mxu0 0.0
        %4228 = vmatpush1.msra.mxu0 0.0
        %4229 = vmatprep.subr.mxu0 0.0
        %4230 = vmatpush1.msra.mxu0 0.0
        %4231 = vmatprep.subr.mxu0 0.0
        %4232 = vmatpush1.msra.mxu0 0.0
        %4233 = vmatprep.subr.mxu0 0.0
        %4234 = vmatpush1.msra.mxu0 0.0
        %4235 = vmatprep.subr.mxu0 0.0
        %4236 = vmatpush1.msra.mxu0 0.0
        %4237 = vmatprep.subr.mxu0 0.0
        %4238 = vmatpush1.msra.mxu0 0.0
        %4239 = vmatprep.subr.mxu0 0.0
        %4240 = vmatpush1.msra.mxu0 0.0
        %4241 = vmatprep.subr.mxu0 0.0
        %4242 = vmatpush1.msra.mxu0 0.0
        %4243 = vmatprep.subr.mxu0 0.0
        %4244 = vmatpush1.msra.mxu0 0.0
        %4245 = vmatprep.subr.mxu0 0.0
        %4246 = vmatpush1.msra.mxu0 0.0
        %4247 = vmatprep.subr.mxu0 0.0
        %4248 = vmatpush1.msra.mxu0 0.0
        %4249 = vmatprep.subr.mxu0 0.0
        %4250 = vmatpush1.msra.mxu0 0.0
        %4251 = vmatprep.subr.mxu0 0.0
        %4252 = vmatpush1.msra.mxu0 0.0
        %4253 = vmatprep.subr.mxu0 0.0
        %4254 = vmatpush1.msra.mxu0 0.0
        %4255 = vmatprep.subr.mxu0 0.0
        %4256 = vmatpush1.msra.mxu0 0.0
        %4257 = vmatprep.subr.mxu0 0.0
        %4258 = vmatpush1.msra.mxu0 0.0
        %4259 = vmatprep.subr.mxu0 0.0
        %4260 = vmatpush1.msra.mxu0 0.0
        %4261 = vmatprep.subr.mxu0 0.0
        %4262 = vmatpush1.msra.mxu0 0.0
        %4263 = vmatprep.subr.mxu0 0.0
        %4264 = vmatpush1.msra.mxu0 0.0
        %4265 = vmatprep.mubr.f32.mxu0 0.0
        %4266 = vmatmul.mubr.f32.gmra.mrb[0].mxu0 %v3923
        %v4267 = vpop.f32.mrb[0].mxu0
        %v4268 = vadd.f32 %v4179, %v4267
        %v4269 = vpop.f32.mrb[0].mxu0
        %v4270 = vadd.f32 %v4181, %v4269
        %4271 = vmatprep.mubr.f32.mxu0 0.0
        %4272 = vmatmul.mubr.f32.gmra.mrb[0].mxu0 %v3926
        %v4273 = vpop.f32.mrb[0].mxu0
        %v4274 = vadd.f32 %v4185, %v4273
        %v4275 = vpop.f32.mrb[0].mxu0
        %v4276 = vadd.f32 %v4187, %v4275
        %4277 = vmatprep.mubr.f32.mxu0 0.0
        %4278 = vmatmul.mubr.f32.gmra.mrb[0].mxu0 %v3929
        %v4279 = vpop.f32.mrb[0].mxu0
        %v4280 = vadd.f32 %v4191, %v4279
        %v4281 = vpop.f32.mrb[0].mxu0
        %v4282 = vadd.f32 %v4193, %v4281
        %4283 = vmatprep.mubr.f32.mxu0 0.0
        %4284 = vmatmul.mubr.f32.gmra.mrb[0].mxu0 %v3932
        %v4285 = vpop.f32.mrb[0].mxu0
        %v4286 = vadd.f32 %v4197, %v4285
        %v4287 = vpop.f32.mrb[0].mxu0
        %v4288 = vadd.f32 %v4199, %v4287
        %4289 = vdwg.mxu0
        %v4290 = vadd.f32 %v4090, %v4092
        %4291 = vadd.xlane.f32.xlu0 %v4290
        %v4292 = vpop.xlane.xlu0 %4291
        %v4293 = vadd.f32 %v4096, %v4098
        %4294 = vadd.xlane.f32.xlu0 %v4293
        %v4295 = vpop.xlane.xlu0 %4294
        %v4296 = vadd.f32 %v4102, %v4104
        %4297 = vadd.xlane.f32.xlu0 %v4296
        %v4298 = vpop.xlane.xlu0 %4297
        %v4299 = vadd.f32 %v4108, %v4110
        %4300 = vadd.xlane.f32.xlu0 %v4299
        %v4301 = vpop.xlane.xlu0 %4300
        %v4302 = vrcp.pop 256.0
        %v4303 = vmul.f32 %v4292, %v4302
        %v4304 = vmul.f32 %v4295, %v4302
        %v4305 = vmul.f32 %v4298, %v4302
        %v4306 = vmul.f32 %v4301, %v4302
        %v4307 = vld [vmem:[%s4] sm:$0xff]
        %v4308 = vld [vmem:[%s4 + $0x8] sm:$0xff]
        %v4309 = vld [vmem:[%s4 + $0x10] sm:$0xff]
        %v4310 = vld [vmem:[%s4 + $0x18] sm:$0xff]
        %v4311 = vmul.f32 %v4307, %v4303
        %v4312 = vmul.f32 %v4308, %v4304
        %v4313 = vmul.f32 %v4309, %v4305
        %v4314 = vmul.f32 %v4310, %v4306
        %vm4315 = vcmask 15360
        %v4316 = vsel %vm4315, %v4311, 0.0
        %v4317 = vsel %vm4315, %v4312, 0.0
        %v4318 = vadd.f32 %v4316, %v4317
        %v4319 = vsel %vm4315, %v4313, 0.0
        %v4320 = vadd.f32 %v4318, %v4319
        %v4321 = vsel %vm4315, %v4314, 0.0
        %v4322 = vadd.f32 %v4320, %v4321
        %v4323 = vrot.slane %v4322, 4
        %v4324 = vadd.f32 %v4322, %v4323
        %v4325 = vrot.slane %v4324, 2
        %v4326 = vadd.f32 %v4324, %v4325
        %v4327 = vrot.slane %v4326, 1
        %v4328 = vadd.f32 %v4326, %v4327
        %v4329 = vmax.f32 %v4328, 0.0
        %v4330 = vld [vmem:[%s5] sm:$0xff]
        %v4331 = vld [vmem:[%s5 + $0x8] sm:$0xff]
        %v4332 = vld [vmem:[%s5 + $0x10] sm:$0xff]
        %v4333 = vld [vmem:[%s5 + $0x18] sm:$0xff]
        %v4334 = vmul.f32 %v4330, %v4329
        %v4335 = vmul.f32 %v4331, %v4329
        %v4336 = vmul.f32 %v4332, %v4329
        %v4337 = vmul.f32 %v4333, %v4329
        %v4338 = vsel %vm4315, %v4334, 0.0
        %4339 = vadd.xlane.f32.xlu0 %v4338
        %v4340 = vpop.xlane.xlu0 %4339
        %v4341 = vsel %vm4315, %v4335, 0.0
        %4342 = vadd.xlane.f32.xlu0 %v4341
        %v4343 = vpop.xlane.xlu0 %4342
        %v4344 = vsel %vm4315, %v4336, 0.0
        %4345 = vadd.xlane.f32.xlu0 %v4344
        %v4346 = vpop.xlane.xlu0 %4345
        %v4347 = vsel %vm4315, %v4337, 0.0
        %4348 = vadd.xlane.f32.xlu0 %v4347
        %v4349 = vpop.xlane.xlu0 %4348
        %v4350 = vsub.f32 0.0, %v4340
        %v4351 = vsub.f32 0.0, %v4343
        %v4352 = vsub.f32 0.0, %v4346
        %v4353 = vsub.f32 0.0, %v4349
        %v4354 = vmul.f32 %v4350, 1.442695
        %v4355 = vpow.pop %v4354
        %v4356 = vmul.f32 %v4351, 1.442695
        %v4357 = vpow.pop %v4356
        %v4358 = vmul.f32 %v4352, 1.442695
        %v4359 = vpow.pop %v4358
        %v4360 = vmul.f32 %v4353, 1.442695
        %v4361 = vpow.pop %v4360
        %v4362 = vadd.f32 %v4355, 1.0
        %v4363 = vadd.f32 %v4357, 1.0
        %v4364 = vadd.f32 %v4359, 1.0
        %v4365 = vadd.f32 %v4361, 1.0
        %v4366 = vrcp.pop %v4362
        %v4367 = vmul.f32 1.0, %v4366
        %v4368 = vrcp.pop %v4363
        %v4369 = vmul.f32 1.0, %v4368
        %v4370 = vrcp.pop %v4364
        %v4371 = vmul.f32 1.0, %v4370
        %v4372 = vrcp.pop %v4365
        %v4373 = vmul.f32 1.0, %v4372
        %v4374 = vld [vmem:[#allocation3 + $0x8] sm:$0xff]
        %v4375 = vld [vmem:[#allocation3 + $0x10] sm:$0xff]
        %v4376 = vld [vmem:[#allocation3 + $0x38] sm:$0xff]
        %v4377 = vld [vmem:[#allocation3 + $0x40] sm:$0xff]
        %v4378 = vld [vmem:[#allocation3 + $0x68] sm:$0xff]
        %v4379 = vld [vmem:[#allocation3 + $0x70] sm:$0xff]
        %v4380 = vld [vmem:[#allocation3 + $0x98] sm:$0xff]
        %v4381 = vld [vmem:[#allocation3 + $0xa0] sm:$0xff]
        %v4382 = vmul.f32 %v4090, %v4367
        %v4383 = vmul.f32 %v4092, %v4367
        %v4384 = vmul.f32 %v4096, %v4369
        %v4385 = vmul.f32 %v4098, %v4369
        %v4386 = vmul.f32 %v4102, %v4371
        %v4387 = vmul.f32 %v4104, %v4371
        %v4388 = vmul.f32 %v4108, %v4373
        %v4389 = vmul.f32 %v4110, %v4373
        %v4390 = vadd.f32 %v4382, %v4374
        %v4391 = vadd.f32 %v4383, %v4375
        %v4392 = vadd.f32 %v4384, %v4376
        %v4393 = vadd.f32 %v4385, %v4377
        %v4394 = vadd.f32 %v4386, %v4378
        %v4395 = vadd.f32 %v4387, %v4379
        %v4396 = vadd.f32 %v4388, %v4380
        %v4397 = vadd.f32 %v4389, %v4381
        %v4398 = vmax.f32 %v4390, 0.0
        %v4399 = vmax.f32 %v4391, 0.0
        %v4400 = vmax.f32 %v4392, 0.0
        %v4401 = vmax.f32 %v4393, 0.0
        %v4402 = vmax.f32 %v4394, 0.0
        %v4403 = vmax.f32 %v4395, 0.0
        %v4404 = vmax.f32 %v4396, 0.0
        %v4405 = vmax.f32 %v4397, 0.0
        %4406 = vst [vmem:[%s326] sm:$0xff] %v4398
        %4407 = vst [vmem:[%s326 + $0x8] sm:$0xff] %v4399
        %4408 = vst [vmem:[%s326 + $0x10] sm:$0xff] %v4400
        %4409 = vst [vmem:[%s326 + $0x18] sm:$0xff] %v4401
        %4410 = vst [vmem:[%s326 + $0x20] sm:$0xff] %v4402
        %4411 = vst [vmem:[%s326 + $0x28] sm:$0xff] %v4403
        %4412 = vst [vmem:[%s326 + $0x30] sm:$0xff] %v4404
        %4413 = vst [vmem:[%s326 + $0x38] sm:$0xff] %v4405
        %v4414 = vadd.f32 %v4268, %v4270
        %4415 = vadd.xlane.f32.xlu0 %v4414
        %v4416 = vpop.xlane.xlu0 %4415
        %v4417 = vadd.f32 %v4274, %v4276
        %4418 = vadd.xlane.f32.xlu0 %v4417
        %v4419 = vpop.xlane.xlu0 %4418
        %v4420 = vadd.f32 %v4280, %v4282
        %4421 = vadd.xlane.f32.xlu0 %v4420
        %v4422 = vpop.xlane.xlu0 %4421
        %v4423 = vadd.f32 %v4286, %v4288
        %4424 = vadd.xlane.f32.xlu0 %v4423
        %v4425 = vpop.xlane.xlu0 %4424
        %v4426 = vmul.f32 %v4416, %v4302
        %v4427 = vmul.f32 %v4419, %v4302
        %v4428 = vmul.f32 %v4422, %v4302
        %v4429 = vmul.f32 %v4425, %v4302
        %v4430 = vld [vmem:[%s4] sm:$0xff]
        %v4431 = vld [vmem:[%s4 + $0x8] sm:$0xff]
        %v4432 = vld [vmem:[%s4 + $0x10] sm:$0xff]
        %v4433 = vld [vmem:[%s4 + $0x18] sm:$0xff]
        %v4434 = vmul.f32 %v4430, %v4426
        %v4435 = vmul.f32 %v4431, %v4427
        %v4436 = vmul.f32 %v4432, %v4428
        %v4437 = vmul.f32 %v4433, %v4429
        %v4438 = vsel %vm4315, %v4434, 0.0
        %v4439 = vsel %vm4315, %v4435, 0.0
        %v4440 = vadd.f32 %v4438, %v4439
        %v4441 = vsel %vm4315, %v4436, 0.0
        %v4442 = vadd.f32 %v4440, %v4441
        %v4443 = vsel %vm4315, %v4437, 0.0
        %v4444 = vadd.f32 %v4442, %v4443
        %v4445 = vrot.slane %v4444, 4
        %v4446 = vadd.f32 %v4444, %v4445
        %v4447 = vrot.slane %v4446, 2
        %v4448 = vadd.f32 %v4446, %v4447
        %v4449 = vrot.slane %v4448, 1
        %v4450 = vadd.f32 %v4448, %v4449
        %v4451 = vmax.f32 %v4450, 0.0
        %v4452 = vld [vmem:[%s5] sm:$0xff]
        %v4453 = vld [vmem:[%s5 + $0x8] sm:$0xff]
        %v4454 = vld [vmem:[%s5 + $0x10] sm:$0xff]
        %v4455 = vld [vmem:[%s5 + $0x18] sm:$0xff]
        %v4456 = vmul.f32 %v4452, %v4451
        %v4457 = vmul.f32 %v4453, %v4451
        %v4458 = vmul.f32 %v4454, %v4451
        %v4459 = vmul.f32 %v4455, %v4451
        %v4460 = vsel %vm4315, %v4456, 0.0
        %4461 = vadd.xlane.f32.xlu0 %v4460
        %v4462 = vpop.xlane.xlu0 %4461
        %v4463 = vsel %vm4315, %v4457, 0.0
        %4464 = vadd.xlane.f32.xlu0 %v4463
        %v4465 = vpop.xlane.xlu0 %4464
        %v4466 = vsel %vm4315, %v4458, 0.0
        %4467 = vadd.xlane.f32.xlu0 %v4466
        %v4468 = vpop.xlane.xlu0 %4467
        %v4469 = vsel %vm4315, %v4459, 0.0
        %4470 = vadd.xlane.f32.xlu0 %v4469
        %v4471 = vpop.xlane.xlu0 %4470
        %v4472 = vsub.f32 0.0, %v4462
        %v4473 = vsub.f32 0.0, %v4465
        %v4474 = vsub.f32 0.0, %v4468
        %v4475 = vsub.f32 0.0, %v4471
        %v4476 = vmul.f32 %v4472, 1.442695
        %v4477 = vpow.pop %v4476
        %v4478 = vmul.f32 %v4473, 1.442695
        %v4479 = vpow.pop %v4478
        %v4480 = vmul.f32 %v4474, 1.442695
        %v4481 = vpow.pop %v4480
        %v4482 = vmul.f32 %v4475, 1.442695
        %v4483 = vpow.pop %v4482
        %v4484 = vadd.f32 %v4477, 1.0
        %v4485 = vadd.f32 %v4479, 1.0
        %v4486 = vadd.f32 %v4481, 1.0
        %v4487 = vadd.f32 %v4483, 1.0
        %v4488 = vrcp.pop %v4484
        %v4489 = vmul.f32 1.0, %v4488
        %v4490 = vrcp.pop %v4485
        %v4491 = vmul.f32 1.0, %v4490
        %v4492 = vrcp.pop %v4486
        %v4493 = vmul.f32 1.0, %v4492
        %v4494 = vrcp.pop %v4487
        %v4495 = vmul.f32 1.0, %v4494
        %v4496 = vld [vmem:[#allocation3 + $0x18] sm:$0xff]
        %v4497 = vld [vmem:[#allocation3 + $0x20] sm:$0xff]
        %v4498 = vld [vmem:[#allocation3 + $0x48] sm:$0xff]
        %v4499 = vld [vmem:[#allocation3 + $0x50] sm:$0xff]
        %v4500 = vld [vmem:[#allocation3 + $0x78] sm:$0xff]
        %v4501 = vld [vmem:[#allocation3 + $0x80] sm:$0xff]
        %v4502 = vld [vmem:[#allocation3 + $0xa8] sm:$0xff]
        %v4503 = vld [vmem:[#allocation3 + $0xb0] sm:$0xff]
        %v4504 = vmul.f32 %v4268, %v4489
        %v4505 = vmul.f32 %v4270, %v4489
        %v4506 = vmul.f32 %v4274, %v4491
        %v4507 = vmul.f32 %v4276, %v4491
        %v4508 = vmul.f32 %v4280, %v4493
        %v4509 = vmul.f32 %v4282, %v4493
        %v4510 = vmul.f32 %v4286, %v4495
        %v4511 = vmul.f32 %v4288, %v4495
        %v4512 = vadd.f32 %v4504, %v4496
        %v4513 = vadd.f32 %v4505, %v4497
        %v4514 = vadd.f32 %v4506, %v4498
        %v4515 = vadd.f32 %v4507, %v4499
        %v4516 = vadd.f32 %v4508, %v4500
        %v4517 = vadd.f32 %v4509, %v4501
        %v4518 = vadd.f32 %v4510, %v4502
        %v4519 = vadd.f32 %v4511, %v4503
        %v4520 = vmax.f32 %v4512, 0.0
        %v4521 = vmax.f32 %v4513, 0.0
        %v4522 = vmax.f32 %v4514, 0.0
        %v4523 = vmax.f32 %v4515, 0.0
        %v4524 = vmax.f32 %v4516, 0.0
        %v4525 = vmax.f32 %v4517, 0.0
        %v4526 = vmax.f32 %v4518, 0.0
        %v4527 = vmax.f32 %v4519, 0.0
        %s4528 = scalar_lea.vmem %s326, 64 [#allocation11]
        %4529 = vst [vmem:[%s4528] sm:$0xff] %v4520
        %4530 = vst [vmem:[%s4528 + $0x8] sm:$0xff] %v4521
        %4531 = vst [vmem:[%s4528 + $0x10] sm:$0xff] %v4522
        %4532 = vst [vmem:[%s4528 + $0x18] sm:$0xff] %v4523
        %4533 = vst [vmem:[%s4528 + $0x20] sm:$0xff] %v4524
        %4534 = vst [vmem:[%s4528 + $0x28] sm:$0xff] %v4525
        %4535 = vst [vmem:[%s4528 + $0x30] sm:$0xff] %v4526
        %4536 = vst [vmem:[%s4528 + $0x38] sm:$0xff] %v4527
        %s4537 = sand.u32 %s185, 1
        %s4538 = scalar_lea.sflag [#allocation7], %s4537
        %s4539 = sand.u32 %s185, 1
        %s4540 = smul.addr %s4539, 128
        %s4541 = scalar_lea.vmem [#allocation11], %s4540
        // Predicated region
        $region61: #{tpu_custom_call.1} parent=47 // pred_check
          %p4542 = pneg %p195
        $region62: #{tpu_custom_call.1} parent=47 // pred_check_branch
          %4544 = sbr.rel (%p4542) target = $region64
        $region63: #{tpu_custom_call.1} parent=47 // pred_region
          %s4545 = smul.u32 2, %s25
          %s4547 = ssub.s32 2048, 2048
          %4548 = vsyncadd %s4538, %s4547
          %s4549 = smul.addr %s4545, 8
          %s4550 = smul.addr %s4549, 128
          %s4551 = scalar_lea.hbm %s7, %s4550
          %s4552 = sshll.u32 %s4541, 4
          %s4553 = int_to_ptr.vmem [resolvable:$true] %s4552
          %4558 = dma.vmem_to_hbm [thread:$0]  %s4553, 2048, %s4551, %s4538, 256, 256, 16
        $region64: #{tpu_custom_call.1} parent=47 // pred_fallthru
          _
      $region48: #{tpu_custom_call.1} parent=5 // pred_fallthru
        _
      %p4559 = scmp.le.s32.totalorder 2, %s20
      // Predicated region
      $region65: #{tpu_custom_call.1} parent=5 // pred_check
        %p4560 = pneg %p4559
      $region66: #{tpu_custom_call.1} parent=5 // pred_check_branch
        %4562 = sbr.rel (%p4560) target = $region68
      $region67: #{tpu_custom_call.1} parent=5 // pred_region
        %s4563 = ssub.s32 %s20, 2
        // Predicated region
        $region69: #{tpu_custom_call.1} parent=67 // pred_check
          %p4564 = pneg %p201
        $region70: #{tpu_custom_call.1} parent=67 // pred_check_branch
          %4566 = sbr.rel (%p4564) target = $region72
        $region71: #{tpu_custom_call.1} parent=67 // pred_region
          %s4567 = sand.u32 %s186, 1
          %s4568 = scalar_lea.sflag [#allocation7], %s4567
          %s4569 = sand.u32 %s186, 1
          %s4570 = smul.addr %s4569, 128
          %s4571 = scalar_lea.vmem [#allocation11], %s4570
          %4572 = dma.done %s4568, 2048
        $region72: #{tpu_custom_call.1} parent=67 // pred_fallthru
          _
      $region68: #{tpu_custom_call.1} parent=5 // pred_fallthru
        _
    $region6: #{tpu_custom_call.1} parent=1 // loop_footer
      %s24 = sadd.s32 1, %s20
    $region7: #{tpu_custom_call.1} parent=1 // loop_footer_branch
      %19 = sbr.rel target = $region3
    $region8: #{tpu_custom_call.1} parent=1 // loop_exit
      _
    %4573 = vsyncpa [#allocation6], 1
    %s4574 = scalar_lea.sflag [#allocation6], 1
    %4575 = vsyncpa %s4574, 1
    %4576 = vsyncpa [#allocation9], 1
    %4577 = vsyncpa [#allocation7], 1
    %s4578 = scalar_lea.sflag [#allocation7], 1
    %4579 = vsyncpa %s4578, 1

</llo_original>
